<compile_context>
chip_gen: v7x
topology: tpu7x:2x2x1
jax: 0.10.0
libtpu: 0.0.40
codegen_flags: <defaults>
</compile_context>

<pallas_src>
import functools

import jax
import jax.numpy as jnp
import numpy as np
from jax.experimental import pallas as pl
from jax.experimental.pallas import tpu as pltpu


def _layernorm_f32(x, gamma, beta, eps=1e-5):
    # x is f32; two-pass variance (robust), rsqrt on the EUP.
    mu = jnp.mean(x, axis=-1, keepdims=True)
    d = x - mu
    var = jnp.mean(d * d, axis=-1, keepdims=True)
    return d * jax.lax.rsqrt(var + eps) * gamma + beta


def _gelu(x, approx):
    if approx:
        # tanh formulation -> EUP slot (frees VALU); enable via approx_gelu=True.
        return 0.5 * x * (1.0 + jnp.tanh(0.7978845608028654 * (x + 0.044715 * x * x * x)))
    # PyTorch nn.GELU default = exact erf formulation (kept for parity).
    return 0.5 * x * (1.0 + jax.lax.erf(x * 0.7071067811865476))


def block_kernel(x_ref,
                 g1_ref, b1_ref,
                 wqkv_ref, bqkv_ref,
                 wproj_ref, bproj_ref,
                 g2_ref, b2_ref,
                 w1_ref, bm1_ref,
                 w2_ref, bm2_ref,
                 o_ref,
                 xn_ref, qkv_ref, attn_ref, acc_ref,
                 *, num_heads, n_valid, mlp_chunk, approx_gelu):
    cdt = wqkv_ref.dtype                          # native MXU operand dtype (f32 or bf16)
    n_pad, c = xn_ref.shape
    hd = c // num_heads
    hidden = w1_ref.shape[1]

    # ---------------- LayerNorm 1 + fused full-width qkv projection ----------------
    xn_ref[...] = _layernorm_f32(x_ref[0].astype(jnp.float32),
                                 g1_ref[...], b1_ref[...]).astype(cdt)
    qkv_ref[...] = (jnp.dot(xn_ref[...], wqkv_ref[...],
                            preferred_element_type=jnp.float32)
                    + bqkv_ref[...]).astype(cdt)

    # key-padding mask (only emitted when the host actually padded the sequence)
    mask_cols = None
    if n_valid != n_pad:
        mask_cols = jax.lax.broadcasted_iota(jnp.int32, (1, n_pad), 1) >= n_valid

    # ---------------- per-head attention (fully unrolled, static lane slices) -------
    for h in range(num_heads):
        q = qkv_ref[:, h * hd:(h + 1) * hd]                     # pre-scaled on host
        k = qkv_ref[:, c + h * hd:c + (h + 1) * hd]
        v = qkv_ref[:, 2 * c + h * hd:2 * c + (h + 1) * hd]
        # scores: contract head_dim of q with head_dim of k (no explicit .T relayout)
        s = jax.lax.dot_general(q, k, (((1,), (1,)), ((), ())),
                                preferred_element_type=jnp.float32)   # (n_pad, n_pad)
        if mask_cols is not None:
            s = jnp.where(mask_cols, -1e30, s)
        s = s - jnp.max(s, axis=-1, keepdims=True)
        p = jnp.exp(s)
        p = p * pl.reciprocal(jnp.sum(p, axis=-1, keepdims=True), approx=True)
        hv = jnp.dot(p.astype(cdt), v, preferred_element_type=jnp.float32)  # (n_pad, hd)
        attn_ref[:, h * hd:(h + 1) * hd] = hv.astype(cdt)

    # ---------------- single full-width output projection + residual 1 --------------
    proj = jnp.dot(attn_ref[...], wproj_ref[...], preferred_element_type=jnp.float32)
    acc_ref[...] = x_ref[0].astype(jnp.float32) + proj + bproj_ref[...]

    # ---------------- LayerNorm 2 + hidden-chunked MLP ------------------------------
    xn_ref[...] = _layernorm_f32(acc_ref[...], g2_ref[...], b2_ref[...]).astype(cdt)
    for lo in range(0, hidden, mlp_chunk):
        hi = min(lo + mlp_chunk, hidden)
        h1 = (jnp.dot(xn_ref[...], w1_ref[:, lo:hi],
                      preferred_element_type=jnp.float32) + bm1_ref[:, lo:hi])
        h1 = _gelu(h1, approx_gelu)
        acc_ref[...] += jnp.dot(h1.astype(cdt), w2_ref[lo:hi, :],
                                preferred_element_type=jnp.float32)

    o_ref[0] = (acc_ref[...] + bm2_ref[...]).astype(o_ref.dtype)   # residual 2


def _pick_mlp_chunk(hidden, target=512):
    if hidden <= target:
        return hidden
    for cand in range(target, 0, -128):
        if hidden % cand == 0:
            return cand
    return hidden


def _vmem_limit_bytes():
    cap = 64 * 1024 * 1024
    try:
        info_cap = pltpu.get_tpu_info().vmem_capacity_bytes
        if info_cap:
            cap = int(info_cap)
    except Exception:
        pass
    # keep headroom for internal scratch / pipelining; cap at 64 MiB (48 MiB on v7x).
    return min((cap * 3) // 4, 64 * 1024 * 1024)


_WEIGHT_SINGLE_BUFFER_OK = None  # probe cache for pl.Buffered(1) support


def vit_block(x, params, num_heads, *, compute_dtype=None, approx_gelu=False):
    global _WEIGHT_SINGLE_BUFFER_OK
    B, N, C = x.shape
    assert C % num_heads == 0
    hd = C // num_heads
    scale = hd ** (-0.5)

    # ---- host-side sequence padding (lane/sublane friendly), masked in-kernel ----
    if N % 128 == 0:
        n_pad = N
    elif N >= 64:
        n_pad = ((N + 127) // 128) * 128
    else:
        n_pad = ((N + 7) // 8) * 8
    x_p = x if n_pad == N else jnp.pad(x, ((0, 0), (0, n_pad - N), (0, 0)))

    f32 = jnp.float32
    cdt = jnp.dtype(compute_dtype) if compute_dtype is not None else params["wqkv_t"].dtype

    # ---- host-side weight prep (one-time XLA ops, outside the kernel) ----
    # fold the attention scale into the q columns of the qkv projection (zero kernel cost)
    wqkv = params["wqkv_t"].astype(f32).at[:, :C].multiply(scale).astype(cdt)
    bqkv = params["bqkv"].astype(f32).at[:, :C].multiply(scale)

    weights = [
        params["g1"].astype(f32), params["b1"].astype(f32),
        wqkv, bqkv,
        params["wproj_t"].astype(cdt), params["bproj"].astype(f32),
        params["g2"].astype(f32), params["b2"].astype(f32),
        params["w1_t"].astype(cdt), params["bm1"].astype(f32),
        params["w2_t"].astype(cdt), params["bm2"].astype(f32),
    ]

    hidden = weights[8].shape[1]
    mlp_chunk = _pick_mlp_chunk(hidden)

    kernel = functools.partial(block_kernel, num_heads=num_heads, n_valid=N,
                               mlp_chunk=mlp_chunk, approx_gelu=approx_gelu)

    def build(single_buffer_weights):
        def wspec(w):
            nd = w.ndim
            imap = lambda b, _nd=nd: (0,) * _nd          # constant across the batch grid
            if single_buffer_weights:
                # one resident copy is enough for a constant index_map -> halves weight VMEM
                return pl.BlockSpec(w.shape, imap, pipeline_mode=pl.Buffered(1))
            return pl.BlockSpec(w.shape, imap)

        in_specs = [pl.BlockSpec((1, n_pad, C), lambda b: (b, 0, 0))]
        in_specs += [wspec(w) for w in weights]

        return pl.pallas_call(
            kernel,
            out_shape=jax.ShapeDtypeStruct((B, n_pad, C), x.dtype),
            grid=(B,),
            in_specs=in_specs,
            out_specs=pl.BlockSpec((1, n_pad, C), lambda b: (b, 0, 0)),
            scratch_shapes=[
                pltpu.VMEM((n_pad, C), cdt),          # LayerNorm output (matmul dtype)
                pltpu.VMEM((n_pad, 3 * C), cdt),      # fused qkv projection
                pltpu.VMEM((n_pad, C), cdt),          # per-head attention outputs (pre-proj)
                pltpu.VMEM((n_pad, C), f32),          # f32 residual / MLP accumulator
            ],
            compiler_params=pltpu.CompilerParams(
                dimension_semantics=("parallel",),
                vmem_limit_bytes=_vmem_limit_bytes(),
            ),
        )

    # TODO(synk): for v7x with odd/unit batch, add a second "parallel" grid axis (query tiles
    # with flash-style online softmax) so both TensorCores stay busy and (N,N) scores never
    # materialize whole for long sequences.
    # TODO(synk): when the surrounding stack donates activations, pass
    # input_output_aliases={0: 0} to reuse x's HBM buffer for the output.

    if _WEIGHT_SINGLE_BUFFER_OK is None:
        try:
            out = jax.block_until_ready(build(True)(x_p, *weights))
            _WEIGHT_SINGLE_BUFFER_OK = True
        except Exception:
            _WEIGHT_SINGLE_BUFFER_OK = False
            out = build(False)(x_p, *weights)
    else:
        out = build(_WEIGHT_SINGLE_BUFFER_OK)(x_p, *weights)

    return out if n_pad == N else out[:, :N, :]


def vit_block_ref(x, params, num_heads):
    # pure-JAX reference mirroring the PyTorch Block forward (eval mode)
    B, N, C = x.shape
    hd = C // num_heads
    scale = hd ** (-0.5)

    def ln(v, g, b, eps=1e-5):
        mu = jnp.mean(v, axis=-1, keepdims=True)
        var = jnp.mean((v - mu) ** 2, axis=-1, keepdims=True)
        return (v - mu) / jnp.sqrt(var + eps) * g + b

    xn = ln(x, params["g1"][0], params["b1"][0])
    qkv = xn @ params["wqkv_t"] + params["bqkv"][0]
    qkv = qkv.reshape(B, N, 3, num_heads, hd).transpose(2, 0, 3, 1, 4)
    q, k, v = qkv[0], qkv[1], qkv[2]
    attn = jnp.einsum("bhnd,bhmd->bhnm", q, k) * scale
    attn = jax.nn.softmax(attn, axis=-1)
    out = jnp.einsum("bhnm,bhmd->bhnd", attn, v).transpose(0, 2, 1, 3).reshape(B, N, C)
    out = out @ params["wproj_t"] + params["bproj"][0]
    x1 = x + out

    xn2 = ln(x1, params["g2"][0], params["b2"][0])
    h = jax.nn.gelu(xn2 @ params["w1_t"] + params["bm1"][0], approximate=False)
    h = h @ params["w2_t"] + params["bm2"][0]
    return x1 + h


def make_params(key, dim, num_heads, mlp_ratio=4.0, dtype=jnp.float32):
    hidden = int(dim * mlp_ratio)
    ks = jax.random.split(key, 8)
    s = 0.02
    return {
        # LayerNorm 1
        "g1": jnp.ones((1, dim), dtype),
        "b1": jnp.zeros((1, dim), dtype),
        # Attention qkv (stored pre-transposed: (C, 3C)) + bias (qkv_bias=True)
        "wqkv_t": (s * jax.random.normal(ks[0], (dim, 3 * dim))).astype(dtype),
        "bqkv": (s * jax.random.normal(ks[1], (1, 3 * dim))).astype(dtype),
        # Attention proj (pre-transposed: (C, C)) + bias
        "wproj_t": (s * jax.random.normal(ks[2], (dim, dim))).astype(dtype),
        "bproj": (s * jax.random.normal(ks[3], (1, dim))).astype(dtype),
        # LayerNorm 2
        "g2": jnp.ones((1, dim), dtype),
        "b2": jnp.zeros((1, dim), dtype),
        # Mlp fc1 (pre-transposed: (C, hidden)) + bias
        "w1_t": (s * jax.random.normal(ks[4], (dim, hidden))).astype(dtype),
        "bm1": (s * jax.random.normal(ks[5], (1, hidden))).astype(dtype),
        # Mlp fc2 (pre-transposed: (hidden, C)) + bias
        "w2_t": (s * jax.random.normal(ks[6], (hidden, dim))).astype(dtype),
        "bm2": (s * jax.random.normal(ks[7], (1, dim))).astype(dtype),
    }


if __name__ == "__main__":
    B, N, C = 2, 8, 32
    num_heads = 4

    key = jax.random.PRNGKey(0)
    kx, kp = jax.random.split(key)
    x = jax.random.normal(kx, (B, N, C), dtype=jnp.float32)
    params = make_params(kp, C, num_heads)

    # f32 path
    out = jax.block_until_ready(vit_block(x, params, num_heads))
    ref = jax.block_until_ready(vit_block_ref(x, params, num_heads))
    np.testing.assert_allclose(np.asarray(out), np.asarray(ref), atol=1e-3, rtol=1e-3)

    # padded / masked path (N=12 -> kernel pads to 16 tokens and masks softmax keys)
    x2 = jax.random.normal(jax.random.PRNGKey(1), (1, 12, C), dtype=jnp.float32)
    out2 = jax.block_until_ready(vit_block(x2, params, num_heads))
    ref2 = jax.block_until_ready(vit_block_ref(x2, params, num_heads))
    np.testing.assert_allclose(np.asarray(out2), np.asarray(ref2), atol=1e-3, rtol=1e-3)

    # bf16 matmul-operand path (recommended production mode) vs f32 reference
    out_bf = jax.block_until_ready(
        vit_block(x, params, num_heads, compute_dtype=jnp.bfloat16))
    np.testing.assert_allclose(np.asarray(out_bf), np.asarray(ref), atol=5e-2, rtol=5e-2)

    print("KERNEL_OK")
</pallas_src>

<mosaic_0001>
module attributes {stable_mosaic.version = 11 : i64} {
  func.func @block_kernel(%arg0: i32, %arg1: memref<1x8x32xf32, #tpu.memory_space<vmem>>, %arg2: memref<1x32xf32, #tpu.memory_space<vmem>>, %arg3: memref<1x32xf32, #tpu.memory_space<vmem>>, %arg4: memref<32x96xf32, #tpu.memory_space<vmem>>, %arg5: memref<1x96xf32, #tpu.memory_space<vmem>>, %arg6: memref<32x32xf32, #tpu.memory_space<vmem>>, %arg7: memref<1x32xf32, #tpu.memory_space<vmem>>, %arg8: memref<1x32xf32, #tpu.memory_space<vmem>>, %arg9: memref<1x32xf32, #tpu.memory_space<vmem>>, %arg10: memref<32x128xf32, #tpu.memory_space<vmem>>, %arg11: memref<1x128xf32, #tpu.memory_space<vmem>>, %arg12: memref<128x32xf32, #tpu.memory_space<vmem>>, %arg13: memref<1x32xf32, #tpu.memory_space<vmem>>, %arg14: memref<1x8x32xf32, #tpu.memory_space<vmem>>, %arg15: memref<8x32xf32, #tpu.memory_space<vmem>>, %arg16: memref<8x96xf32, #tpu.memory_space<vmem>>, %arg17: memref<8x32xf32, #tpu.memory_space<vmem>>, %arg18: memref<8x32xf32, #tpu.memory_space<vmem>>) attributes {dimension_semantics = [#tpu.dimension_semantics<parallel>], iteration_bounds = array<i64: 2>, scalar_prefetch = 0 : i64, scratch_operands = 4 : i64, tpu.core_type = #tpu.core_type<tc>, window_params = [{transform_indices = @transform_0, window_bounds = array<i64: 1, 8, 32>}, {pipeline_mode = #tpu.pipeline_mode<synchronous>, transform_indices = @transform_1, window_bounds = array<i64: 1, 32>}, {pipeline_mode = #tpu.pipeline_mode<synchronous>, transform_indices = @transform_2, window_bounds = array<i64: 1, 32>}, {pipeline_mode = #tpu.pipeline_mode<synchronous>, transform_indices = @transform_3, window_bounds = array<i64: 32, 96>}, {pipeline_mode = #tpu.pipeline_mode<synchronous>, transform_indices = @transform_4, window_bounds = array<i64: 1, 96>}, {pipeline_mode = #tpu.pipeline_mode<synchronous>, transform_indices = @transform_5, window_bounds = array<i64: 32, 32>}, {pipeline_mode = #tpu.pipeline_mode<synchronous>, transform_indices = @transform_6, window_bounds = array<i64: 1, 32>}, {pipeline_mode = #tpu.pipeline_mode<synchronous>, transform_indices = @transform_7, window_bounds = array<i64: 1, 32>}, {pipeline_mode = #tpu.pipeline_mode<synchronous>, transform_indices = @transform_8, window_bounds = array<i64: 1, 32>}, {pipeline_mode = #tpu.pipeline_mode<synchronous>, transform_indices = @transform_9, window_bounds = array<i64: 32, 128>}, {pipeline_mode = #tpu.pipeline_mode<synchronous>, transform_indices = @transform_10, window_bounds = array<i64: 1, 128>}, {pipeline_mode = #tpu.pipeline_mode<synchronous>, transform_indices = @transform_11, window_bounds = array<i64: 128, 32>}, {pipeline_mode = #tpu.pipeline_mode<synchronous>, transform_indices = @transform_12, window_bounds = array<i64: 1, 32>}, {transform_indices = @transform_13, window_bounds = array<i64: 1, 8, 32>}]} {
    %c0 = arith.constant 0 : index
    %c0_0 = arith.constant 0 : index
    %c0_1 = arith.constant 0 : index
    %0 = vector.load %arg1[%c0, %c0_0, %c0_1] : memref<1x8x32xf32, #tpu.memory_space<vmem>>, vector<1x8x32xf32>
    %1 = vector.shape_cast %0 : vector<1x8x32xf32> to vector<8x32xf32>
    %c0_2 = arith.constant 0 : index
    %c0_3 = arith.constant 0 : index
    %2 = vector.load %arg2[%c0_2, %c0_3] : memref<1x32xf32, #tpu.memory_space<vmem>>, vector<1x32xf32>
    %c0_4 = arith.constant 0 : index
    %c0_5 = arith.constant 0 : index
    %3 = vector.load %arg3[%c0_4, %c0_5] : memref<1x32xf32, #tpu.memory_space<vmem>>, vector<1x32xf32>
    %cst = arith.constant dense<0.000000e+00> : vector<8xf32>
    %4 = vector.multi_reduction <add>, %1, %cst [1] : vector<8x32xf32> to vector<8xf32>
    %5 = vector.shape_cast %4 : vector<8xf32> to vector<8x1xf32>
    %cst_6 = arith.constant 3.200000e+01 : f32
    %6 = vector.broadcast %cst_6 : f32 to vector<8x1xf32>
    %7 = arith.divf %5, %6 : vector<8x1xf32>
    %8 = vector.broadcast %7 : vector<8x1xf32> to vector<8x32xf32>
    %9 = arith.subf %1, %8 : vector<8x32xf32>
    %10 = arith.mulf %9, %9 : vector<8x32xf32>
    %cst_7 = arith.constant dense<0.000000e+00> : vector<8xf32>
    %11 = vector.multi_reduction <add>, %10, %cst_7 [1] : vector<8x32xf32> to vector<8xf32>
    %12 = vector.shape_cast %11 : vector<8xf32> to vector<8x1xf32>
    %cst_8 = arith.constant 3.200000e+01 : f32
    %13 = vector.broadcast %cst_8 : f32 to vector<8x1xf32>
    %14 = arith.divf %12, %13 : vector<8x1xf32>
    %cst_9 = arith.constant 9.99999974E-6 : f32
    %15 = vector.broadcast %cst_9 : f32 to vector<8x1xf32>
    %16 = arith.addf %14, %15 : vector<8x1xf32>
    %17 = math.rsqrt %16 : vector<8x1xf32>
    %18 = vector.broadcast %17 : vector<8x1xf32> to vector<8x32xf32>
    %19 = arith.mulf %9, %18 : vector<8x32xf32>
    %20 = vector.broadcast %2 : vector<1x32xf32> to vector<8x32xf32>
    %21 = arith.mulf %19, %20 : vector<8x32xf32>
    %22 = vector.broadcast %3 : vector<1x32xf32> to vector<8x32xf32>
    %23 = arith.addf %21, %22 : vector<8x32xf32>
    %c0_10 = arith.constant 0 : index
    %c0_11 = arith.constant 0 : index
    %24 = vector.load %arg15[%c0_10, %c0_11] : memref<8x32xf32, #tpu.memory_space<vmem>>, vector<8x32xf32>
    tpu.vector_store %arg15[%c0_10, %c0_11], %23 {strides = array<i32>} : memref<8x32xf32, #tpu.memory_space<vmem>>, vector<8x32xf32>,
    %c0_12 = arith.constant 0 : index
    %c0_13 = arith.constant 0 : index
    %25 = vector.load %arg15[%c0_12, %c0_13] : memref<8x32xf32, #tpu.memory_space<vmem>>, vector<8x32xf32>
    %c0_14 = arith.constant 0 : index
    %c0_15 = arith.constant 0 : index
    %26 = vector.load %arg4[%c0_14, %c0_15] : memref<32x96xf32, #tpu.memory_space<vmem>>, vector<32x96xf32>
    %cst_16 = arith.constant dense<0.000000e+00> : vector<8x96xf32>
    %27 = tpu.matmul %25, %26, %cst_16 {dimension_numbers = #tpu.dot_dimension_numbers<[1], [0], [0], [1], [0, 0, 1, 1], [], []>} : vector<8x32xf32>, vector<32x96xf32>, vector<8x96xf32> -> vector<8x96xf32>
    %c0_17 = arith.constant 0 : index
    %c0_18 = arith.constant 0 : index
    %28 = vector.load %arg5[%c0_17, %c0_18] : memref<1x96xf32, #tpu.memory_space<vmem>>, vector<1x96xf32>
    %29 = vector.broadcast %28 : vector<1x96xf32> to vector<8x96xf32>
    %30 = arith.addf %27, %29 : vector<8x96xf32>
    %c0_19 = arith.constant 0 : index
    %c0_20 = arith.constant 0 : index
    %31 = vector.load %arg16[%c0_19, %c0_20] : memref<8x96xf32, #tpu.memory_space<vmem>>, vector<8x96xf32>
    tpu.vector_store %arg16[%c0_19, %c0_20], %30 {strides = array<i32>} : memref<8x96xf32, #tpu.memory_space<vmem>>, vector<8x96xf32>,
    %c0_21 = arith.constant 0 : index
    %c0_22 = arith.constant 0 : index
    %32 = vector.load %arg16[%c0_21, %c0_22] : memref<8x96xf32, #tpu.memory_space<vmem>>, vector<8x8xf32>
    %c0_23 = arith.constant 0 : index
    %c32 = arith.constant 32 : index
    %33 = vector.load %arg16[%c0_23, %c32] : memref<8x96xf32, #tpu.memory_space<vmem>>, vector<8x8xf32>
    %c0_24 = arith.constant 0 : index
    %c64 = arith.constant 64 : index
    %34 = vector.load %arg16[%c0_24, %c64] : memref<8x96xf32, #tpu.memory_space<vmem>>, vector<8x8xf32>
    %cst_25 = arith.constant dense<0.000000e+00> : vector<8x8xf32>
    %35 = tpu.matmul %32, %33, %cst_25 {dimension_numbers = #tpu.dot_dimension_numbers<[1], [1], [0], [0], [0, 0, 1, 0], [], []>} : vector<8x8xf32>, vector<8x8xf32>, vector<8x8xf32> -> vector<8x8xf32>
    %cst_26 = arith.constant dense<0xFF800000> : vector<8xf32>
    %36 = vector.multi_reduction <maximumf>, %35, %cst_26 [1] : vector<8x8xf32> to vector<8xf32>
    %37 = vector.shape_cast %36 : vector<8xf32> to vector<8x1xf32>
    %38 = vector.broadcast %37 : vector<8x1xf32> to vector<8x8xf32>
    %39 = arith.subf %35, %38 : vector<8x8xf32>
    %40 = math.exp %39 : vector<8x8xf32>
    %cst_27 = arith.constant dense<0.000000e+00> : vector<8xf32>
    %41 = vector.multi_reduction <add>, %40, %cst_27 [1] : vector<8x8xf32> to vector<8xf32>
    %42 = vector.shape_cast %41 : vector<8xf32> to vector<8x1xf32>
    %43 = tpu.reciprocal %42 {approx = true} : vector<8x1xf32> -> vector<8x1xf32>
    %44 = vector.broadcast %43 : vector<8x1xf32> to vector<8x8xf32>
    %45 = arith.mulf %40, %44 : vector<8x8xf32>
    %cst_28 = arith.constant dense<0.000000e+00> : vector<8x8xf32>
    %46 = tpu.matmul %45, %34, %cst_28 {dimension_numbers = #tpu.dot_dimension_numbers<[1], [0], [0], [1], [0, 0, 1, 1], [], []>} : vector<8x8xf32>, vector<8x8xf32>, vector<8x8xf32> -> vector<8x8xf32>
    %c0_29 = arith.constant 0 : index
    %c0_30 = arith.constant 0 : index
    %47 = vector.load %arg17[%c0_29, %c0_30] : memref<8x32xf32, #tpu.memory_space<vmem>>, vector<8x8xf32>
    tpu.vector_store %arg17[%c0_29, %c0_30], %46 {strides = array<i32>} : memref<8x32xf32, #tpu.memory_space<vmem>>, vector<8x8xf32>,
    %c0_31 = arith.constant 0 : index
    %c8 = arith.constant 8 : index
    %48 = vector.load %arg16[%c0_31, %c8] : memref<8x96xf32, #tpu.memory_space<vmem>>, vector<8x8xf32>
    %c0_32 = arith.constant 0 : index
    %c40 = arith.constant 40 : index
    %49 = vector.load %arg16[%c0_32, %c40] : memref<8x96xf32, #tpu.memory_space<vmem>>, vector<8x8xf32>
    %c0_33 = arith.constant 0 : index
    %c72 = arith.constant 72 : index
    %50 = vector.load %arg16[%c0_33, %c72] : memref<8x96xf32, #tpu.memory_space<vmem>>, vector<8x8xf32>
    %cst_34 = arith.constant dense<0.000000e+00> : vector<8x8xf32>
    %51 = tpu.matmul %48, %49, %cst_34 {dimension_numbers = #tpu.dot_dimension_numbers<[1], [1], [0], [0], [0, 0, 1, 0], [], []>} : vector<8x8xf32>, vector<8x8xf32>, vector<8x8xf32> -> vector<8x8xf32>
    %cst_35 = arith.constant dense<0xFF800000> : vector<8xf32>
    %52 = vector.multi_reduction <maximumf>, %51, %cst_35 [1] : vector<8x8xf32> to vector<8xf32>
    %53 = vector.shape_cast %52 : vector<8xf32> to vector<8x1xf32>
    %54 = vector.broadcast %53 : vector<8x1xf32> to vector<8x8xf32>
    %55 = arith.subf %51, %54 : vector<8x8xf32>
    %56 = math.exp %55 : vector<8x8xf32>
    %cst_36 = arith.constant dense<0.000000e+00> : vector<8xf32>
    %57 = vector.multi_reduction <add>, %56, %cst_36 [1] : vector<8x8xf32> to vector<8xf32>
    %58 = vector.shape_cast %57 : vector<8xf32> to vector<8x1xf32>
    %59 = tpu.reciprocal %58 {approx = true} : vector<8x1xf32> -> vector<8x1xf32>
    %60 = vector.broadcast %59 : vector<8x1xf32> to vector<8x8xf32>
    %61 = arith.mulf %56, %60 : vector<8x8xf32>
    %cst_37 = arith.constant dense<0.000000e+00> : vector<8x8xf32>
    %62 = tpu.matmul %61, %50, %cst_37 {dimension_numbers = #tpu.dot_dimension_numbers<[1], [0], [0], [1], [0, 0, 1, 1], [], []>} : vector<8x8xf32>, vector<8x8xf32>, vector<8x8xf32> -> vector<8x8xf32>
    %c0_38 = arith.constant 0 : index
    %c8_39 = arith.constant 8 : index
    %63 = vector.load %arg17[%c0_38, %c8_39] : memref<8x32xf32, #tpu.memory_space<vmem>>, vector<8x8xf32>
    tpu.vector_store %arg17[%c0_38, %c8_39], %62 {strides = array<i32>} : memref<8x32xf32, #tpu.memory_space<vmem>>, vector<8x8xf32>,
    %c0_40 = arith.constant 0 : index
    %c16 = arith.constant 16 : index
    %64 = vector.load %arg16[%c0_40, %c16] : memref<8x96xf32, #tpu.memory_space<vmem>>, vector<8x8xf32>
    %c0_41 = arith.constant 0 : index
    %c48 = arith.constant 48 : index
    %65 = vector.load %arg16[%c0_41, %c48] : memref<8x96xf32, #tpu.memory_space<vmem>>, vector<8x8xf32>
    %c0_42 = arith.constant 0 : index
    %c80 = arith.constant 80 : index
    %66 = vector.load %arg16[%c0_42, %c80] : memref<8x96xf32, #tpu.memory_space<vmem>>, vector<8x8xf32>
    %cst_43 = arith.constant dense<0.000000e+00> : vector<8x8xf32>
    %67 = tpu.matmul %64, %65, %cst_43 {dimension_numbers = #tpu.dot_dimension_numbers<[1], [1], [0], [0], [0, 0, 1, 0], [], []>} : vector<8x8xf32>, vector<8x8xf32>, vector<8x8xf32> -> vector<8x8xf32>
    %cst_44 = arith.constant dense<0xFF800000> : vector<8xf32>
    %68 = vector.multi_reduction <maximumf>, %67, %cst_44 [1] : vector<8x8xf32> to vector<8xf32>
    %69 = vector.shape_cast %68 : vector<8xf32> to vector<8x1xf32>
    %70 = vector.broadcast %69 : vector<8x1xf32> to vector<8x8xf32>
    %71 = arith.subf %67, %70 : vector<8x8xf32>
    %72 = math.exp %71 : vector<8x8xf32>
    %cst_45 = arith.constant dense<0.000000e+00> : vector<8xf32>
    %73 = vector.multi_reduction <add>, %72, %cst_45 [1] : vector<8x8xf32> to vector<8xf32>
    %74 = vector.shape_cast %73 : vector<8xf32> to vector<8x1xf32>
    %75 = tpu.reciprocal %74 {approx = true} : vector<8x1xf32> -> vector<8x1xf32>
    %76 = vector.broadcast %75 : vector<8x1xf32> to vector<8x8xf32>
    %77 = arith.mulf %72, %76 : vector<8x8xf32>
    %cst_46 = arith.constant dense<0.000000e+00> : vector<8x8xf32>
    %78 = tpu.matmul %77, %66, %cst_46 {dimension_numbers = #tpu.dot_dimension_numbers<[1], [0], [0], [1], [0, 0, 1, 1], [], []>} : vector<8x8xf32>, vector<8x8xf32>, vector<8x8xf32> -> vector<8x8xf32>
    %c0_47 = arith.constant 0 : index
    %c16_48 = arith.constant 16 : index
    %79 = vector.load %arg17[%c0_47, %c16_48] : memref<8x32xf32, #tpu.memory_space<vmem>>, vector<8x8xf32>
    tpu.vector_store %arg17[%c0_47, %c16_48], %78 {strides = array<i32>} : memref<8x32xf32, #tpu.memory_space<vmem>>, vector<8x8xf32>,
    %c0_49 = arith.constant 0 : index
    %c24 = arith.constant 24 : index
    %80 = vector.load %arg16[%c0_49, %c24] : memref<8x96xf32, #tpu.memory_space<vmem>>, vector<8x8xf32>
    %c0_50 = arith.constant 0 : index
    %c56 = arith.constant 56 : index
    %81 = vector.load %arg16[%c0_50, %c56] : memref<8x96xf32, #tpu.memory_space<vmem>>, vector<8x8xf32>
    %c0_51 = arith.constant 0 : index
    %c88 = arith.constant 88 : index
    %82 = vector.load %arg16[%c0_51, %c88] : memref<8x96xf32, #tpu.memory_space<vmem>>, vector<8x8xf32>
    %cst_52 = arith.constant dense<0.000000e+00> : vector<8x8xf32>
    %83 = tpu.matmul %80, %81, %cst_52 {dimension_numbers = #tpu.dot_dimension_numbers<[1], [1], [0], [0], [0, 0, 1, 0], [], []>} : vector<8x8xf32>, vector<8x8xf32>, vector<8x8xf32> -> vector<8x8xf32>
    %cst_53 = arith.constant dense<0xFF800000> : vector<8xf32>
    %84 = vector.multi_reduction <maximumf>, %83, %cst_53 [1] : vector<8x8xf32> to vector<8xf32>
    %85 = vector.shape_cast %84 : vector<8xf32> to vector<8x1xf32>
    %86 = vector.broadcast %85 : vector<8x1xf32> to vector<8x8xf32>
    %87 = arith.subf %83, %86 : vector<8x8xf32>
    %88 = math.exp %87 : vector<8x8xf32>
    %cst_54 = arith.constant dense<0.000000e+00> : vector<8xf32>
    %89 = vector.multi_reduction <add>, %88, %cst_54 [1] : vector<8x8xf32> to vector<8xf32>
    %90 = vector.shape_cast %89 : vector<8xf32> to vector<8x1xf32>
    %91 = tpu.reciprocal %90 {approx = true} : vector<8x1xf32> -> vector<8x1xf32>
    %92 = vector.broadcast %91 : vector<8x1xf32> to vector<8x8xf32>
    %93 = arith.mulf %88, %92 : vector<8x8xf32>
    %cst_55 = arith.constant dense<0.000000e+00> : vector<8x8xf32>
    %94 = tpu.matmul %93, %82, %cst_55 {dimension_numbers = #tpu.dot_dimension_numbers<[1], [0], [0], [1], [0, 0, 1, 1], [], []>} : vector<8x8xf32>, vector<8x8xf32>, vector<8x8xf32> -> vector<8x8xf32>
    %c0_56 = arith.constant 0 : index
    %c24_57 = arith.constant 24 : index
    %95 = vector.load %arg17[%c0_56, %c24_57] : memref<8x32xf32, #tpu.memory_space<vmem>>, vector<8x8xf32>
    tpu.vector_store %arg17[%c0_56, %c24_57], %94 {strides = array<i32>} : memref<8x32xf32, #tpu.memory_space<vmem>>, vector<8x8xf32>,
    %c0_58 = arith.constant 0 : index
    %c0_59 = arith.constant 0 : index
    %96 = vector.load %arg17[%c0_58, %c0_59] : memref<8x32xf32, #tpu.memory_space<vmem>>, vector<8x32xf32>
    %c0_60 = arith.constant 0 : index
    %c0_61 = arith.constant 0 : index
    %97 = vector.load %arg6[%c0_60, %c0_61] : memref<32x32xf32, #tpu.memory_space<vmem>>, vector<32x32xf32>
    %cst_62 = arith.constant dense<0.000000e+00> : vector<8x32xf32>
    %98 = tpu.matmul %96, %97, %cst_62 {dimension_numbers = #tpu.dot_dimension_numbers<[1], [0], [0], [1], [0, 0, 1, 1], [], []>} : vector<8x32xf32>, vector<32x32xf32>, vector<8x32xf32> -> vector<8x32xf32>
    %c0_63 = arith.constant 0 : index
    %c0_64 = arith.constant 0 : index
    %c0_65 = arith.constant 0 : index
    %99 = vector.load %arg1[%c0_63, %c0_64, %c0_65] : memref<1x8x32xf32, #tpu.memory_space<vmem>>, vector<1x8x32xf32>
    %100 = vector.shape_cast %99 : vector<1x8x32xf32> to vector<8x32xf32>
    %101 = arith.addf %100, %98 : vector<8x32xf32>
    %c0_66 = arith.constant 0 : index
    %c0_67 = arith.constant 0 : index
    %102 = vector.load %arg7[%c0_66, %c0_67] : memref<1x32xf32, #tpu.memory_space<vmem>>, vector<1x32xf32>
    %103 = vector.broadcast %102 : vector<1x32xf32> to vector<8x32xf32>
    %104 = arith.addf %101, %103 : vector<8x32xf32>
    %c0_68 = arith.constant 0 : index
    %c0_69 = arith.constant 0 : index
    %105 = vector.load %arg18[%c0_68, %c0_69] : memref<8x32xf32, #tpu.memory_space<vmem>>, vector<8x32xf32>
    tpu.vector_store %arg18[%c0_68, %c0_69], %104 {strides = array<i32>} : memref<8x32xf32, #tpu.memory_space<vmem>>, vector<8x32xf32>,
    %c0_70 = arith.constant 0 : index
    %c0_71 = arith.constant 0 : index
    %106 = vector.load %arg18[%c0_70, %c0_71] : memref<8x32xf32, #tpu.memory_space<vmem>>, vector<8x32xf32>
    %c0_72 = arith.constant 0 : index
    %c0_73 = arith.constant 0 : index
    %107 = vector.load %arg8[%c0_72, %c0_73] : memref<1x32xf32, #tpu.memory_space<vmem>>, vector<1x32xf32>
    %c0_74 = arith.constant 0 : index
    %c0_75 = arith.constant 0 : index
    %108 = vector.load %arg9[%c0_74, %c0_75] : memref<1x32xf32, #tpu.memory_space<vmem>>, vector<1x32xf32>
    %cst_76 = arith.constant dense<0.000000e+00> : vector<8xf32>
    %109 = vector.multi_reduction <add>, %106, %cst_76 [1] : vector<8x32xf32> to vector<8xf32>
    %110 = vector.shape_cast %109 : vector<8xf32> to vector<8x1xf32>
    %cst_77 = arith.constant 3.200000e+01 : f32
    %111 = vector.broadcast %cst_77 : f32 to vector<8x1xf32>
    %112 = arith.divf %110, %111 : vector<8x1xf32>
    %113 = vector.broadcast %112 : vector<8x1xf32> to vector<8x32xf32>
    %114 = arith.subf %106, %113 : vector<8x32xf32>
    %115 = arith.mulf %114, %114 : vector<8x32xf32>
    %cst_78 = arith.constant dense<0.000000e+00> : vector<8xf32>
    %116 = vector.multi_reduction <add>, %115, %cst_78 [1] : vector<8x32xf32> to vector<8xf32>
    %117 = vector.shape_cast %116 : vector<8xf32> to vector<8x1xf32>
    %cst_79 = arith.constant 3.200000e+01 : f32
    %118 = vector.broadcast %cst_79 : f32 to vector<8x1xf32>
    %119 = arith.divf %117, %118 : vector<8x1xf32>
    %cst_80 = arith.constant 9.99999974E-6 : f32
    %120 = vector.broadcast %cst_80 : f32 to vector<8x1xf32>
    %121 = arith.addf %119, %120 : vector<8x1xf32>
    %122 = math.rsqrt %121 : vector<8x1xf32>
    %123 = vector.broadcast %122 : vector<8x1xf32> to vector<8x32xf32>
    %124 = arith.mulf %114, %123 : vector<8x32xf32>
    %125 = vector.broadcast %107 : vector<1x32xf32> to vector<8x32xf32>
    %126 = arith.mulf %124, %125 : vector<8x32xf32>
    %127 = vector.broadcast %108 : vector<1x32xf32> to vector<8x32xf32>
    %128 = arith.addf %126, %127 : vector<8x32xf32>
    %c0_81 = arith.constant 0 : index
    %c0_82 = arith.constant 0 : index
    %129 = vector.load %arg15[%c0_81, %c0_82] : memref<8x32xf32, #tpu.memory_space<vmem>>, vector<8x32xf32>
    tpu.vector_store %arg15[%c0_81, %c0_82], %128 {strides = array<i32>} : memref<8x32xf32, #tpu.memory_space<vmem>>, vector<8x32xf32>,
    %c0_83 = arith.constant 0 : index
    %c0_84 = arith.constant 0 : index
    %130 = vector.load %arg15[%c0_83, %c0_84] : memref<8x32xf32, #tpu.memory_space<vmem>>, vector<8x32xf32>
    %c0_85 = arith.constant 0 : index
    %c0_86 = arith.constant 0 : index
    %131 = vector.load %arg10[%c0_85, %c0_86] : memref<32x128xf32, #tpu.memory_space<vmem>>, vector<32x128xf32>
    %cst_87 = arith.constant dense<0.000000e+00> : vector<8x128xf32>
    %132 = tpu.matmul %130, %131, %cst_87 {dimension_numbers = #tpu.dot_dimension_numbers<[1], [0], [0], [1], [0, 0, 1, 1], [], []>} : vector<8x32xf32>, vector<32x128xf32>, vector<8x128xf32> -> vector<8x128xf32>
    %c0_88 = arith.constant 0 : index
    %c0_89 = arith.constant 0 : index
    %133 = vector.load %arg11[%c0_88, %c0_89] : memref<1x128xf32, #tpu.memory_space<vmem>>, vector<1x128xf32>
    %134 = vector.broadcast %133 : vector<1x128xf32> to vector<8x128xf32>
    %135 = arith.addf %132, %134 : vector<8x128xf32>
    %cst_90 = arith.constant 5.000000e-01 : f32
    %136 = vector.broadcast %cst_90 : f32 to vector<8x128xf32>
    %137 = arith.mulf %136, %135 : vector<8x128xf32>
    %cst_91 = arith.constant 0.707106769 : f32
    %138 = vector.broadcast %cst_91 : f32 to vector<8x128xf32>
    %139 = arith.mulf %135, %138 : vector<8x128xf32>
    %140 = math.erf %139 : vector<8x128xf32>
    %cst_92 = arith.constant 1.000000e+00 : f32
    %141 = vector.broadcast %cst_92 : f32 to vector<8x128xf32>
    %142 = arith.addf %141, %140 : vector<8x128xf32>
    %143 = arith.mulf %137, %142 : vector<8x128xf32>
    %c0_93 = arith.constant 0 : index
    %c0_94 = arith.constant 0 : index
    %144 = vector.load %arg18[%c0_93, %c0_94] : memref<8x32xf32, #tpu.memory_space<vmem>>, vector<8x32xf32>
    %c0_95 = arith.constant 0 : index
    %c0_96 = arith.constant 0 : index
    %145 = vector.load %arg12[%c0_95, %c0_96] : memref<128x32xf32, #tpu.memory_space<vmem>>, vector<128x32xf32>
    %cst_97 = arith.constant dense<0.000000e+00> : vector<8x32xf32>
    %146 = tpu.matmul %143, %145, %cst_97 {dimension_numbers = #tpu.dot_dimension_numbers<[1], [0], [0], [1], [0, 0, 1, 1], [], []>} : vector<8x128xf32>, vector<128x32xf32>, vector<8x32xf32> -> vector<8x32xf32>
    %147 = arith.addf %144, %146 : vector<8x32xf32>
    %c0_98 = arith.constant 0 : index
    %c0_99 = arith.constant 0 : index
    %148 = vector.load %arg18[%c0_98, %c0_99] : memref<8x32xf32, #tpu.memory_space<vmem>>, vector<8x32xf32>
    tpu.vector_store %arg18[%c0_98, %c0_99], %147 {strides = array<i32>} : memref<8x32xf32, #tpu.memory_space<vmem>>, vector<8x32xf32>,
    %c0_100 = arith.constant 0 : index
    %c0_101 = arith.constant 0 : index
    %149 = vector.load %arg18[%c0_100, %c0_101] : memref<8x32xf32, #tpu.memory_space<vmem>>, vector<8x32xf32>
    %c0_102 = arith.constant 0 : index
    %c0_103 = arith.constant 0 : index
    %150 = vector.load %arg13[%c0_102, %c0_103] : memref<1x32xf32, #tpu.memory_space<vmem>>, vector<1x32xf32>
    %151 = vector.broadcast %150 : vector<1x32xf32> to vector<8x32xf32>
    %152 = arith.addf %149, %151 : vector<8x32xf32>
    %c0_104 = arith.constant 0 : index
    %c0_105 = arith.constant 0 : index
    %c0_106 = arith.constant 0 : index
    %153 = vector.load %arg14[%c0_104, %c0_105, %c0_106] : memref<1x8x32xf32, #tpu.memory_space<vmem>>, vector<1x8x32xf32>
    %154 = vector.shape_cast %153 : vector<1x8x32xf32> to vector<8x32xf32>
    %155 = vector.shape_cast %152 : vector<8x32xf32> to vector<1x8x32xf32>
    tpu.vector_store %arg14[%c0_104, %c0_105, %c0_106], %155 {strides = array<i32>} : memref<1x8x32xf32, #tpu.memory_space<vmem>>, vector<1x8x32xf32>,
    return
  }
  func.func @transform_0(%arg0: i32) -> (i32, i32, i32) {
    %c0_i32 = arith.constant 0 : i32
    %c0_i32_0 = arith.constant 0 : i32
    %c0_i32_1 = arith.constant 0 : i32
    return %arg0, %c0_i32, %c0_i32_0 : i32, i32, i32
  }
  func.func @transform_1(%arg0: i32) -> (i32, i32) {
    %c0_i32 = arith.constant 0 : i32
    %c0_i32_0 = arith.constant 0 : i32
    %c0_i32_1 = arith.constant 0 : i32
    return %c0_i32, %c0_i32_0 : i32, i32
  }
  func.func @transform_2(%arg0: i32) -> (i32, i32) {
    %c0_i32 = arith.constant 0 : i32
    %c0_i32_0 = arith.constant 0 : i32
    %c0_i32_1 = arith.constant 0 : i32
    return %c0_i32, %c0_i32_0 : i32, i32
  }
  func.func @transform_3(%arg0: i32) -> (i32, i32) {
    %c0_i32 = arith.constant 0 : i32
    %c0_i32_0 = arith.constant 0 : i32
    %c0_i32_1 = arith.constant 0 : i32
    return %c0_i32, %c0_i32_0 : i32, i32
  }
  func.func @transform_4(%arg0: i32) -> (i32, i32) {
    %c0_i32 = arith.constant 0 : i32
    %c0_i32_0 = arith.constant 0 : i32
    %c0_i32_1 = arith.constant 0 : i32
    return %c0_i32, %c0_i32_0 : i32, i32
  }
  func.func @transform_5(%arg0: i32) -> (i32, i32) {
    %c0_i32 = arith.constant 0 : i32
    %c0_i32_0 = arith.constant 0 : i32
    %c0_i32_1 = arith.constant 0 : i32
    return %c0_i32, %c0_i32_0 : i32, i32
  }
  func.func @transform_6(%arg0: i32) -> (i32, i32) {
    %c0_i32 = arith.constant 0 : i32
    %c0_i32_0 = arith.constant 0 : i32
    %c0_i32_1 = arith.constant 0 : i32
    return %c0_i32, %c0_i32_0 : i32, i32
  }
  func.func @transform_7(%arg0: i32) -> (i32, i32) {
    %c0_i32 = arith.constant 0 : i32
    %c0_i32_0 = arith.constant 0 : i32
    %c0_i32_1 = arith.constant 0 : i32
    return %c0_i32, %c0_i32_0 : i32, i32
  }
  func.func @transform_8(%arg0: i32) -> (i32, i32) {
    %c0_i32 = arith.constant 0 : i32
    %c0_i32_0 = arith.constant 0 : i32
    %c0_i32_1 = arith.constant 0 : i32
    return %c0_i32, %c0_i32_0 : i32, i32
  }
  func.func @transform_9(%arg0: i32) -> (i32, i32) {
    %c0_i32 = arith.constant 0 : i32
    %c0_i32_0 = arith.constant 0 : i32
    %c0_i32_1 = arith.constant 0 : i32
    return %c0_i32, %c0_i32_0 : i32, i32
  }
  func.func @transform_10(%arg0: i32) -> (i32, i32) {
    %c0_i32 = arith.constant 0 : i32
    %c0_i32_0 = arith.constant 0 : i32
    %c0_i32_1 = arith.constant 0 : i32
    return %c0_i32, %c0_i32_0 : i32, i32
  }
  func.func @transform_11(%arg0: i32) -> (i32, i32) {
    %c0_i32 = arith.constant 0 : i32
    %c0_i32_0 = arith.constant 0 : i32
    %c0_i32_1 = arith.constant 0 : i32
    return %c0_i32, %c0_i32_0 : i32, i32
  }
  func.func @transform_12(%arg0: i32) -> (i32, i32) {
    %c0_i32 = arith.constant 0 : i32
    %c0_i32_0 = arith.constant 0 : i32
    %c0_i32_1 = arith.constant 0 : i32
    return %c0_i32, %c0_i32_0 : i32, i32
  }
  func.func @transform_13(%arg0: i32) -> (i32, i32, i32) {
    %c0_i32 = arith.constant 0 : i32
    %c0_i32_0 = arith.constant 0 : i32
    %c0_i32_1 = arith.constant 0 : i32
    return %arg0, %c0_i32, %c0_i32_0 : i32, i32, i32
  }
}

module attributes {stable_mosaic.version = 11 : i64} {
  func.func @block_kernel(%arg0: i32, %arg1: memref<1x8x32xf32, #tpu.memory_space<vmem>>, %arg2: memref<1x32xf32, #tpu.memory_space<vmem>>, %arg3: memref<1x32xf32, #tpu.memory_space<vmem>>, %arg4: memref<32x96xf32, #tpu.memory_space<vmem>>, %arg5: memref<1x96xf32, #tpu.memory_space<vmem>>, %arg6: memref<32x32xf32, #tpu.memory_space<vmem>>, %arg7: memref<1x32xf32, #tpu.memory_space<vmem>>, %arg8: memref<1x32xf32, #tpu.memory_space<vmem>>, %arg9: memref<1x32xf32, #tpu.memory_space<vmem>>, %arg10: memref<32x128xf32, #tpu.memory_space<vmem>>, %arg11: memref<1x128xf32, #tpu.memory_space<vmem>>, %arg12: memref<128x32xf32, #tpu.memory_space<vmem>>, %arg13: memref<1x32xf32, #tpu.memory_space<vmem>>, %arg14: memref<1x8x32xf32, #tpu.memory_space<vmem>>, %arg15: memref<8x32xf32, #tpu.memory_space<vmem>>, %arg16: memref<8x96xf32, #tpu.memory_space<vmem>>, %arg17: memref<8x32xf32, #tpu.memory_space<vmem>>, %arg18: memref<8x32xf32, #tpu.memory_space<vmem>>) attributes {dimension_semantics = [#tpu.dimension_semantics<parallel>], iteration_bounds = array<i64: 2>, scalar_prefetch = 0 : i64, scratch_operands = 4 : i64, tpu.core_type = #tpu.core_type<tc>, window_params = [{transform_indices = @transform_0, window_bounds = array<i64: 1, 8, 32>}, {pipeline_mode = #tpu.pipeline_mode<synchronous>, transform_indices = @transform_1, window_bounds = array<i64: 1, 32>}, {pipeline_mode = #tpu.pipeline_mode<synchronous>, transform_indices = @transform_2, window_bounds = array<i64: 1, 32>}, {pipeline_mode = #tpu.pipeline_mode<synchronous>, transform_indices = @transform_3, window_bounds = array<i64: 32, 96>}, {pipeline_mode = #tpu.pipeline_mode<synchronous>, transform_indices = @transform_4, window_bounds = array<i64: 1, 96>}, {pipeline_mode = #tpu.pipeline_mode<synchronous>, transform_indices = @transform_5, window_bounds = array<i64: 32, 32>}, {pipeline_mode = #tpu.pipeline_mode<synchronous>, transform_indices = @transform_6, window_bounds = array<i64: 1, 32>}, {pipeline_mode = #tpu.pipeline_mode<synchronous>, transform_indices = @transform_7, window_bounds = array<i64: 1, 32>}, {pipeline_mode = #tpu.pipeline_mode<synchronous>, transform_indices = @transform_8, window_bounds = array<i64: 1, 32>}, {pipeline_mode = #tpu.pipeline_mode<synchronous>, transform_indices = @transform_9, window_bounds = array<i64: 32, 128>}, {pipeline_mode = #tpu.pipeline_mode<synchronous>, transform_indices = @transform_10, window_bounds = array<i64: 1, 128>}, {pipeline_mode = #tpu.pipeline_mode<synchronous>, transform_indices = @transform_11, window_bounds = array<i64: 128, 32>}, {pipeline_mode = #tpu.pipeline_mode<synchronous>, transform_indices = @transform_12, window_bounds = array<i64: 1, 32>}, {transform_indices = @transform_13, window_bounds = array<i64: 1, 8, 32>}]} {
    %c0 = arith.constant 0 : index
    %c0_0 = arith.constant 0 : index
    %c0_1 = arith.constant 0 : index
    %0 = vector.load %arg1[%c0, %c0_0, %c0_1] : memref<1x8x32xf32, #tpu.memory_space<vmem>>, vector<1x8x32xf32>
    %1 = vector.shape_cast %0 : vector<1x8x32xf32> to vector<8x32xf32>
    %c0_2 = arith.constant 0 : index
    %c0_3 = arith.constant 0 : index
    %2 = vector.load %arg2[%c0_2, %c0_3] : memref<1x32xf32, #tpu.memory_space<vmem>>, vector<1x32xf32>
    %c0_4 = arith.constant 0 : index
    %c0_5 = arith.constant 0 : index
    %3 = vector.load %arg3[%c0_4, %c0_5] : memref<1x32xf32, #tpu.memory_space<vmem>>, vector<1x32xf32>
    %cst = arith.constant dense<0.000000e+00> : vector<8xf32>
    %4 = vector.multi_reduction <add>, %1, %cst [1] : vector<8x32xf32> to vector<8xf32>
    %5 = vector.shape_cast %4 : vector<8xf32> to vector<8x1xf32>
    %cst_6 = arith.constant 3.200000e+01 : f32
    %6 = vector.broadcast %cst_6 : f32 to vector<8x1xf32>
    %7 = arith.divf %5, %6 : vector<8x1xf32>
    %8 = vector.broadcast %7 : vector<8x1xf32> to vector<8x32xf32>
    %9 = arith.subf %1, %8 : vector<8x32xf32>
    %10 = arith.mulf %9, %9 : vector<8x32xf32>
    %cst_7 = arith.constant dense<0.000000e+00> : vector<8xf32>
    %11 = vector.multi_reduction <add>, %10, %cst_7 [1] : vector<8x32xf32> to vector<8xf32>
    %12 = vector.shape_cast %11 : vector<8xf32> to vector<8x1xf32>
    %cst_8 = arith.constant 3.200000e+01 : f32
    %13 = vector.broadcast %cst_8 : f32 to vector<8x1xf32>
    %14 = arith.divf %12, %13 : vector<8x1xf32>
    %cst_9 = arith.constant 9.99999974E-6 : f32
    %15 = vector.broadcast %cst_9 : f32 to vector<8x1xf32>
    %16 = arith.addf %14, %15 : vector<8x1xf32>
    %17 = math.rsqrt %16 : vector<8x1xf32>
    %18 = vector.broadcast %17 : vector<8x1xf32> to vector<8x32xf32>
    %19 = arith.mulf %9, %18 : vector<8x32xf32>
    %20 = vector.broadcast %2 : vector<1x32xf32> to vector<8x32xf32>
    %21 = arith.mulf %19, %20 : vector<8x32xf32>
    %22 = vector.broadcast %3 : vector<1x32xf32> to vector<8x32xf32>
    %23 = arith.addf %21, %22 : vector<8x32xf32>
    %c0_10 = arith.constant 0 : index
    %c0_11 = arith.constant 0 : index
    %24 = vector.load %arg15[%c0_10, %c0_11] : memref<8x32xf32, #tpu.memory_space<vmem>>, vector<8x32xf32>
    tpu.vector_store %arg15[%c0_10, %c0_11], %23 {strides = array<i32>} : memref<8x32xf32, #tpu.memory_space<vmem>>, vector<8x32xf32>,
    %c0_12 = arith.constant 0 : index
    %c0_13 = arith.constant 0 : index
    %25 = vector.load %arg15[%c0_12, %c0_13] : memref<8x32xf32, #tpu.memory_space<vmem>>, vector<8x32xf32>
    %c0_14 = arith.constant 0 : index
    %c0_15 = arith.constant 0 : index
    %26 = vector.load %arg4[%c0_14, %c0_15] : memref<32x96xf32, #tpu.memory_space<vmem>>, vector<32x96xf32>
    %cst_16 = arith.constant dense<0.000000e+00> : vector<8x96xf32>
    %27 = tpu.matmul %25, %26, %cst_16 {dimension_numbers = #tpu.dot_dimension_numbers<[1], [0], [0], [1], [0, 0, 1, 1], [], []>} : vector<8x32xf32>, vector<32x96xf32>, vector<8x96xf32> -> vector<8x96xf32>
    %c0_17 = arith.constant 0 : index
    %c0_18 = arith.constant 0 : index
    %28 = vector.load %arg5[%c0_17, %c0_18] : memref<1x96xf32, #tpu.memory_space<vmem>>, vector<1x96xf32>
    %29 = vector.broadcast %28 : vector<1x96xf32> to vector<8x96xf32>
    %30 = arith.addf %27, %29 : vector<8x96xf32>
    %c0_19 = arith.constant 0 : index
    %c0_20 = arith.constant 0 : index
    %31 = vector.load %arg16[%c0_19, %c0_20] : memref<8x96xf32, #tpu.memory_space<vmem>>, vector<8x96xf32>
    tpu.vector_store %arg16[%c0_19, %c0_20], %30 {strides = array<i32>} : memref<8x96xf32, #tpu.memory_space<vmem>>, vector<8x96xf32>,
    %c0_21 = arith.constant 0 : index
    %c0_22 = arith.constant 0 : index
    %32 = vector.load %arg16[%c0_21, %c0_22] : memref<8x96xf32, #tpu.memory_space<vmem>>, vector<8x8xf32>
    %c0_23 = arith.constant 0 : index
    %c32 = arith.constant 32 : index
    %33 = vector.load %arg16[%c0_23, %c32] : memref<8x96xf32, #tpu.memory_space<vmem>>, vector<8x8xf32>
    %c0_24 = arith.constant 0 : index
    %c64 = arith.constant 64 : index
    %34 = vector.load %arg16[%c0_24, %c64] : memref<8x96xf32, #tpu.memory_space<vmem>>, vector<8x8xf32>
    %cst_25 = arith.constant dense<0.000000e+00> : vector<8x8xf32>
    %35 = tpu.matmul %32, %33, %cst_25 {dimension_numbers = #tpu.dot_dimension_numbers<[1], [1], [0], [0], [0, 0, 1, 0], [], []>} : vector<8x8xf32>, vector<8x8xf32>, vector<8x8xf32> -> vector<8x8xf32>
    %cst_26 = arith.constant dense<0xFF800000> : vector<8xf32>
    %36 = vector.multi_reduction <maximumf>, %35, %cst_26 [1] : vector<8x8xf32> to vector<8xf32>
    %37 = vector.shape_cast %36 : vector<8xf32> to vector<8x1xf32>
    %38 = vector.broadcast %37 : vector<8x1xf32> to vector<8x8xf32>
    %39 = arith.subf %35, %38 : vector<8x8xf32>
    %40 = math.exp %39 : vector<8x8xf32>
    %cst_27 = arith.constant dense<0.000000e+00> : vector<8xf32>
    %41 = vector.multi_reduction <add>, %40, %cst_27 [1] : vector<8x8xf32> to vector<8xf32>
    %42 = vector.shape_cast %41 : vector<8xf32> to vector<8x1xf32>
    %43 = tpu.reciprocal %42 {approx = true} : vector<8x1xf32> -> vector<8x1xf32>
    %44 = vector.broadcast %43 : vector<8x1xf32> to vector<8x8xf32>
    %45 = arith.mulf %40, %44 : vector<8x8xf32>
    %cst_28 = arith.constant dense<0.000000e+00> : vector<8x8xf32>
    %46 = tpu.matmul %45, %34, %cst_28 {dimension_numbers = #tpu.dot_dimension_numbers<[1], [0], [0], [1], [0, 0, 1, 1], [], []>} : vector<8x8xf32>, vector<8x8xf32>, vector<8x8xf32> -> vector<8x8xf32>
    %c0_29 = arith.constant 0 : index
    %c0_30 = arith.constant 0 : index
    %47 = vector.load %arg17[%c0_29, %c0_30] : memref<8x32xf32, #tpu.memory_space<vmem>>, vector<8x8xf32>
    tpu.vector_store %arg17[%c0_29, %c0_30], %46 {strides = array<i32>} : memref<8x32xf32, #tpu.memory_space<vmem>>, vector<8x8xf32>,
    %c0_31 = arith.constant 0 : index
    %c8 = arith.constant 8 : index
    %48 = vector.load %arg16[%c0_31, %c8] : memref<8x96xf32, #tpu.memory_space<vmem>>, vector<8x8xf32>
    %c0_32 = arith.constant 0 : index
    %c40 = arith.constant 40 : index
    %49 = vector.load %arg16[%c0_32, %c40] : memref<8x96xf32, #tpu.memory_space<vmem>>, vector<8x8xf32>
    %c0_33 = arith.constant 0 : index
    %c72 = arith.constant 72 : index
    %50 = vector.load %arg16[%c0_33, %c72] : memref<8x96xf32, #tpu.memory_space<vmem>>, vector<8x8xf32>
    %cst_34 = arith.constant dense<0.000000e+00> : vector<8x8xf32>
    %51 = tpu.matmul %48, %49, %cst_34 {dimension_numbers = #tpu.dot_dimension_numbers<[1], [1], [0], [0], [0, 0, 1, 0], [], []>} : vector<8x8xf32>, vector<8x8xf32>, vector<8x8xf32> -> vector<8x8xf32>
    %cst_35 = arith.constant dense<0xFF800000> : vector<8xf32>
    %52 = vector.multi_reduction <maximumf>, %51, %cst_35 [1] : vector<8x8xf32> to vector<8xf32>
    %53 = vector.shape_cast %52 : vector<8xf32> to vector<8x1xf32>
    %54 = vector.broadcast %53 : vector<8x1xf32> to vector<8x8xf32>
    %55 = arith.subf %51, %54 : vector<8x8xf32>
    %56 = math.exp %55 : vector<8x8xf32>
    %cst_36 = arith.constant dense<0.000000e+00> : vector<8xf32>
    %57 = vector.multi_reduction <add>, %56, %cst_36 [1] : vector<8x8xf32> to vector<8xf32>
    %58 = vector.shape_cast %57 : vector<8xf32> to vector<8x1xf32>
    %59 = tpu.reciprocal %58 {approx = true} : vector<8x1xf32> -> vector<8x1xf32>
    %60 = vector.broadcast %59 : vector<8x1xf32> to vector<8x8xf32>
    %61 = arith.mulf %56, %60 : vector<8x8xf32>
    %cst_37 = arith.constant dense<0.000000e+00> : vector<8x8xf32>
    %62 = tpu.matmul %61, %50, %cst_37 {dimension_numbers = #tpu.dot_dimension_numbers<[1], [0], [0], [1], [0, 0, 1, 1], [], []>} : vector<8x8xf32>, vector<8x8xf32>, vector<8x8xf32> -> vector<8x8xf32>
    %c0_38 = arith.constant 0 : index
    %c8_39 = arith.constant 8 : index
    %63 = vector.load %arg17[%c0_38, %c8_39] : memref<8x32xf32, #tpu.memory_space<vmem>>, vector<8x8xf32>
    tpu.vector_store %arg17[%c0_38, %c8_39], %62 {strides = array<i32>} : memref<8x32xf32, #tpu.memory_space<vmem>>, vector<8x8xf32>,
    %c0_40 = arith.constant 0 : index
    %c16 = arith.constant 16 : index
    %64 = vector.load %arg16[%c0_40, %c16] : memref<8x96xf32, #tpu.memory_space<vmem>>, vector<8x8xf32>
    %c0_41 = arith.constant 0 : index
    %c48 = arith.constant 48 : index
    %65 = vector.load %arg16[%c0_41, %c48] : memref<8x96xf32, #tpu.memory_space<vmem>>, vector<8x8xf32>
    %c0_42 = arith.constant 0 : index
    %c80 = arith.constant 80 : index
    %66 = vector.load %arg16[%c0_42, %c80] : memref<8x96xf32, #tpu.memory_space<vmem>>, vector<8x8xf32>
    %cst_43 = arith.constant dense<0.000000e+00> : vector<8x8xf32>
    %67 = tpu.matmul %64, %65, %cst_43 {dimension_numbers = #tpu.dot_dimension_numbers<[1], [1], [0], [0], [0, 0, 1, 0], [], []>} : vector<8x8xf32>, vector<8x8xf32>, vector<8x8xf32> -> vector<8x8xf32>
    %cst_44 = arith.constant dense<0xFF800000> : vector<8xf32>
    %68 = vector.multi_reduction <maximumf>, %67, %cst_44 [1] : vector<8x8xf32> to vector<8xf32>
    %69 = vector.shape_cast %68 : vector<8xf32> to vector<8x1xf32>
    %70 = vector.broadcast %69 : vector<8x1xf32> to vector<8x8xf32>
    %71 = arith.subf %67, %70 : vector<8x8xf32>
    %72 = math.exp %71 : vector<8x8xf32>
    %cst_45 = arith.constant dense<0.000000e+00> : vector<8xf32>
    %73 = vector.multi_reduction <add>, %72, %cst_45 [1] : vector<8x8xf32> to vector<8xf32>
    %74 = vector.shape_cast %73 : vector<8xf32> to vector<8x1xf32>
    %75 = tpu.reciprocal %74 {approx = true} : vector<8x1xf32> -> vector<8x1xf32>
    %76 = vector.broadcast %75 : vector<8x1xf32> to vector<8x8xf32>
    %77 = arith.mulf %72, %76 : vector<8x8xf32>
    %cst_46 = arith.constant dense<0.000000e+00> : vector<8x8xf32>
    %78 = tpu.matmul %77, %66, %cst_46 {dimension_numbers = #tpu.dot_dimension_numbers<[1], [0], [0], [1], [0, 0, 1, 1], [], []>} : vector<8x8xf32>, vector<8x8xf32>, vector<8x8xf32> -> vector<8x8xf32>
    %c0_47 = arith.constant 0 : index
    %c16_48 = arith.constant 16 : index
    %79 = vector.load %arg17[%c0_47, %c16_48] : memref<8x32xf32, #tpu.memory_space<vmem>>, vector<8x8xf32>
    tpu.vector_store %arg17[%c0_47, %c16_48], %78 {strides = array<i32>} : memref<8x32xf32, #tpu.memory_space<vmem>>, vector<8x8xf32>,
    %c0_49 = arith.constant 0 : index
    %c24 = arith.constant 24 : index
    %80 = vector.load %arg16[%c0_49, %c24] : memref<8x96xf32, #tpu.memory_space<vmem>>, vector<8x8xf32>
    %c0_50 = arith.constant 0 : index
    %c56 = arith.constant 56 : index
    %81 = vector.load %arg16[%c0_50, %c56] : memref<8x96xf32, #tpu.memory_space<vmem>>, vector<8x8xf32>
    %c0_51 = arith.constant 0 : index
    %c88 = arith.constant 88 : index
    %82 = vector.load %arg16[%c0_51, %c88] : memref<8x96xf32, #tpu.memory_space<vmem>>, vector<8x8xf32>
    %cst_52 = arith.constant dense<0.000000e+00> : vector<8x8xf32>
    %83 = tpu.matmul %80, %81, %cst_52 {dimension_numbers = #tpu.dot_dimension_numbers<[1], [1], [0], [0], [0, 0, 1, 0], [], []>} : vector<8x8xf32>, vector<8x8xf32>, vector<8x8xf32> -> vector<8x8xf32>
    %cst_53 = arith.constant dense<0xFF800000> : vector<8xf32>
    %84 = vector.multi_reduction <maximumf>, %83, %cst_53 [1] : vector<8x8xf32> to vector<8xf32>
    %85 = vector.shape_cast %84 : vector<8xf32> to vector<8x1xf32>
    %86 = vector.broadcast %85 : vector<8x1xf32> to vector<8x8xf32>
    %87 = arith.subf %83, %86 : vector<8x8xf32>
    %88 = math.exp %87 : vector<8x8xf32>
    %cst_54 = arith.constant dense<0.000000e+00> : vector<8xf32>
    %89 = vector.multi_reduction <add>, %88, %cst_54 [1] : vector<8x8xf32> to vector<8xf32>
    %90 = vector.shape_cast %89 : vector<8xf32> to vector<8x1xf32>
    %91 = tpu.reciprocal %90 {approx = true} : vector<8x1xf32> -> vector<8x1xf32>
    %92 = vector.broadcast %91 : vector<8x1xf32> to vector<8x8xf32>
    %93 = arith.mulf %88, %92 : vector<8x8xf32>
    %cst_55 = arith.constant dense<0.000000e+00> : vector<8x8xf32>
    %94 = tpu.matmul %93, %82, %cst_55 {dimension_numbers = #tpu.dot_dimension_numbers<[1], [0], [0], [1], [0, 0, 1, 1], [], []>} : vector<8x8xf32>, vector<8x8xf32>, vector<8x8xf32> -> vector<8x8xf32>
    %c0_56 = arith.constant 0 : index
    %c24_57 = arith.constant 24 : index
    %95 = vector.load %arg17[%c0_56, %c24_57] : memref<8x32xf32, #tpu.memory_space<vmem>>, vector<8x8xf32>
    tpu.vector_store %arg17[%c0_56, %c24_57], %94 {strides = array<i32>} : memref<8x32xf32, #tpu.memory_space<vmem>>, vector<8x8xf32>,
    %c0_58 = arith.constant 0 : index
    %c0_59 = arith.constant 0 : index
    %96 = vector.load %arg17[%c0_58, %c0_59] : memref<8x32xf32, #tpu.memory_space<vmem>>, vector<8x32xf32>
    %c0_60 = arith.constant 0 : index
    %c0_61 = arith.constant 0 : index
    %97 = vector.load %arg6[%c0_60, %c0_61] : memref<32x32xf32, #tpu.memory_space<vmem>>, vector<32x32xf32>
    %cst_62 = arith.constant dense<0.000000e+00> : vector<8x32xf32>
    %98 = tpu.matmul %96, %97, %cst_62 {dimension_numbers = #tpu.dot_dimension_numbers<[1], [0], [0], [1], [0, 0, 1, 1], [], []>} : vector<8x32xf32>, vector<32x32xf32>, vector<8x32xf32> -> vector<8x32xf32>
    %c0_63 = arith.constant 0 : index
    %c0_64 = arith.constant 0 : index
    %c0_65 = arith.constant 0 : index
    %99 = vector.load %arg1[%c0_63, %c0_64, %c0_65] : memref<1x8x32xf32, #tpu.memory_space<vmem>>, vector<1x8x32xf32>
    %100 = vector.shape_cast %99 : vector<1x8x32xf32> to vector<8x32xf32>
    %101 = arith.addf %100, %98 : vector<8x32xf32>
    %c0_66 = arith.constant 0 : index
    %c0_67 = arith.constant 0 : index
    %102 = vector.load %arg7[%c0_66, %c0_67] : memref<1x32xf32, #tpu.memory_space<vmem>>, vector<1x32xf32>
    %103 = vector.broadcast %102 : vector<1x32xf32> to vector<8x32xf32>
    %104 = arith.addf %101, %103 : vector<8x32xf32>
    %c0_68 = arith.constant 0 : index
    %c0_69 = arith.constant 0 : index
    %105 = vector.load %arg18[%c0_68, %c0_69] : memref<8x32xf32, #tpu.memory_space<vmem>>, vector<8x32xf32>
    tpu.vector_store %arg18[%c0_68, %c0_69], %104 {strides = array<i32>} : memref<8x32xf32, #tpu.memory_space<vmem>>, vector<8x32xf32>,
    %c0_70 = arith.constant 0 : index
    %c0_71 = arith.constant 0 : index
    %106 = vector.load %arg18[%c0_70, %c0_71] : memref<8x32xf32, #tpu.memory_space<vmem>>, vector<8x32xf32>
    %c0_72 = arith.constant 0 : index
    %c0_73 = arith.constant 0 : index
    %107 = vector.load %arg8[%c0_72, %c0_73] : memref<1x32xf32, #tpu.memory_space<vmem>>, vector<1x32xf32>
    %c0_74 = arith.constant 0 : index
    %c0_75 = arith.constant 0 : index
    %108 = vector.load %arg9[%c0_74, %c0_75] : memref<1x32xf32, #tpu.memory_space<vmem>>, vector<1x32xf32>
    %cst_76 = arith.constant dense<0.000000e+00> : vector<8xf32>
    %109 = vector.multi_reduction <add>, %106, %cst_76 [1] : vector<8x32xf32> to vector<8xf32>
    %110 = vector.shape_cast %109 : vector<8xf32> to vector<8x1xf32>
    %cst_77 = arith.constant 3.200000e+01 : f32
    %111 = vector.broadcast %cst_77 : f32 to vector<8x1xf32>
    %112 = arith.divf %110, %111 : vector<8x1xf32>
    %113 = vector.broadcast %112 : vector<8x1xf32> to vector<8x32xf32>
    %114 = arith.subf %106, %113 : vector<8x32xf32>
    %115 = arith.mulf %114, %114 : vector<8x32xf32>
    %cst_78 = arith.constant dense<0.000000e+00> : vector<8xf32>
    %116 = vector.multi_reduction <add>, %115, %cst_78 [1] : vector<8x32xf32> to vector<8xf32>
    %117 = vector.shape_cast %116 : vector<8xf32> to vector<8x1xf32>
    %cst_79 = arith.constant 3.200000e+01 : f32
    %118 = vector.broadcast %cst_79 : f32 to vector<8x1xf32>
    %119 = arith.divf %117, %118 : vector<8x1xf32>
    %cst_80 = arith.constant 9.99999974E-6 : f32
    %120 = vector.broadcast %cst_80 : f32 to vector<8x1xf32>
    %121 = arith.addf %119, %120 : vector<8x1xf32>
    %122 = math.rsqrt %121 : vector<8x1xf32>
    %123 = vector.broadcast %122 : vector<8x1xf32> to vector<8x32xf32>
    %124 = arith.mulf %114, %123 : vector<8x32xf32>
    %125 = vector.broadcast %107 : vector<1x32xf32> to vector<8x32xf32>
    %126 = arith.mulf %124, %125 : vector<8x32xf32>
    %127 = vector.broadcast %108 : vector<1x32xf32> to vector<8x32xf32>
    %128 = arith.addf %126, %127 : vector<8x32xf32>
    %c0_81 = arith.constant 0 : index
    %c0_82 = arith.constant 0 : index
    %129 = vector.load %arg15[%c0_81, %c0_82] : memref<8x32xf32, #tpu.memory_space<vmem>>, vector<8x32xf32>
    tpu.vector_store %arg15[%c0_81, %c0_82], %128 {strides = array<i32>} : memref<8x32xf32, #tpu.memory_space<vmem>>, vector<8x32xf32>,
    %c0_83 = arith.constant 0 : index
    %c0_84 = arith.constant 0 : index
    %130 = vector.load %arg15[%c0_83, %c0_84] : memref<8x32xf32, #tpu.memory_space<vmem>>, vector<8x32xf32>
    %c0_85 = arith.constant 0 : index
    %c0_86 = arith.constant 0 : index
    %131 = vector.load %arg10[%c0_85, %c0_86] : memref<32x128xf32, #tpu.memory_space<vmem>>, vector<32x128xf32>
    %cst_87 = arith.constant dense<0.000000e+00> : vector<8x128xf32>
    %132 = tpu.matmul %130, %131, %cst_87 {dimension_numbers = #tpu.dot_dimension_numbers<[1], [0], [0], [1], [0, 0, 1, 1], [], []>} : vector<8x32xf32>, vector<32x128xf32>, vector<8x128xf32> -> vector<8x128xf32>
    %c0_88 = arith.constant 0 : index
    %c0_89 = arith.constant 0 : index
    %133 = vector.load %arg11[%c0_88, %c0_89] : memref<1x128xf32, #tpu.memory_space<vmem>>, vector<1x128xf32>
    %134 = vector.broadcast %133 : vector<1x128xf32> to vector<8x128xf32>
    %135 = arith.addf %132, %134 : vector<8x128xf32>
    %cst_90 = arith.constant 5.000000e-01 : f32
    %136 = vector.broadcast %cst_90 : f32 to vector<8x128xf32>
    %137 = arith.mulf %136, %135 : vector<8x128xf32>
    %cst_91 = arith.constant 0.707106769 : f32
    %138 = vector.broadcast %cst_91 : f32 to vector<8x128xf32>
    %139 = arith.mulf %135, %138 : vector<8x128xf32>
    %140 = math.erf %139 : vector<8x128xf32>
    %cst_92 = arith.constant 1.000000e+00 : f32
    %141 = vector.broadcast %cst_92 : f32 to vector<8x128xf32>
    %142 = arith.addf %141, %140 : vector<8x128xf32>
    %143 = arith.mulf %137, %142 : vector<8x128xf32>
    %c0_93 = arith.constant 0 : index
    %c0_94 = arith.constant 0 : index
    %144 = vector.load %arg18[%c0_93, %c0_94] : memref<8x32xf32, #tpu.memory_space<vmem>>, vector<8x32xf32>
    %c0_95 = arith.constant 0 : index
    %c0_96 = arith.constant 0 : index
    %145 = vector.load %arg12[%c0_95, %c0_96] : memref<128x32xf32, #tpu.memory_space<vmem>>, vector<128x32xf32>
    %cst_97 = arith.constant dense<0.000000e+00> : vector<8x32xf32>
    %146 = tpu.matmul %143, %145, %cst_97 {dimension_numbers = #tpu.dot_dimension_numbers<[1], [0], [0], [1], [0, 0, 1, 1], [], []>} : vector<8x128xf32>, vector<128x32xf32>, vector<8x32xf32> -> vector<8x32xf32>
    %147 = arith.addf %144, %146 : vector<8x32xf32>
    %c0_98 = arith.constant 0 : index
    %c0_99 = arith.constant 0 : index
    %148 = vector.load %arg18[%c0_98, %c0_99] : memref<8x32xf32, #tpu.memory_space<vmem>>, vector<8x32xf32>
    tpu.vector_store %arg18[%c0_98, %c0_99], %147 {strides = array<i32>} : memref<8x32xf32, #tpu.memory_space<vmem>>, vector<8x32xf32>,
    %c0_100 = arith.constant 0 : index
    %c0_101 = arith.constant 0 : index
    %149 = vector.load %arg18[%c0_100, %c0_101] : memref<8x32xf32, #tpu.memory_space<vmem>>, vector<8x32xf32>
    %c0_102 = arith.constant 0 : index
    %c0_103 = arith.constant 0 : index
    %150 = vector.load %arg13[%c0_102, %c0_103] : memref<1x32xf32, #tpu.memory_space<vmem>>, vector<1x32xf32>
    %151 = vector.broadcast %150 : vector<1x32xf32> to vector<8x32xf32>
    %152 = arith.addf %149, %151 : vector<8x32xf32>
    %c0_104 = arith.constant 0 : index
    %c0_105 = arith.constant 0 : index
    %c0_106 = arith.constant 0 : index
    %153 = vector.load %arg14[%c0_104, %c0_105, %c0_106] : memref<1x8x32xf32, #tpu.memory_space<vmem>>, vector<1x8x32xf32>
    %154 = vector.shape_cast %153 : vector<1x8x32xf32> to vector<8x32xf32>
    %155 = vector.shape_cast %152 : vector<8x32xf32> to vector<1x8x32xf32>
    tpu.vector_store %arg14[%c0_104, %c0_105, %c0_106], %155 {strides = array<i32>} : memref<1x8x32xf32, #tpu.memory_space<vmem>>, vector<1x8x32xf32>,
    return
  }
  func.func @transform_0(%arg0: i32) -> (i32, i32, i32) {
    %c0_i32 = arith.constant 0 : i32
    %c0_i32_0 = arith.constant 0 : i32
    %c0_i32_1 = arith.constant 0 : i32
    return %arg0, %c0_i32, %c0_i32_0 : i32, i32, i32
  }
  func.func @transform_1(%arg0: i32) -> (i32, i32) {
    %c0_i32 = arith.constant 0 : i32
    %c0_i32_0 = arith.constant 0 : i32
    %c0_i32_1 = arith.constant 0 : i32
    return %c0_i32, %c0_i32_0 : i32, i32
  }
  func.func @transform_2(%arg0: i32) -> (i32, i32) {
    %c0_i32 = arith.constant 0 : i32
    %c0_i32_0 = arith.constant 0 : i32
    %c0_i32_1 = arith.constant 0 : i32
    return %c0_i32, %c0_i32_0 : i32, i32
  }
  func.func @transform_3(%arg0: i32) -> (i32, i32) {
    %c0_i32 = arith.constant 0 : i32
    %c0_i32_0 = arith.constant 0 : i32
    %c0_i32_1 = arith.constant 0 : i32
    return %c0_i32, %c0_i32_0 : i32, i32
  }
  func.func @transform_4(%arg0: i32) -> (i32, i32) {
    %c0_i32 = arith.constant 0 : i32
    %c0_i32_0 = arith.constant 0 : i32
    %c0_i32_1 = arith.constant 0 : i32
    return %c0_i32, %c0_i32_0 : i32, i32
  }
  func.func @transform_5(%arg0: i32) -> (i32, i32) {
    %c0_i32 = arith.constant 0 : i32
    %c0_i32_0 = arith.constant 0 : i32
    %c0_i32_1 = arith.constant 0 : i32
    return %c0_i32, %c0_i32_0 : i32, i32
  }
  func.func @transform_6(%arg0: i32) -> (i32, i32) {
    %c0_i32 = arith.constant 0 : i32
    %c0_i32_0 = arith.constant 0 : i32
    %c0_i32_1 = arith.constant 0 : i32
    return %c0_i32, %c0_i32_0 : i32, i32
  }
  func.func @transform_7(%arg0: i32) -> (i32, i32) {
    %c0_i32 = arith.constant 0 : i32
    %c0_i32_0 = arith.constant 0 : i32
    %c0_i32_1 = arith.constant 0 : i32
    return %c0_i32, %c0_i32_0 : i32, i32
  }
  func.func @transform_8(%arg0: i32) -> (i32, i32) {
    %c0_i32 = arith.constant 0 : i32
    %c0_i32_0 = arith.constant 0 : i32
    %c0_i32_1 = arith.constant 0 : i32
    return %c0_i32, %c0_i32_0 : i32, i32
  }
  func.func @transform_9(%arg0: i32) -> (i32, i32) {
    %c0_i32 = arith.constant 0 : i32
    %c0_i32_0 = arith.constant 0 : i32
    %c0_i32_1 = arith.constant 0 : i32
    return %c0_i32, %c0_i32_0 : i32, i32
  }
  func.func @transform_10(%arg0: i32) -> (i32, i32) {
    %c0_i32 = arith.constant 0 : i32
    %c0_i32_0 = arith.constant 0 : i32
    %c0_i32_1 = arith.constant 0 : i32
    return %c0_i32, %c0_i32_0 : i32, i32
  }
  func.func @transform_11(%arg0: i32) -> (i32, i32) {
    %c0_i32 = arith.constant 0 : i32
    %c0_i32_0 = arith.constant 0 : i32
    %c0_i32_1 = arith.constant 0 : i32
    return %c0_i32, %c0_i32_0 : i32, i32
  }
  func.func @transform_12(%arg0: i32) -> (i32, i32) {
    %c0_i32 = arith.constant 0 : i32
    %c0_i32_0 = arith.constant 0 : i32
    %c0_i32_1 = arith.constant 0 : i32
    return %c0_i32, %c0_i32_0 : i32, i32
  }
  func.func @transform_13(%arg0: i32) -> (i32, i32, i32) {
    %c0_i32 = arith.constant 0 : i32
    %c0_i32_0 = arith.constant 0 : i32
    %c0_i32_1 = arith.constant 0 : i32
    return %arg0, %c0_i32, %c0_i32_0 : i32, i32, i32
  }
}

</mosaic_0001>

<llo_original>
// kernel: tpu_custom_call.1
$region0: #{tpu_custom_call.1}
  #allocation0 [shape = 'u32[]', space=smem, size = 0x4, offset = 0x4, fixed_abs, tag = 'smem constant byte address 0x4 - core index']
  #allocation1 [shape = 'u32[144,128]{1,0:T(1,128)}', space=vmem, size = 0x12000, scoped, tag = 'internal scratch']
  #allocation2 [shape = 'f32[8,32]{1,0:T(8,128)}', space=vmem, size = 0x1000, scoped, tag = 'scratch operand']
  #allocation3 [shape = 'f32[8,96]{1,0:T(8,128)}', space=vmem, size = 0x1000, scoped, tag = 'scratch operand']
  #allocation4 [shape = 'f32[8,32]{1,0:T(8,128)}', space=vmem, size = 0x1000, scoped, tag = 'scratch operand']
  #allocation5 [shape = 'f32[8,32]{1,0:T(8,128)}', space=vmem, size = 0x1000, scoped, tag = 'scratch operand']
  %s0 = inlined_call_operand.vmem [shape: f32[2,8,32], index: 0, kind: input, shape index: {}]
  %s1 = inlined_call_operand.vmem [shape: f32[1,32], index: 1, kind: input, shape index: {}]
  %s2 = inlined_call_operand.vmem [shape: f32[1,32], index: 2, kind: input, shape index: {}]
  %s3 = inlined_call_operand.vmem [shape: f32[32,96], index: 3, kind: input, shape index: {}]
  %s4 = inlined_call_operand.vmem [shape: f32[1,96], index: 4, kind: input, shape index: {}]
  %s5 = inlined_call_operand.vmem [shape: f32[32,32], index: 5, kind: input, shape index: {}]
  %s6 = inlined_call_operand.vmem [shape: f32[1,32], index: 6, kind: input, shape index: {}]
  %s7 = inlined_call_operand.vmem [shape: f32[1,32], index: 7, kind: input, shape index: {}]
  %s8 = inlined_call_operand.vmem [shape: f32[1,32], index: 8, kind: input, shape index: {}]
  %s9 = inlined_call_operand.vmem [shape: f32[32,128], index: 9, kind: input, shape index: {}]
  %s10 = inlined_call_operand.vmem [shape: f32[1,128], index: 10, kind: input, shape index: {}]
  %s11 = inlined_call_operand.vmem [shape: f32[128,32], index: 11, kind: input, shape index: {}]
  %s12 = inlined_call_operand.vmem [shape: f32[1,32], index: 12, kind: input, shape index: {}]
  %s13 = inlined_call_operand.hbm [shape: f32[2,8,32], index: 13, kind: output, shape index: {}]
  %s14 = sld [smem:[#allocation0]]
  $region85: #{tpu_custom_call.1} parent=0
    _
  %s16 = ssub.s32 1, %s14
  %s17 = scalar_select 0, %s16, %s14
  $region1: #{tpu_custom_call.1} parent=0
    #allocation6 [shape = 'u8[8192]{0}', space=vmem, size = 0x2000, scoped, tag = 'output window, operand 0']
    #allocation7 [shape = 's32[2]{0}', space=sflag, size = 0x8, scoped, tag = 'scoped memory for tpu_custom_call.1']
    %18 = vsyncpa [#allocation7], 0
    %s19 = scalar_lea.sflag [#allocation7], 1
    %20 = vsyncpa %s19, 0
    loop: start=0, step=1, limit=4
    $region2: #{tpu_custom_call.1} parent=1 // loop_pre_header
      _
    $region3: #{tpu_custom_call.1} parent=1 // loop_header
      %s22 = sphi 0, %s26
      %p23 = scmp.ge.s32.totalorder %s22, 4
      %s32 = sphi 0, %s34
      %s35 = sphi 0, %s32
      %s36 = sphi 0, %s35
      %s52 = sphi 0, %s36
      %s56 = sphi 0, %s56
      %s58 = sphi 0, %s56
      %s59 = sphi 0, %s58
      %s73 = sphi 0, %s59
      %s77 = sphi 0, %s77
      %s79 = sphi 0, %s77
      %s80 = sphi 0, %s79
      %s94 = sphi 0, %s80
      %s98 = sphi 0, %s98
      %s100 = sphi 0, %s98
      %s101 = sphi 0, %s100
      %s115 = sphi 0, %s101
      %s119 = sphi 0, %s119
      %s121 = sphi 0, %s119
      %s122 = sphi 0, %s121
      %s136 = sphi 0, %s122
      %s140 = sphi 0, %s140
      %s142 = sphi 0, %s140
      %s143 = sphi 0, %s142
      %s157 = sphi 0, %s143
      %s161 = sphi 0, %s161
      %s163 = sphi 0, %s161
      %s164 = sphi 0, %s163
      %s178 = sphi 0, %s164
      %s182 = sphi 0, %s182
      %s184 = sphi 0, %s182
      %s185 = sphi 0, %s184
      %s199 = sphi 0, %s185
      %s203 = sphi 0, %s203
      %s205 = sphi 0, %s203
      %s206 = sphi 0, %s205
      %s220 = sphi 0, %s206
      %s224 = sphi 0, %s224
      %s226 = sphi 0, %s224
      %s227 = sphi 0, %s226
      %s241 = sphi 0, %s227
      %s245 = sphi 0, %s245
      %s247 = sphi 0, %s245
      %s248 = sphi 0, %s247
      %s262 = sphi 0, %s248
      %s266 = sphi 0, %s266
      %s268 = sphi 0, %s266
      %s269 = sphi 0, %s268
      %s283 = sphi 0, %s269
      %s287 = sphi 0, %s287
      %s289 = sphi 0, %s287
      %s290 = sphi 0, %s289
      %s304 = sphi 0, %s290
      %s310 = sphi 0, %s312
      %s313 = sphi 0, %s310
      %s314 = sphi 0, %s313
      %s330 = sphi 0, %s314
    $region4: #{tpu_custom_call.1} parent=1 // loop_header_branch
      %25 = sbr.rel (%p23) target = $region8
    $region5: #{tpu_custom_call.1} parent=1 // loop_body
      %s27 = ssub.s32 %s22, 1
      %s28 = ssub.s32 %s22, 2
      %s29 = sadd.s32 %s22, 1
      %s30 = ssub.s32 %s22, %s29
      %p31 = scmp.eq.s32.totalorder %s30, 0
      %s33 = sadd.s32 %s32, 1
      %s34 = scalar_select %p31, %s32, %s33
      %p37 = pneg %p31
      %p38 = scmp.eq.s32.totalorder %s22, 1
      %p39 = por %p37, %p38
      %p40 = scmp.ne.s32.totalorder %s32, %s35
      %p41 = scmp.eq.s32.totalorder %s22, 0
      %p42 = por %p40, %p41
      %p43 = scmp.ne.s32.totalorder %s32, %s35
      %p44 = scmp.eq.s32.totalorder %s27, 1
      %p45 = por %p43, %p44
      %p46 = scmp.ne.s32.totalorder %s35, %s36
      %p47 = scmp.eq.s32.totalorder %s27, 0
      %p48 = por %p46, %p47
      %p49 = scmp.ne.s32.totalorder %s35, %s36
      %p50 = scmp.eq.s32.totalorder %s28, 1
      %p51 = por %p49, %p50
      %p53 = scmp.ne.s32.totalorder %s36, %s52
      %p54 = scmp.eq.s32.totalorder %s28, 0
      %p55 = por %p53, %p54
      %s57 = sadd.s32 %s56, 1
      %p60 = scmp.eq.s32.totalorder %s22, 1
      %p61 = scmp.ne.s32.totalorder %s56, %s58
      %p62 = scmp.eq.s32.totalorder %s22, 0
      %p63 = por %p61, %p62
      %p64 = scmp.ne.s32.totalorder %s56, %s58
      %p65 = scmp.eq.s32.totalorder %s27, 1
      %p66 = por %p64, %p65
      %p67 = scmp.ne.s32.totalorder %s58, %s59
      %p68 = scmp.eq.s32.totalorder %s27, 0
      %p69 = por %p67, %p68
      %p70 = scmp.ne.s32.totalorder %s58, %s59
      %p71 = scmp.eq.s32.totalorder %s28, 1
      %p72 = por %p70, %p71
      %p74 = scmp.ne.s32.totalorder %s59, %s73
      %p75 = scmp.eq.s32.totalorder %s28, 0
      %p76 = por %p74, %p75
      %s78 = sadd.s32 %s77, 1
      %p81 = scmp.eq.s32.totalorder %s22, 1
      %p82 = scmp.ne.s32.totalorder %s77, %s79
      %p83 = scmp.eq.s32.totalorder %s22, 0
      %p84 = por %p82, %p83
      %p85 = scmp.ne.s32.totalorder %s77, %s79
      %p86 = scmp.eq.s32.totalorder %s27, 1
      %p87 = por %p85, %p86
      %p88 = scmp.ne.s32.totalorder %s79, %s80
      %p89 = scmp.eq.s32.totalorder %s27, 0
      %p90 = por %p88, %p89
      %p91 = scmp.ne.s32.totalorder %s79, %s80
      %p92 = scmp.eq.s32.totalorder %s28, 1
      %p93 = por %p91, %p92
      %p95 = scmp.ne.s32.totalorder %s80, %s94
      %p96 = scmp.eq.s32.totalorder %s28, 0
      %p97 = por %p95, %p96
      %s99 = sadd.s32 %s98, 1
      %p102 = scmp.eq.s32.totalorder %s22, 1
      %p103 = scmp.ne.s32.totalorder %s98, %s100
      %p104 = scmp.eq.s32.totalorder %s22, 0
      %p105 = por %p103, %p104
      %p106 = scmp.ne.s32.totalorder %s98, %s100
      %p107 = scmp.eq.s32.totalorder %s27, 1
      %p108 = por %p106, %p107
      %p109 = scmp.ne.s32.totalorder %s100, %s101
      %p110 = scmp.eq.s32.totalorder %s27, 0
      %p111 = por %p109, %p110
      %p112 = scmp.ne.s32.totalorder %s100, %s101
      %p113 = scmp.eq.s32.totalorder %s28, 1
      %p114 = por %p112, %p113
      %p116 = scmp.ne.s32.totalorder %s101, %s115
      %p117 = scmp.eq.s32.totalorder %s28, 0
      %p118 = por %p116, %p117
      %s120 = sadd.s32 %s119, 1
      %p123 = scmp.eq.s32.totalorder %s22, 1
      %p124 = scmp.ne.s32.totalorder %s119, %s121
      %p125 = scmp.eq.s32.totalorder %s22, 0
      %p126 = por %p124, %p125
      %p127 = scmp.ne.s32.totalorder %s119, %s121
      %p128 = scmp.eq.s32.totalorder %s27, 1
      %p129 = por %p127, %p128
      %p130 = scmp.ne.s32.totalorder %s121, %s122
      %p131 = scmp.eq.s32.totalorder %s27, 0
      %p132 = por %p130, %p131
      %p133 = scmp.ne.s32.totalorder %s121, %s122
      %p134 = scmp.eq.s32.totalorder %s28, 1
      %p135 = por %p133, %p134
      %p137 = scmp.ne.s32.totalorder %s122, %s136
      %p138 = scmp.eq.s32.totalorder %s28, 0
      %p139 = por %p137, %p138
      %s141 = sadd.s32 %s140, 1
      %p144 = scmp.eq.s32.totalorder %s22, 1
      %p145 = scmp.ne.s32.totalorder %s140, %s142
      %p146 = scmp.eq.s32.totalorder %s22, 0
      %p147 = por %p145, %p146
      %p148 = scmp.ne.s32.totalorder %s140, %s142
      %p149 = scmp.eq.s32.totalorder %s27, 1
      %p150 = por %p148, %p149
      %p151 = scmp.ne.s32.totalorder %s142, %s143
      %p152 = scmp.eq.s32.totalorder %s27, 0
      %p153 = por %p151, %p152
      %p154 = scmp.ne.s32.totalorder %s142, %s143
      %p155 = scmp.eq.s32.totalorder %s28, 1
      %p156 = por %p154, %p155
      %p158 = scmp.ne.s32.totalorder %s143, %s157
      %p159 = scmp.eq.s32.totalorder %s28, 0
      %p160 = por %p158, %p159
      %s162 = sadd.s32 %s161, 1
      %p165 = scmp.eq.s32.totalorder %s22, 1
      %p166 = scmp.ne.s32.totalorder %s161, %s163
      %p167 = scmp.eq.s32.totalorder %s22, 0
      %p168 = por %p166, %p167
      %p169 = scmp.ne.s32.totalorder %s161, %s163
      %p170 = scmp.eq.s32.totalorder %s27, 1
      %p171 = por %p169, %p170
      %p172 = scmp.ne.s32.totalorder %s163, %s164
      %p173 = scmp.eq.s32.totalorder %s27, 0
      %p174 = por %p172, %p173
      %p175 = scmp.ne.s32.totalorder %s163, %s164
      %p176 = scmp.eq.s32.totalorder %s28, 1
      %p177 = por %p175, %p176
      %p179 = scmp.ne.s32.totalorder %s164, %s178
      %p180 = scmp.eq.s32.totalorder %s28, 0
      %p181 = por %p179, %p180
      %s183 = sadd.s32 %s182, 1
      %p186 = scmp.eq.s32.totalorder %s22, 1
      %p187 = scmp.ne.s32.totalorder %s182, %s184
      %p188 = scmp.eq.s32.totalorder %s22, 0
      %p189 = por %p187, %p188
      %p190 = scmp.ne.s32.totalorder %s182, %s184
      %p191 = scmp.eq.s32.totalorder %s27, 1
      %p192 = por %p190, %p191
      %p193 = scmp.ne.s32.totalorder %s184, %s185
      %p194 = scmp.eq.s32.totalorder %s27, 0
      %p195 = por %p193, %p194
      %p196 = scmp.ne.s32.totalorder %s184, %s185
      %p197 = scmp.eq.s32.totalorder %s28, 1
      %p198 = por %p196, %p197
      %p200 = scmp.ne.s32.totalorder %s185, %s199
      %p201 = scmp.eq.s32.totalorder %s28, 0
      %p202 = por %p200, %p201
      %s204 = sadd.s32 %s203, 1
      %p207 = scmp.eq.s32.totalorder %s22, 1
      %p208 = scmp.ne.s32.totalorder %s203, %s205
      %p209 = scmp.eq.s32.totalorder %s22, 0
      %p210 = por %p208, %p209
      %p211 = scmp.ne.s32.totalorder %s203, %s205
      %p212 = scmp.eq.s32.totalorder %s27, 1
      %p213 = por %p211, %p212
      %p214 = scmp.ne.s32.totalorder %s205, %s206
      %p215 = scmp.eq.s32.totalorder %s27, 0
      %p216 = por %p214, %p215
      %p217 = scmp.ne.s32.totalorder %s205, %s206
      %p218 = scmp.eq.s32.totalorder %s28, 1
      %p219 = por %p217, %p218
      %p221 = scmp.ne.s32.totalorder %s206, %s220
      %p222 = scmp.eq.s32.totalorder %s28, 0
      %p223 = por %p221, %p222
      %s225 = sadd.s32 %s224, 1
      %p228 = scmp.eq.s32.totalorder %s22, 1
      %p229 = scmp.ne.s32.totalorder %s224, %s226
      %p230 = scmp.eq.s32.totalorder %s22, 0
      %p231 = por %p229, %p230
      %p232 = scmp.ne.s32.totalorder %s224, %s226
      %p233 = scmp.eq.s32.totalorder %s27, 1
      %p234 = por %p232, %p233
      %p235 = scmp.ne.s32.totalorder %s226, %s227
      %p236 = scmp.eq.s32.totalorder %s27, 0
      %p237 = por %p235, %p236
      %p238 = scmp.ne.s32.totalorder %s226, %s227
      %p239 = scmp.eq.s32.totalorder %s28, 1
      %p240 = por %p238, %p239
      %p242 = scmp.ne.s32.totalorder %s227, %s241
      %p243 = scmp.eq.s32.totalorder %s28, 0
      %p244 = por %p242, %p243
      %s246 = sadd.s32 %s245, 1
      %p249 = scmp.eq.s32.totalorder %s22, 1
      %p250 = scmp.ne.s32.totalorder %s245, %s247
      %p251 = scmp.eq.s32.totalorder %s22, 0
      %p252 = por %p250, %p251
      %p253 = scmp.ne.s32.totalorder %s245, %s247
      %p254 = scmp.eq.s32.totalorder %s27, 1
      %p255 = por %p253, %p254
      %p256 = scmp.ne.s32.totalorder %s247, %s248
      %p257 = scmp.eq.s32.totalorder %s27, 0
      %p258 = por %p256, %p257
      %p259 = scmp.ne.s32.totalorder %s247, %s248
      %p260 = scmp.eq.s32.totalorder %s28, 1
      %p261 = por %p259, %p260
      %p263 = scmp.ne.s32.totalorder %s248, %s262
      %p264 = scmp.eq.s32.totalorder %s28, 0
      %p265 = por %p263, %p264
      %s267 = sadd.s32 %s266, 1
      %p270 = scmp.eq.s32.totalorder %s22, 1
      %p271 = scmp.ne.s32.totalorder %s266, %s268
      %p272 = scmp.eq.s32.totalorder %s22, 0
      %p273 = por %p271, %p272
      %p274 = scmp.ne.s32.totalorder %s266, %s268
      %p275 = scmp.eq.s32.totalorder %s27, 1
      %p276 = por %p274, %p275
      %p277 = scmp.ne.s32.totalorder %s268, %s269
      %p278 = scmp.eq.s32.totalorder %s27, 0
      %p279 = por %p277, %p278
      %p280 = scmp.ne.s32.totalorder %s268, %s269
      %p281 = scmp.eq.s32.totalorder %s28, 1
      %p282 = por %p280, %p281
      %p284 = scmp.ne.s32.totalorder %s269, %s283
      %p285 = scmp.eq.s32.totalorder %s28, 0
      %p286 = por %p284, %p285
      %s288 = sadd.s32 %s287, 1
      %p291 = scmp.eq.s32.totalorder %s22, 1
      %p292 = scmp.ne.s32.totalorder %s287, %s289
      %p293 = scmp.eq.s32.totalorder %s22, 0
      %p294 = por %p292, %p293
      %p295 = scmp.ne.s32.totalorder %s287, %s289
      %p296 = scmp.eq.s32.totalorder %s27, 1
      %p297 = por %p295, %p296
      %p298 = scmp.ne.s32.totalorder %s289, %s290
      %p299 = scmp.eq.s32.totalorder %s27, 0
      %p300 = por %p298, %p299
      %p301 = scmp.ne.s32.totalorder %s289, %s290
      %p302 = scmp.eq.s32.totalorder %s28, 1
      %p303 = por %p301, %p302
      %p305 = scmp.ne.s32.totalorder %s290, %s304
      %p306 = scmp.eq.s32.totalorder %s28, 0
      %p307 = por %p305, %p306
      %s308 = ssub.s32 %s22, %s29
      %p309 = scmp.eq.s32.totalorder %s308, 0
      %s311 = sadd.s32 %s310, 1
      %s312 = scalar_select %p309, %s310, %s311
      %p315 = pneg %p309
      %p316 = scmp.eq.s32.totalorder %s22, 1
      %p317 = por %p315, %p316
      %p318 = scmp.ne.s32.totalorder %s310, %s313
      %p319 = scmp.eq.s32.totalorder %s22, 0
      %p320 = por %p318, %p319
      %p321 = scmp.ne.s32.totalorder %s310, %s313
      %p322 = scmp.eq.s32.totalorder %s27, 1
      %p323 = por %p321, %p322
      %p324 = scmp.ne.s32.totalorder %s313, %s314
      %p325 = scmp.eq.s32.totalorder %s27, 0
      %p326 = por %p324, %p325
      %p327 = scmp.ne.s32.totalorder %s313, %s314
      %p328 = scmp.eq.s32.totalorder %s28, 1
      %p329 = por %p327, %p328
      %p331 = scmp.ne.s32.totalorder %s314, %s330
      %p332 = scmp.eq.s32.totalorder %s28, 0
      %p333 = por %p331, %p332
      %p334 = scmp.le.s32.totalorder 1, %s22
      %p335 = scmp.lt.s32.totalorder %s22, 3
      %p336 = pnand %p334, %p335
      %p337 = pneg %p336
      // Predicated region
      $region9: #{tpu_custom_call.1} parent=5 // pred_check
        _
      $region10: #{tpu_custom_call.1} parent=5 // pred_check_branch
        %339 = sbr.rel (%p336) target = $region12
      $region11: #{tpu_custom_call.1} parent=5 // pred_region
        %s340 = ssub.s32 %s22, 1
        // Predicated region
        $region13: #{tpu_custom_call.1} parent=11 // pred_check
          %p341 = pneg %p69
        $region14: #{tpu_custom_call.1} parent=11 // pred_check_branch
          %343 = sbr.rel (%p341) target = $region16
        $region15: #{tpu_custom_call.1} parent=11 // pred_region
          _
        $region16: #{tpu_custom_call.1} parent=11 // pred_fallthru
          _
        // Predicated region
        $region17: #{tpu_custom_call.1} parent=11 // pred_check
          %p344 = pneg %p90
        $region18: #{tpu_custom_call.1} parent=11 // pred_check_branch
          %346 = sbr.rel (%p344) target = $region20
        $region19: #{tpu_custom_call.1} parent=11 // pred_region
          _
        $region20: #{tpu_custom_call.1} parent=11 // pred_fallthru
          _
        // Predicated region
        $region21: #{tpu_custom_call.1} parent=11 // pred_check
          %p347 = pneg %p111
        $region22: #{tpu_custom_call.1} parent=11 // pred_check_branch
          %349 = sbr.rel (%p347) target = $region24
        $region23: #{tpu_custom_call.1} parent=11 // pred_region
          _
        $region24: #{tpu_custom_call.1} parent=11 // pred_fallthru
          _
        // Predicated region
        $region25: #{tpu_custom_call.1} parent=11 // pred_check
          %p350 = pneg %p132
        $region26: #{tpu_custom_call.1} parent=11 // pred_check_branch
          %352 = sbr.rel (%p350) target = $region28
        $region27: #{tpu_custom_call.1} parent=11 // pred_region
          _
        $region28: #{tpu_custom_call.1} parent=11 // pred_fallthru
          _
        // Predicated region
        $region29: #{tpu_custom_call.1} parent=11 // pred_check
          %p353 = pneg %p153
        $region30: #{tpu_custom_call.1} parent=11 // pred_check_branch
          %355 = sbr.rel (%p353) target = $region32
        $region31: #{tpu_custom_call.1} parent=11 // pred_region
          _
        $region32: #{tpu_custom_call.1} parent=11 // pred_fallthru
          _
        // Predicated region
        $region33: #{tpu_custom_call.1} parent=11 // pred_check
          %p356 = pneg %p174
        $region34: #{tpu_custom_call.1} parent=11 // pred_check_branch
          %358 = sbr.rel (%p356) target = $region36
        $region35: #{tpu_custom_call.1} parent=11 // pred_region
          _
        $region36: #{tpu_custom_call.1} parent=11 // pred_fallthru
          _
        // Predicated region
        $region37: #{tpu_custom_call.1} parent=11 // pred_check
          %p359 = pneg %p195
        $region38: #{tpu_custom_call.1} parent=11 // pred_check_branch
          %361 = sbr.rel (%p359) target = $region40
        $region39: #{tpu_custom_call.1} parent=11 // pred_region
          _
        $region40: #{tpu_custom_call.1} parent=11 // pred_fallthru
          _
        // Predicated region
        $region41: #{tpu_custom_call.1} parent=11 // pred_check
          %p362 = pneg %p216
        $region42: #{tpu_custom_call.1} parent=11 // pred_check_branch
          %364 = sbr.rel (%p362) target = $region44
        $region43: #{tpu_custom_call.1} parent=11 // pred_region
          _
        $region44: #{tpu_custom_call.1} parent=11 // pred_fallthru
          _
        // Predicated region
        $region45: #{tpu_custom_call.1} parent=11 // pred_check
          %p365 = pneg %p237
        $region46: #{tpu_custom_call.1} parent=11 // pred_check_branch
          %367 = sbr.rel (%p365) target = $region48
        $region47: #{tpu_custom_call.1} parent=11 // pred_region
          _
        $region48: #{tpu_custom_call.1} parent=11 // pred_fallthru
          _
        // Predicated region
        $region49: #{tpu_custom_call.1} parent=11 // pred_check
          %p368 = pneg %p258
        $region50: #{tpu_custom_call.1} parent=11 // pred_check_branch
          %370 = sbr.rel (%p368) target = $region52
        $region51: #{tpu_custom_call.1} parent=11 // pred_region
          _
        $region52: #{tpu_custom_call.1} parent=11 // pred_fallthru
          _
        // Predicated region
        $region53: #{tpu_custom_call.1} parent=11 // pred_check
          %p371 = pneg %p279
        $region54: #{tpu_custom_call.1} parent=11 // pred_check_branch
          %373 = sbr.rel (%p371) target = $region56
        $region55: #{tpu_custom_call.1} parent=11 // pred_region
          _
        $region56: #{tpu_custom_call.1} parent=11 // pred_fallthru
          _
        // Predicated region
        $region57: #{tpu_custom_call.1} parent=11 // pred_check
          %p374 = pneg %p300
        $region58: #{tpu_custom_call.1} parent=11 // pred_check_branch
          %376 = sbr.rel (%p374) target = $region60
        $region59: #{tpu_custom_call.1} parent=11 // pred_region
          _
        $region60: #{tpu_custom_call.1} parent=11 // pred_fallthru
          _
      $region12: #{tpu_custom_call.1} parent=5 // pred_fallthru
        _
      %p377 = scmp.lt.s32.totalorder %s22, 2
      // Predicated region
      $region61: #{tpu_custom_call.1} parent=5 // pred_check
        %p378 = pneg %p377
      $region62: #{tpu_custom_call.1} parent=5 // pred_check_branch
        %380 = sbr.rel (%p378) target = $region64
      $region63: #{tpu_custom_call.1} parent=5 // pred_region
        // Predicated region
        $region65: #{tpu_custom_call.1} parent=63 // pred_check
          %p381 = pneg %p42
        $region66: #{tpu_custom_call.1} parent=63 // pred_check_branch
          %383 = sbr.rel (%p381) target = $region68
        $region67: #{tpu_custom_call.1} parent=63 // pred_region
          %p384 = scmp.lt.s32.totalorder %s22, 1
          %s385 = scalar_select %p384, %s22, 1
          %s386 = smul.addr %s385, 8
          %s387 = scalar_lea.vmem %s0, %s386
        $region68: #{tpu_custom_call.1} parent=63 // pred_fallthru
          _
      $region64: #{tpu_custom_call.1} parent=5 // pred_fallthru
        _
      %p388 = scmp.le.s32.totalorder 1, %s22
      %p389 = scmp.lt.s32.totalorder %s22, 3
      %p390 = pnand %p388, %p389
      %p391 = pneg %p390
      // Predicated region
      $region69: #{tpu_custom_call.1} parent=5 // pred_check
        _
      $region70: #{tpu_custom_call.1} parent=5 // pred_check_branch
        %393 = sbr.rel (%p390) target = $region72
      $region71: #{tpu_custom_call.1} parent=5 // pred_region
        %s394 = ssub.s32 %s22, 1
        %p395 = scmp.lt.s32.totalorder %s27, 1
        %s396 = scalar_select %p395, %s27, 1
        %s397 = smul.addr %s396, 8
        %s398 = scalar_lea.vmem %s0, %s397
        %p399 = pneg %p48
        %p400 = pneg %p45
        %p401 = pneg %p69
        %p402 = pneg %p66
        %p403 = pneg %p90
        %p404 = pneg %p87
        %p405 = pneg %p111
        %p406 = pneg %p108
        %p407 = pneg %p132
        %p408 = pneg %p129
        %p409 = pneg %p153
        %p410 = pneg %p150
        %p411 = pneg %p174
        %p412 = pneg %p171
        %p413 = pneg %p195
        %p414 = pneg %p192
        %p415 = pneg %p216
        %p416 = pneg %p213
        %p417 = pneg %p237
        %p418 = pneg %p234
        %p419 = pneg %p258
        %p420 = pneg %p255
        %p421 = pneg %p279
        %p422 = pneg %p276
        %p423 = pneg %p300
        %p424 = pneg %p297
        %p425 = pneg %p326
        %p426 = pneg %p323
        %s427 = sand.u32 %s313, 1
        %s428 = scalar_lea.sflag [#allocation7], %s427
        %s429 = sand.u32 %s313, 1
        %s430 = smul.addr %s429, 8
        %s431 = scalar_lea.vmem [#allocation6], %s430
        %p432 = scmp.lt.s32.totalorder %s27, 1
        %s433 = scalar_select %p432, %s27, 1
        %s434 = smul.addr %s433, 8
        %s435 = scalar_lea.vmem %s0, %s434
        %v436 = vld [vmem:[%s435] sm:$0xff]
        %v437 = vld [vmem:[%s1] sm:$0x1]
        %v438 = vld [vmem:[%s2] sm:$0x1]
        %vm439 = vcmask 261120
        %v440 = vsel %vm439, %v436, 0.0
        %441 = vadd.xlane.f32.xlu0 %v440
        %v442 = vpop.xlane.xlu0 %441
        %v443 = vrcp.pop 32.0
        %v444 = vmul.f32 %v442, %v443
        %v445 = vsub.f32 %v436, %v444
        %v446 = vmul.f32 %v445, %v445
        %v447 = vsel %vm439, %v446, 0.0
        %448 = vadd.xlane.f32.xlu0 %v447
        %v449 = vpop.xlane.xlu0 %448
        %v450 = vmul.f32 %v449, %v443
        %v451 = vadd.f32 %v450, 1e-05
        %v452 = vrsqrt.pop %v451
        %v453 = vmul.f32 %v445, %v452
        %v455 = vlaneseq
        %v456 = vshrl.u32 %v455, 7
        %v457 = vsub.s32 0, %v456
        %v458 = vrot.slane %v437, %v457
        %v460 = vmul.f32 %v453, %v458
        %v462 = vlaneseq
        %v463 = vshrl.u32 %v462, 7
        %v464 = vsub.s32 0, %v463
        %v465 = vrot.slane %v438, %v464
        %v467 = vadd.f32 %v460, %v465
        %468 = vst.msk [vmem:[#allocation2] sm:$0xff] %vm439, %v467
        %v469 = vld [vmem:[#allocation2] sm:$0xff]
        %v470 = vld [vmem:[%s3] sm:$0xff]
        %v471 = vld [vmem:[%s3 + $0x8] sm:$0xff]
        %v472 = vld [vmem:[%s3 + $0x10] sm:$0xff]
        %v473 = vld [vmem:[%s3 + $0x18] sm:$0xff]
        %v474 = vld [vmem:[%s4] sm:$0x1]
        %v476 = vlaneseq
        %v477 = vshrl.u32 %v476, 7
        %v478 = vsub.s32 0, %v477
        %v479 = vrot.slane %v474, %v478
        %v482 = vsel %vm439, %v469, 0
        %484 = vmatprep.subr.mxu0 0.0
        %485 = vmatpush1.msra.mxu0 %v470
        %486 = vmatprep.subr.mxu0 0.0
        %487 = vmatpush1.msra.mxu0 %v471
        %488 = vmatprep.subr.mxu0 0.0
        %489 = vmatpush1.msra.mxu0 %v472
        %490 = vmatprep.subr.mxu0 0.0
        %491 = vmatpush1.msra.mxu0 %v473
        %492 = vmatprep.subr.mxu0 0.0
        %493 = vmatpush1.msra.mxu0 0.0
        %494 = vmatprep.subr.mxu0 0.0
        %495 = vmatpush1.msra.mxu0 0.0
        %496 = vmatprep.subr.mxu0 0.0
        %497 = vmatpush1.msra.mxu0 0.0
        %498 = vmatprep.subr.mxu0 0.0
        %499 = vmatpush1.msra.mxu0 0.0
        %500 = vmatprep.subr.mxu0 0.0
        %501 = vmatpush1.msra.mxu0 0.0
        %502 = vmatprep.subr.mxu0 0.0
        %503 = vmatpush1.msra.mxu0 0.0
        %504 = vmatprep.subr.mxu0 0.0
        %505 = vmatpush1.msra.mxu0 0.0
        %506 = vmatprep.subr.mxu0 0.0
        %507 = vmatpush1.msra.mxu0 0.0
        %508 = vmatprep.subr.mxu0 0.0
        %509 = vmatpush1.msra.mxu0 0.0
        %510 = vmatprep.subr.mxu0 0.0
        %511 = vmatpush1.msra.mxu0 0.0
        %512 = vmatprep.subr.mxu0 0.0
        %513 = vmatpush1.msra.mxu0 0.0
        %514 = vmatprep.subr.mxu0 0.0
        %515 = vmatpush1.msra.mxu0 0.0
        %516 = vmatprep.subr.mxu0 0.0
        %517 = vmatpush1.msra.mxu0 0.0
        %518 = vmatprep.subr.mxu0 0.0
        %519 = vmatpush1.msra.mxu0 0.0
        %520 = vmatprep.subr.mxu0 0.0
        %521 = vmatpush1.msra.mxu0 0.0
        %522 = vmatprep.subr.mxu0 0.0
        %523 = vmatpush1.msra.mxu0 0.0
        %524 = vmatprep.subr.mxu0 0.0
        %525 = vmatpush1.msra.mxu0 0.0
        %526 = vmatprep.subr.mxu0 0.0
        %527 = vmatpush1.msra.mxu0 0.0
        %528 = vmatprep.subr.mxu0 0.0
        %529 = vmatpush1.msra.mxu0 0.0
        %530 = vmatprep.subr.mxu0 0.0
        %531 = vmatpush1.msra.mxu0 0.0
        %532 = vmatprep.subr.mxu0 0.0
        %533 = vmatpush1.msra.mxu0 0.0
        %534 = vmatprep.subr.mxu0 0.0
        %535 = vmatpush1.msra.mxu0 0.0
        %536 = vmatprep.subr.mxu0 0.0
        %537 = vmatpush1.msra.mxu0 0.0
        %538 = vmatprep.subr.mxu0 0.0
        %539 = vmatpush1.msra.mxu0 0.0
        %540 = vmatprep.subr.mxu0 0.0
        %541 = vmatpush1.msra.mxu0 0.0
        %542 = vmatprep.subr.mxu0 0.0
        %543 = vmatpush1.msra.mxu0 0.0
        %544 = vmatprep.subr.mxu0 0.0
        %545 = vmatpush1.msra.mxu0 0.0
        %546 = vmatprep.subr.mxu0 0.0
        %547 = vmatpush1.msra.mxu0 0.0
        %548 = vmatprep.mubr.f32.mxu0 0.0
        %549 = vmatmul.mubr.f32.gmra.mrb[0].mxu0 %v482
        %v550 = vpop.f32.mrb[0].mxu0
        %v551 = vadd.f32 %v479, %v550
        %v552 = vpop.f32.mrb[0].mxu0
        %553 = vdwg.mxu0
        %vm554 = vcmask 785408
        %555 = vst.msk [vmem:[#allocation3] sm:$0xff] %vm554, %v551
        %v556 = vld [vmem:[#allocation3] sm:$0xff]
        %558 = vrot.lane.b32.xlu0 %v556, 96
        %v559 = vpop.permute.xlu0 %558
        %vm560 = vcmask 64512
        %v561 = vsel %vm560, %v556, 0
        %v563 = vsel %vm560, %v559, 0
        %565 = vmatprep.subr.mxu0 0.0
        %566 = vmatpush1.xpose.msra.mxu0 %v563
        %567 = vmatprep.subr.mxu0 0.0
        %568 = vmatpush1.xpose.msra.mxu0 0.0
        %569 = vmatprep.subr.mxu0 0.0
        %570 = vmatpush1.xpose.msra.mxu0 0.0
        %571 = vmatprep.subr.mxu0 0.0
        %572 = vmatpush1.xpose.msra.mxu0 0.0
        %573 = vmatprep.subr.mxu0 0.0
        %574 = vmatpush1.xpose.msra.mxu0 0.0
        %575 = vmatprep.subr.mxu0 0.0
        %576 = vmatpush1.xpose.msra.mxu0 0.0
        %577 = vmatprep.subr.mxu0 0.0
        %578 = vmatpush1.xpose.msra.mxu0 0.0
        %579 = vmatprep.subr.mxu0 0.0
        %580 = vmatpush1.xpose.msra.mxu0 0.0
        %581 = vmatprep.subr.mxu0 0.0
        %582 = vmatpush1.xpose.msra.mxu0 0.0
        %583 = vmatprep.subr.mxu0 0.0
        %584 = vmatpush1.xpose.msra.mxu0 0.0
        %585 = vmatprep.subr.mxu0 0.0
        %586 = vmatpush1.xpose.msra.mxu0 0.0
        %587 = vmatprep.subr.mxu0 0.0
        %588 = vmatpush1.xpose.msra.mxu0 0.0
        %589 = vmatprep.subr.mxu0 0.0
        %590 = vmatpush1.xpose.msra.mxu0 0.0
        %591 = vmatprep.subr.mxu0 0.0
        %592 = vmatpush1.xpose.msra.mxu0 0.0
        %593 = vmatprep.subr.mxu0 0.0
        %594 = vmatpush1.xpose.msra.mxu0 0.0
        %595 = vmatprep.subr.mxu0 0.0
        %596 = vmatpush1.xpose.msra.mxu0 0.0
        %597 = vmatprep.subr.mxu0 0.0
        %598 = vmatpush1.xpose.msra.mxu0 0.0
        %599 = vmatprep.subr.mxu0 0.0
        %600 = vmatpush1.xpose.msra.mxu0 0.0
        %601 = vmatprep.subr.mxu0 0.0
        %602 = vmatpush1.xpose.msra.mxu0 0.0
        %603 = vmatprep.subr.mxu0 0.0
        %604 = vmatpush1.xpose.msra.mxu0 0.0
        %605 = vmatprep.subr.mxu0 0.0
        %606 = vmatpush1.xpose.msra.mxu0 0.0
        %607 = vmatprep.subr.mxu0 0.0
        %608 = vmatpush1.xpose.msra.mxu0 0.0
        %609 = vmatprep.subr.mxu0 0.0
        %610 = vmatpush1.xpose.msra.mxu0 0.0
        %611 = vmatprep.subr.mxu0 0.0
        %612 = vmatpush1.xpose.msra.mxu0 0.0
        %613 = vmatprep.subr.mxu0 0.0
        %614 = vmatpush1.xpose.msra.mxu0 0.0
        %615 = vmatprep.subr.mxu0 0.0
        %616 = vmatpush1.xpose.msra.mxu0 0.0
        %617 = vmatprep.subr.mxu0 0.0
        %618 = vmatpush1.xpose.msra.mxu0 0.0
        %619 = vmatprep.subr.mxu0 0.0
        %620 = vmatpush1.xpose.msra.mxu0 0.0
        %621 = vmatprep.subr.mxu0 0.0
        %622 = vmatpush1.xpose.msra.mxu0 0.0
        %623 = vmatprep.subr.mxu0 0.0
        %624 = vmatpush1.xpose.msra.mxu0 0.0
        %625 = vmatprep.subr.mxu0 0.0
        %626 = vmatpush1.xpose.msra.mxu0 0.0
        %627 = vmatprep.subr.mxu0 0.0
        %628 = vmatpush1.xpose.msra.mxu0 0.0
        %629 = vmatprep.mubr.f32.mxu0 0.0
        %630 = vmatmul.mubr.f32.gmra.mrb[0].mxu0 %v561
        %v631 = vpop.f32.mrb[0].mxu0
        %v632 = vadd.f32 0.0, %v631
        %v633 = vpop.f32.mrb[0].mxu0
        %634 = vdwg.mxu0
        %v635 = vsel %vm560, %v632, -inf
        %636 = vmax.xlane.f32.xlu0 %v635
        %v637 = vpop.xlane.xlu0 %636
        %v638 = vsub.f32 %v632, %v637
        %v639 = vmul.f32 %v638, 1.442695
        %v640 = vpow.pop %v639
        %v641 = vsel %vm560, %v640, 0.0
        %642 = vadd.xlane.f32.xlu0 %v641
        %v643 = vpop.xlane.xlu0 %642
        %v644 = vrcp.pop %v643
        %v645 = vmul.f32 %v640, %v644
        %646 = vrot.lane.b32.xlu0 %v556, 64
        %v647 = vpop.permute.xlu0 %646
        %v650 = vsel %vm560, %v645, 0
        %652 = vmatprep.subr.mxu0 0.0
        %653 = vmatpush1.msra.mxu0 %v647
        %654 = vmatprep.subr.mxu0 0.0
        %655 = vmatpush1.msra.mxu0 0.0
        %656 = vmatprep.subr.mxu0 0.0
        %657 = vmatpush1.msra.mxu0 0.0
        %658 = vmatprep.subr.mxu0 0.0
        %659 = vmatpush1.msra.mxu0 0.0
        %660 = vmatprep.subr.mxu0 0.0
        %661 = vmatpush1.msra.mxu0 0.0
        %662 = vmatprep.subr.mxu0 0.0
        %663 = vmatpush1.msra.mxu0 0.0
        %664 = vmatprep.subr.mxu0 0.0
        %665 = vmatpush1.msra.mxu0 0.0
        %666 = vmatprep.subr.mxu0 0.0
        %667 = vmatpush1.msra.mxu0 0.0
        %668 = vmatprep.subr.mxu0 0.0
        %669 = vmatpush1.msra.mxu0 0.0
        %670 = vmatprep.subr.mxu0 0.0
        %671 = vmatpush1.msra.mxu0 0.0
        %672 = vmatprep.subr.mxu0 0.0
        %673 = vmatpush1.msra.mxu0 0.0
        %674 = vmatprep.subr.mxu0 0.0
        %675 = vmatpush1.msra.mxu0 0.0
        %676 = vmatprep.subr.mxu0 0.0
        %677 = vmatpush1.msra.mxu0 0.0
        %678 = vmatprep.subr.mxu0 0.0
        %679 = vmatpush1.msra.mxu0 0.0
        %680 = vmatprep.subr.mxu0 0.0
        %681 = vmatpush1.msra.mxu0 0.0
        %682 = vmatprep.subr.mxu0 0.0
        %683 = vmatpush1.msra.mxu0 0.0
        %684 = vmatprep.subr.mxu0 0.0
        %685 = vmatpush1.msra.mxu0 0.0
        %686 = vmatprep.subr.mxu0 0.0
        %687 = vmatpush1.msra.mxu0 0.0
        %688 = vmatprep.subr.mxu0 0.0
        %689 = vmatpush1.msra.mxu0 0.0
        %690 = vmatprep.subr.mxu0 0.0
        %691 = vmatpush1.msra.mxu0 0.0
        %692 = vmatprep.subr.mxu0 0.0
        %693 = vmatpush1.msra.mxu0 0.0
        %694 = vmatprep.subr.mxu0 0.0
        %695 = vmatpush1.msra.mxu0 0.0
        %696 = vmatprep.subr.mxu0 0.0
        %697 = vmatpush1.msra.mxu0 0.0
        %698 = vmatprep.subr.mxu0 0.0
        %699 = vmatpush1.msra.mxu0 0.0
        %700 = vmatprep.subr.mxu0 0.0
        %701 = vmatpush1.msra.mxu0 0.0
        %702 = vmatprep.subr.mxu0 0.0
        %703 = vmatpush1.msra.mxu0 0.0
        %704 = vmatprep.subr.mxu0 0.0
        %705 = vmatpush1.msra.mxu0 0.0
        %706 = vmatprep.subr.mxu0 0.0
        %707 = vmatpush1.msra.mxu0 0.0
        %708 = vmatprep.subr.mxu0 0.0
        %709 = vmatpush1.msra.mxu0 0.0
        %710 = vmatprep.subr.mxu0 0.0
        %711 = vmatpush1.msra.mxu0 0.0
        %712 = vmatprep.subr.mxu0 0.0
        %713 = vmatpush1.msra.mxu0 0.0
        %714 = vmatprep.subr.mxu0 0.0
        %715 = vmatpush1.msra.mxu0 0.0
        %716 = vmatprep.mubr.f32.mxu0 0.0
        %717 = vmatmul.mubr.f32.gmra.mrb[0].mxu0 %v650
        %v718 = vpop.f32.mrb[0].mxu0
        %v719 = vadd.f32 0.0, %v718
        %v720 = vpop.f32.mrb[0].mxu0
        %721 = vdwg.mxu0
        %722 = vst.msk [vmem:[#allocation4] sm:$0xff] %vm560, %v719
        %v723 = vld [vmem:[#allocation3] sm:$0xff]
        %725 = vrot.lane.b32.xlu0 %v723, 120
        %v726 = vpop.permute.xlu0 %725
        %727 = vrot.lane.b32.xlu0 %v723, 88
        %v728 = vpop.permute.xlu0 %727
        %v729 = vsel %vm560, %v726, 0
        %v731 = vsel %vm560, %v728, 0
        %733 = vmatprep.subr.mxu0 0.0
        %734 = vmatpush1.xpose.msra.mxu0 %v731
        %735 = vmatprep.subr.mxu0 0.0
        %736 = vmatpush1.xpose.msra.mxu0 0.0
        %737 = vmatprep.subr.mxu0 0.0
        %738 = vmatpush1.xpose.msra.mxu0 0.0
        %739 = vmatprep.subr.mxu0 0.0
        %740 = vmatpush1.xpose.msra.mxu0 0.0
        %741 = vmatprep.subr.mxu0 0.0
        %742 = vmatpush1.xpose.msra.mxu0 0.0
        %743 = vmatprep.subr.mxu0 0.0
        %744 = vmatpush1.xpose.msra.mxu0 0.0
        %745 = vmatprep.subr.mxu0 0.0
        %746 = vmatpush1.xpose.msra.mxu0 0.0
        %747 = vmatprep.subr.mxu0 0.0
        %748 = vmatpush1.xpose.msra.mxu0 0.0
        %749 = vmatprep.subr.mxu0 0.0
        %750 = vmatpush1.xpose.msra.mxu0 0.0
        %751 = vmatprep.subr.mxu0 0.0
        %752 = vmatpush1.xpose.msra.mxu0 0.0
        %753 = vmatprep.subr.mxu0 0.0
        %754 = vmatpush1.xpose.msra.mxu0 0.0
        %755 = vmatprep.subr.mxu0 0.0
        %756 = vmatpush1.xpose.msra.mxu0 0.0
        %757 = vmatprep.subr.mxu0 0.0
        %758 = vmatpush1.xpose.msra.mxu0 0.0
        %759 = vmatprep.subr.mxu0 0.0
        %760 = vmatpush1.xpose.msra.mxu0 0.0
        %761 = vmatprep.subr.mxu0 0.0
        %762 = vmatpush1.xpose.msra.mxu0 0.0
        %763 = vmatprep.subr.mxu0 0.0
        %764 = vmatpush1.xpose.msra.mxu0 0.0
        %765 = vmatprep.subr.mxu0 0.0
        %766 = vmatpush1.xpose.msra.mxu0 0.0
        %767 = vmatprep.subr.mxu0 0.0
        %768 = vmatpush1.xpose.msra.mxu0 0.0
        %769 = vmatprep.subr.mxu0 0.0
        %770 = vmatpush1.xpose.msra.mxu0 0.0
        %771 = vmatprep.subr.mxu0 0.0
        %772 = vmatpush1.xpose.msra.mxu0 0.0
        %773 = vmatprep.subr.mxu0 0.0
        %774 = vmatpush1.xpose.msra.mxu0 0.0
        %775 = vmatprep.subr.mxu0 0.0
        %776 = vmatpush1.xpose.msra.mxu0 0.0
        %777 = vmatprep.subr.mxu0 0.0
        %778 = vmatpush1.xpose.msra.mxu0 0.0
        %779 = vmatprep.subr.mxu0 0.0
        %780 = vmatpush1.xpose.msra.mxu0 0.0
        %781 = vmatprep.subr.mxu0 0.0
        %782 = vmatpush1.xpose.msra.mxu0 0.0
        %783 = vmatprep.subr.mxu0 0.0
        %784 = vmatpush1.xpose.msra.mxu0 0.0
        %785 = vmatprep.subr.mxu0 0.0
        %786 = vmatpush1.xpose.msra.mxu0 0.0
        %787 = vmatprep.subr.mxu0 0.0
        %788 = vmatpush1.xpose.msra.mxu0 0.0
        %789 = vmatprep.subr.mxu0 0.0
        %790 = vmatpush1.xpose.msra.mxu0 0.0
        %791 = vmatprep.subr.mxu0 0.0
        %792 = vmatpush1.xpose.msra.mxu0 0.0
        %793 = vmatprep.subr.mxu0 0.0
        %794 = vmatpush1.xpose.msra.mxu0 0.0
        %795 = vmatprep.subr.mxu0 0.0
        %796 = vmatpush1.xpose.msra.mxu0 0.0
        %797 = vmatprep.mubr.f32.mxu0 0.0
        %798 = vmatmul.mubr.f32.gmra.mrb[0].mxu0 %v729
        %v799 = vpop.f32.mrb[0].mxu0
        %v800 = vadd.f32 0.0, %v799
        %v801 = vpop.f32.mrb[0].mxu0
        %802 = vdwg.mxu0
        %v803 = vsel %vm560, %v800, -inf
        %804 = vmax.xlane.f32.xlu0 %v803
        %v805 = vpop.xlane.xlu0 %804
        %v806 = vsub.f32 %v800, %v805
        %v807 = vmul.f32 %v806, 1.442695
        %v808 = vpow.pop %v807
        %v809 = vsel %vm560, %v808, 0.0
        %810 = vadd.xlane.f32.xlu0 %v809
        %v811 = vpop.xlane.xlu0 %810
        %v812 = vrcp.pop %v811
        %v813 = vmul.f32 %v808, %v812
        %814 = vrot.lane.b32.xlu0 %v723, 56
        %v815 = vpop.permute.xlu0 %814
        %v818 = vsel %vm560, %v813, 0
        %820 = vmatprep.subr.mxu0 0.0
        %821 = vmatpush1.msra.mxu0 %v815
        %822 = vmatprep.subr.mxu0 0.0
        %823 = vmatpush1.msra.mxu0 0.0
        %824 = vmatprep.subr.mxu0 0.0
        %825 = vmatpush1.msra.mxu0 0.0
        %826 = vmatprep.subr.mxu0 0.0
        %827 = vmatpush1.msra.mxu0 0.0
        %828 = vmatprep.subr.mxu0 0.0
        %829 = vmatpush1.msra.mxu0 0.0
        %830 = vmatprep.subr.mxu0 0.0
        %831 = vmatpush1.msra.mxu0 0.0
        %832 = vmatprep.subr.mxu0 0.0
        %833 = vmatpush1.msra.mxu0 0.0
        %834 = vmatprep.subr.mxu0 0.0
        %835 = vmatpush1.msra.mxu0 0.0
        %836 = vmatprep.subr.mxu0 0.0
        %837 = vmatpush1.msra.mxu0 0.0
        %838 = vmatprep.subr.mxu0 0.0
        %839 = vmatpush1.msra.mxu0 0.0
        %840 = vmatprep.subr.mxu0 0.0
        %841 = vmatpush1.msra.mxu0 0.0
        %842 = vmatprep.subr.mxu0 0.0
        %843 = vmatpush1.msra.mxu0 0.0
        %844 = vmatprep.subr.mxu0 0.0
        %845 = vmatpush1.msra.mxu0 0.0
        %846 = vmatprep.subr.mxu0 0.0
        %847 = vmatpush1.msra.mxu0 0.0
        %848 = vmatprep.subr.mxu0 0.0
        %849 = vmatpush1.msra.mxu0 0.0
        %850 = vmatprep.subr.mxu0 0.0
        %851 = vmatpush1.msra.mxu0 0.0
        %852 = vmatprep.subr.mxu0 0.0
        %853 = vmatpush1.msra.mxu0 0.0
        %854 = vmatprep.subr.mxu0 0.0
        %855 = vmatpush1.msra.mxu0 0.0
        %856 = vmatprep.subr.mxu0 0.0
        %857 = vmatpush1.msra.mxu0 0.0
        %858 = vmatprep.subr.mxu0 0.0
        %859 = vmatpush1.msra.mxu0 0.0
        %860 = vmatprep.subr.mxu0 0.0
        %861 = vmatpush1.msra.mxu0 0.0
        %862 = vmatprep.subr.mxu0 0.0
        %863 = vmatpush1.msra.mxu0 0.0
        %864 = vmatprep.subr.mxu0 0.0
        %865 = vmatpush1.msra.mxu0 0.0
        %866 = vmatprep.subr.mxu0 0.0
        %867 = vmatpush1.msra.mxu0 0.0
        %868 = vmatprep.subr.mxu0 0.0
        %869 = vmatpush1.msra.mxu0 0.0
        %870 = vmatprep.subr.mxu0 0.0
        %871 = vmatpush1.msra.mxu0 0.0
        %872 = vmatprep.subr.mxu0 0.0
        %873 = vmatpush1.msra.mxu0 0.0
        %874 = vmatprep.subr.mxu0 0.0
        %875 = vmatpush1.msra.mxu0 0.0
        %876 = vmatprep.subr.mxu0 0.0
        %877 = vmatpush1.msra.mxu0 0.0
        %878 = vmatprep.subr.mxu0 0.0
        %879 = vmatpush1.msra.mxu0 0.0
        %880 = vmatprep.subr.mxu0 0.0
        %881 = vmatpush1.msra.mxu0 0.0
        %882 = vmatprep.subr.mxu0 0.0
        %883 = vmatpush1.msra.mxu0 0.0
        %884 = vmatprep.mubr.f32.mxu0 0.0
        %885 = vmatmul.mubr.f32.gmra.mrb[0].mxu0 %v818
        %v886 = vpop.f32.mrb[0].mxu0
        %v887 = vadd.f32 0.0, %v886
        %v888 = vpop.f32.mrb[0].mxu0
        %889 = vdwg.mxu0
        %891 = vrot.lane.b32.xlu0 %v887, 8
        %v892 = vpop.permute.xlu0 %891
        %vm894 = vcmask 130112
        %895 = vst.msk [vmem:[#allocation4] sm:$0xff] %vm894, %v892
        %v896 = vld [vmem:[#allocation3] sm:$0xff]
        %898 = vrot.lane.b32.xlu0 %v896, 112
        %v899 = vpop.permute.xlu0 %898
        %900 = vrot.lane.b32.xlu0 %v896, 80
        %v901 = vpop.permute.xlu0 %900
        %v902 = vsel %vm560, %v899, 0
        %v904 = vsel %vm560, %v901, 0
        %906 = vmatprep.subr.mxu0 0.0
        %907 = vmatpush1.xpose.msra.mxu0 %v904
        %908 = vmatprep.subr.mxu0 0.0
        %909 = vmatpush1.xpose.msra.mxu0 0.0
        %910 = vmatprep.subr.mxu0 0.0
        %911 = vmatpush1.xpose.msra.mxu0 0.0
        %912 = vmatprep.subr.mxu0 0.0
        %913 = vmatpush1.xpose.msra.mxu0 0.0
        %914 = vmatprep.subr.mxu0 0.0
        %915 = vmatpush1.xpose.msra.mxu0 0.0
        %916 = vmatprep.subr.mxu0 0.0
        %917 = vmatpush1.xpose.msra.mxu0 0.0
        %918 = vmatprep.subr.mxu0 0.0
        %919 = vmatpush1.xpose.msra.mxu0 0.0
        %920 = vmatprep.subr.mxu0 0.0
        %921 = vmatpush1.xpose.msra.mxu0 0.0
        %922 = vmatprep.subr.mxu0 0.0
        %923 = vmatpush1.xpose.msra.mxu0 0.0
        %924 = vmatprep.subr.mxu0 0.0
        %925 = vmatpush1.xpose.msra.mxu0 0.0
        %926 = vmatprep.subr.mxu0 0.0
        %927 = vmatpush1.xpose.msra.mxu0 0.0
        %928 = vmatprep.subr.mxu0 0.0
        %929 = vmatpush1.xpose.msra.mxu0 0.0
        %930 = vmatprep.subr.mxu0 0.0
        %931 = vmatpush1.xpose.msra.mxu0 0.0
        %932 = vmatprep.subr.mxu0 0.0
        %933 = vmatpush1.xpose.msra.mxu0 0.0
        %934 = vmatprep.subr.mxu0 0.0
        %935 = vmatpush1.xpose.msra.mxu0 0.0
        %936 = vmatprep.subr.mxu0 0.0
        %937 = vmatpush1.xpose.msra.mxu0 0.0
        %938 = vmatprep.subr.mxu0 0.0
        %939 = vmatpush1.xpose.msra.mxu0 0.0
        %940 = vmatprep.subr.mxu0 0.0
        %941 = vmatpush1.xpose.msra.mxu0 0.0
        %942 = vmatprep.subr.mxu0 0.0
        %943 = vmatpush1.xpose.msra.mxu0 0.0
        %944 = vmatprep.subr.mxu0 0.0
        %945 = vmatpush1.xpose.msra.mxu0 0.0
        %946 = vmatprep.subr.mxu0 0.0
        %947 = vmatpush1.xpose.msra.mxu0 0.0
        %948 = vmatprep.subr.mxu0 0.0
        %949 = vmatpush1.xpose.msra.mxu0 0.0
        %950 = vmatprep.subr.mxu0 0.0
        %951 = vmatpush1.xpose.msra.mxu0 0.0
        %952 = vmatprep.subr.mxu0 0.0
        %953 = vmatpush1.xpose.msra.mxu0 0.0
        %954 = vmatprep.subr.mxu0 0.0
        %955 = vmatpush1.xpose.msra.mxu0 0.0
        %956 = vmatprep.subr.mxu0 0.0
        %957 = vmatpush1.xpose.msra.mxu0 0.0
        %958 = vmatprep.subr.mxu0 0.0
        %959 = vmatpush1.xpose.msra.mxu0 0.0
        %960 = vmatprep.subr.mxu0 0.0
        %961 = vmatpush1.xpose.msra.mxu0 0.0
        %962 = vmatprep.subr.mxu0 0.0
        %963 = vmatpush1.xpose.msra.mxu0 0.0
        %964 = vmatprep.subr.mxu0 0.0
        %965 = vmatpush1.xpose.msra.mxu0 0.0
        %966 = vmatprep.subr.mxu0 0.0
        %967 = vmatpush1.xpose.msra.mxu0 0.0
        %968 = vmatprep.subr.mxu0 0.0
        %969 = vmatpush1.xpose.msra.mxu0 0.0
        %970 = vmatprep.mubr.f32.mxu0 0.0
        %971 = vmatmul.mubr.f32.gmra.mrb[0].mxu0 %v902
        %v972 = vpop.f32.mrb[0].mxu0
        %v973 = vadd.f32 0.0, %v972
        %v974 = vpop.f32.mrb[0].mxu0
        %975 = vdwg.mxu0
        %v976 = vsel %vm560, %v973, -inf
        %977 = vmax.xlane.f32.xlu0 %v976
        %v978 = vpop.xlane.xlu0 %977
        %v979 = vsub.f32 %v973, %v978
        %v980 = vmul.f32 %v979, 1.442695
        %v981 = vpow.pop %v980
        %v982 = vsel %vm560, %v981, 0.0
        %983 = vadd.xlane.f32.xlu0 %v982
        %v984 = vpop.xlane.xlu0 %983
        %v985 = vrcp.pop %v984
        %v986 = vmul.f32 %v981, %v985
        %987 = vrot.lane.b32.xlu0 %v896, 48
        %v988 = vpop.permute.xlu0 %987
        %v991 = vsel %vm560, %v986, 0
        %993 = vmatprep.subr.mxu0 0.0
        %994 = vmatpush1.msra.mxu0 %v988
        %995 = vmatprep.subr.mxu0 0.0
        %996 = vmatpush1.msra.mxu0 0.0
        %997 = vmatprep.subr.mxu0 0.0
        %998 = vmatpush1.msra.mxu0 0.0
        %999 = vmatprep.subr.mxu0 0.0
        %1000 = vmatpush1.msra.mxu0 0.0
        %1001 = vmatprep.subr.mxu0 0.0
        %1002 = vmatpush1.msra.mxu0 0.0
        %1003 = vmatprep.subr.mxu0 0.0
        %1004 = vmatpush1.msra.mxu0 0.0
        %1005 = vmatprep.subr.mxu0 0.0
        %1006 = vmatpush1.msra.mxu0 0.0
        %1007 = vmatprep.subr.mxu0 0.0
        %1008 = vmatpush1.msra.mxu0 0.0
        %1009 = vmatprep.subr.mxu0 0.0
        %1010 = vmatpush1.msra.mxu0 0.0
        %1011 = vmatprep.subr.mxu0 0.0
        %1012 = vmatpush1.msra.mxu0 0.0
        %1013 = vmatprep.subr.mxu0 0.0
        %1014 = vmatpush1.msra.mxu0 0.0
        %1015 = vmatprep.subr.mxu0 0.0
        %1016 = vmatpush1.msra.mxu0 0.0
        %1017 = vmatprep.subr.mxu0 0.0
        %1018 = vmatpush1.msra.mxu0 0.0
        %1019 = vmatprep.subr.mxu0 0.0
        %1020 = vmatpush1.msra.mxu0 0.0
        %1021 = vmatprep.subr.mxu0 0.0
        %1022 = vmatpush1.msra.mxu0 0.0
        %1023 = vmatprep.subr.mxu0 0.0
        %1024 = vmatpush1.msra.mxu0 0.0
        %1025 = vmatprep.subr.mxu0 0.0
        %1026 = vmatpush1.msra.mxu0 0.0
        %1027 = vmatprep.subr.mxu0 0.0
        %1028 = vmatpush1.msra.mxu0 0.0
        %1029 = vmatprep.subr.mxu0 0.0
        %1030 = vmatpush1.msra.mxu0 0.0
        %1031 = vmatprep.subr.mxu0 0.0
        %1032 = vmatpush1.msra.mxu0 0.0
        %1033 = vmatprep.subr.mxu0 0.0
        %1034 = vmatpush1.msra.mxu0 0.0
        %1035 = vmatprep.subr.mxu0 0.0
        %1036 = vmatpush1.msra.mxu0 0.0
        %1037 = vmatprep.subr.mxu0 0.0
        %1038 = vmatpush1.msra.mxu0 0.0
        %1039 = vmatprep.subr.mxu0 0.0
        %1040 = vmatpush1.msra.mxu0 0.0
        %1041 = vmatprep.subr.mxu0 0.0
        %1042 = vmatpush1.msra.mxu0 0.0
        %1043 = vmatprep.subr.mxu0 0.0
        %1044 = vmatpush1.msra.mxu0 0.0
        %1045 = vmatprep.subr.mxu0 0.0
        %1046 = vmatpush1.msra.mxu0 0.0
        %1047 = vmatprep.subr.mxu0 0.0
        %1048 = vmatpush1.msra.mxu0 0.0
        %1049 = vmatprep.subr.mxu0 0.0
        %1050 = vmatpush1.msra.mxu0 0.0
        %1051 = vmatprep.subr.mxu0 0.0
        %1052 = vmatpush1.msra.mxu0 0.0
        %1053 = vmatprep.subr.mxu0 0.0
        %1054 = vmatpush1.msra.mxu0 0.0
        %1055 = vmatprep.subr.mxu0 0.0
        %1056 = vmatpush1.msra.mxu0 0.0
        %1057 = vmatprep.mubr.f32.mxu0 0.0
        %1058 = vmatmul.mubr.f32.gmra.mrb[0].mxu0 %v991
        %v1059 = vpop.f32.mrb[0].mxu0
        %v1060 = vadd.f32 0.0, %v1059
        %v1061 = vpop.f32.mrb[0].mxu0
        %1062 = vdwg.mxu0
        %1064 = vrot.lane.b32.xlu0 %v1060, 16
        %v1065 = vpop.permute.xlu0 %1064
        %vm1067 = vcmask 195712
        %1068 = vst.msk [vmem:[#allocation4] sm:$0xff] %vm1067, %v1065
        %v1069 = vld [vmem:[#allocation3] sm:$0xff]
        %1071 = vrot.lane.b32.xlu0 %v1069, 104
        %v1072 = vpop.permute.xlu0 %1071
        %1073 = vrot.lane.b32.xlu0 %v1069, 72
        %v1074 = vpop.permute.xlu0 %1073
        %v1075 = vsel %vm560, %v1072, 0
        %v1077 = vsel %vm560, %v1074, 0
        %1079 = vmatprep.subr.mxu0 0.0
        %1080 = vmatpush1.xpose.msra.mxu0 %v1077
        %1081 = vmatprep.subr.mxu0 0.0
        %1082 = vmatpush1.xpose.msra.mxu0 0.0
        %1083 = vmatprep.subr.mxu0 0.0
        %1084 = vmatpush1.xpose.msra.mxu0 0.0
        %1085 = vmatprep.subr.mxu0 0.0
        %1086 = vmatpush1.xpose.msra.mxu0 0.0
        %1087 = vmatprep.subr.mxu0 0.0
        %1088 = vmatpush1.xpose.msra.mxu0 0.0
        %1089 = vmatprep.subr.mxu0 0.0
        %1090 = vmatpush1.xpose.msra.mxu0 0.0
        %1091 = vmatprep.subr.mxu0 0.0
        %1092 = vmatpush1.xpose.msra.mxu0 0.0
        %1093 = vmatprep.subr.mxu0 0.0
        %1094 = vmatpush1.xpose.msra.mxu0 0.0
        %1095 = vmatprep.subr.mxu0 0.0
        %1096 = vmatpush1.xpose.msra.mxu0 0.0
        %1097 = vmatprep.subr.mxu0 0.0
        %1098 = vmatpush1.xpose.msra.mxu0 0.0
        %1099 = vmatprep.subr.mxu0 0.0
        %1100 = vmatpush1.xpose.msra.mxu0 0.0
        %1101 = vmatprep.subr.mxu0 0.0
        %1102 = vmatpush1.xpose.msra.mxu0 0.0
        %1103 = vmatprep.subr.mxu0 0.0
        %1104 = vmatpush1.xpose.msra.mxu0 0.0
        %1105 = vmatprep.subr.mxu0 0.0
        %1106 = vmatpush1.xpose.msra.mxu0 0.0
        %1107 = vmatprep.subr.mxu0 0.0
        %1108 = vmatpush1.xpose.msra.mxu0 0.0
        %1109 = vmatprep.subr.mxu0 0.0
        %1110 = vmatpush1.xpose.msra.mxu0 0.0
        %1111 = vmatprep.subr.mxu0 0.0
        %1112 = vmatpush1.xpose.msra.mxu0 0.0
        %1113 = vmatprep.subr.mxu0 0.0
        %1114 = vmatpush1.xpose.msra.mxu0 0.0
        %1115 = vmatprep.subr.mxu0 0.0
        %1116 = vmatpush1.xpose.msra.mxu0 0.0
        %1117 = vmatprep.subr.mxu0 0.0
        %1118 = vmatpush1.xpose.msra.mxu0 0.0
        %1119 = vmatprep.subr.mxu0 0.0
        %1120 = vmatpush1.xpose.msra.mxu0 0.0
        %1121 = vmatprep.subr.mxu0 0.0
        %1122 = vmatpush1.xpose.msra.mxu0 0.0
        %1123 = vmatprep.subr.mxu0 0.0
        %1124 = vmatpush1.xpose.msra.mxu0 0.0
        %1125 = vmatprep.subr.mxu0 0.0
        %1126 = vmatpush1.xpose.msra.mxu0 0.0
        %1127 = vmatprep.subr.mxu0 0.0
        %1128 = vmatpush1.xpose.msra.mxu0 0.0
        %1129 = vmatprep.subr.mxu0 0.0
        %1130 = vmatpush1.xpose.msra.mxu0 0.0
        %1131 = vmatprep.subr.mxu0 0.0
        %1132 = vmatpush1.xpose.msra.mxu0 0.0
        %1133 = vmatprep.subr.mxu0 0.0
        %1134 = vmatpush1.xpose.msra.mxu0 0.0
        %1135 = vmatprep.subr.mxu0 0.0
        %1136 = vmatpush1.xpose.msra.mxu0 0.0
        %1137 = vmatprep.subr.mxu0 0.0
        %1138 = vmatpush1.xpose.msra.mxu0 0.0
        %1139 = vmatprep.subr.mxu0 0.0
        %1140 = vmatpush1.xpose.msra.mxu0 0.0
        %1141 = vmatprep.subr.mxu0 0.0
        %1142 = vmatpush1.xpose.msra.mxu0 0.0
        %1143 = vmatprep.mubr.f32.mxu0 0.0
        %1144 = vmatmul.mubr.f32.gmra.mrb[0].mxu0 %v1075
        %v1145 = vpop.f32.mrb[0].mxu0
        %v1146 = vadd.f32 0.0, %v1145
        %v1147 = vpop.f32.mrb[0].mxu0
        %1148 = vdwg.mxu0
        %v1149 = vsel %vm560, %v1146, -inf
        %1150 = vmax.xlane.f32.xlu0 %v1149
        %v1151 = vpop.xlane.xlu0 %1150
        %v1152 = vsub.f32 %v1146, %v1151
        %v1153 = vmul.f32 %v1152, 1.442695
        %v1154 = vpow.pop %v1153
        %v1155 = vsel %vm560, %v1154, 0.0
        %1156 = vadd.xlane.f32.xlu0 %v1155
        %v1157 = vpop.xlane.xlu0 %1156
        %v1158 = vrcp.pop %v1157
        %v1159 = vmul.f32 %v1154, %v1158
        %1160 = vrot.lane.b32.xlu0 %v1069, 40
        %v1161 = vpop.permute.xlu0 %1160
        %v1164 = vsel %vm560, %v1159, 0
        %1166 = vmatprep.subr.mxu0 0.0
        %1167 = vmatpush1.msra.mxu0 %v1161
        %1168 = vmatprep.subr.mxu0 0.0
        %1169 = vmatpush1.msra.mxu0 0.0
        %1170 = vmatprep.subr.mxu0 0.0
        %1171 = vmatpush1.msra.mxu0 0.0
        %1172 = vmatprep.subr.mxu0 0.0
        %1173 = vmatpush1.msra.mxu0 0.0
        %1174 = vmatprep.subr.mxu0 0.0
        %1175 = vmatpush1.msra.mxu0 0.0
        %1176 = vmatprep.subr.mxu0 0.0
        %1177 = vmatpush1.msra.mxu0 0.0
        %1178 = vmatprep.subr.mxu0 0.0
        %1179 = vmatpush1.msra.mxu0 0.0
        %1180 = vmatprep.subr.mxu0 0.0
        %1181 = vmatpush1.msra.mxu0 0.0
        %1182 = vmatprep.subr.mxu0 0.0
        %1183 = vmatpush1.msra.mxu0 0.0
        %1184 = vmatprep.subr.mxu0 0.0
        %1185 = vmatpush1.msra.mxu0 0.0
        %1186 = vmatprep.subr.mxu0 0.0
        %1187 = vmatpush1.msra.mxu0 0.0
        %1188 = vmatprep.subr.mxu0 0.0
        %1189 = vmatpush1.msra.mxu0 0.0
        %1190 = vmatprep.subr.mxu0 0.0
        %1191 = vmatpush1.msra.mxu0 0.0
        %1192 = vmatprep.subr.mxu0 0.0
        %1193 = vmatpush1.msra.mxu0 0.0
        %1194 = vmatprep.subr.mxu0 0.0
        %1195 = vmatpush1.msra.mxu0 0.0
        %1196 = vmatprep.subr.mxu0 0.0
        %1197 = vmatpush1.msra.mxu0 0.0
        %1198 = vmatprep.subr.mxu0 0.0
        %1199 = vmatpush1.msra.mxu0 0.0
        %1200 = vmatprep.subr.mxu0 0.0
        %1201 = vmatpush1.msra.mxu0 0.0
        %1202 = vmatprep.subr.mxu0 0.0
        %1203 = vmatpush1.msra.mxu0 0.0
        %1204 = vmatprep.subr.mxu0 0.0
        %1205 = vmatpush1.msra.mxu0 0.0
        %1206 = vmatprep.subr.mxu0 0.0
        %1207 = vmatpush1.msra.mxu0 0.0
        %1208 = vmatprep.subr.mxu0 0.0
        %1209 = vmatpush1.msra.mxu0 0.0
        %1210 = vmatprep.subr.mxu0 0.0
        %1211 = vmatpush1.msra.mxu0 0.0
        %1212 = vmatprep.subr.mxu0 0.0
        %1213 = vmatpush1.msra.mxu0 0.0
        %1214 = vmatprep.subr.mxu0 0.0
        %1215 = vmatpush1.msra.mxu0 0.0
        %1216 = vmatprep.subr.mxu0 0.0
        %1217 = vmatpush1.msra.mxu0 0.0
        %1218 = vmatprep.subr.mxu0 0.0
        %1219 = vmatpush1.msra.mxu0 0.0
        %1220 = vmatprep.subr.mxu0 0.0
        %1221 = vmatpush1.msra.mxu0 0.0
        %1222 = vmatprep.subr.mxu0 0.0
        %1223 = vmatpush1.msra.mxu0 0.0
        %1224 = vmatprep.subr.mxu0 0.0
        %1225 = vmatpush1.msra.mxu0 0.0
        %1226 = vmatprep.subr.mxu0 0.0
        %1227 = vmatpush1.msra.mxu0 0.0
        %1228 = vmatprep.subr.mxu0 0.0
        %1229 = vmatpush1.msra.mxu0 0.0
        %1230 = vmatprep.mubr.f32.mxu0 0.0
        %1231 = vmatmul.mubr.f32.gmra.mrb[0].mxu0 %v1164
        %v1232 = vpop.f32.mrb[0].mxu0
        %v1233 = vadd.f32 0.0, %v1232
        %v1234 = vpop.f32.mrb[0].mxu0
        %1235 = vdwg.mxu0
        %1237 = vrot.lane.b32.xlu0 %v1233, 24
        %v1238 = vpop.permute.xlu0 %1237
        %vm1240 = vcmask 261312
        %1241 = vst.msk [vmem:[#allocation4] sm:$0xff] %vm1240, %v1238
        %v1242 = vld [vmem:[#allocation4] sm:$0xff]
        %v1243 = vld [vmem:[%s5] sm:$0xff]
        %v1244 = vld [vmem:[%s5 + $0x8] sm:$0xff]
        %v1245 = vld [vmem:[%s5 + $0x10] sm:$0xff]
        %v1246 = vld [vmem:[%s5 + $0x18] sm:$0xff]
        %v1248 = vsel %vm439, %v1242, 0
        %1250 = vmatprep.subr.mxu0 0.0
        %1251 = vmatpush1.msra.mxu0 %v1243
        %1252 = vmatprep.subr.mxu0 0.0
        %1253 = vmatpush1.msra.mxu0 %v1244
        %1254 = vmatprep.subr.mxu0 0.0
        %1255 = vmatpush1.msra.mxu0 %v1245
        %1256 = vmatprep.subr.mxu0 0.0
        %1257 = vmatpush1.msra.mxu0 %v1246
        %1258 = vmatprep.subr.mxu0 0.0
        %1259 = vmatpush1.msra.mxu0 0.0
        %1260 = vmatprep.subr.mxu0 0.0
        %1261 = vmatpush1.msra.mxu0 0.0
        %1262 = vmatprep.subr.mxu0 0.0
        %1263 = vmatpush1.msra.mxu0 0.0
        %1264 = vmatprep.subr.mxu0 0.0
        %1265 = vmatpush1.msra.mxu0 0.0
        %1266 = vmatprep.subr.mxu0 0.0
        %1267 = vmatpush1.msra.mxu0 0.0
        %1268 = vmatprep.subr.mxu0 0.0
        %1269 = vmatpush1.msra.mxu0 0.0
        %1270 = vmatprep.subr.mxu0 0.0
        %1271 = vmatpush1.msra.mxu0 0.0
        %1272 = vmatprep.subr.mxu0 0.0
        %1273 = vmatpush1.msra.mxu0 0.0
        %1274 = vmatprep.subr.mxu0 0.0
        %1275 = vmatpush1.msra.mxu0 0.0
        %1276 = vmatprep.subr.mxu0 0.0
        %1277 = vmatpush1.msra.mxu0 0.0
        %1278 = vmatprep.subr.mxu0 0.0
        %1279 = vmatpush1.msra.mxu0 0.0
        %1280 = vmatprep.subr.mxu0 0.0
        %1281 = vmatpush1.msra.mxu0 0.0
        %1282 = vmatprep.subr.mxu0 0.0
        %1283 = vmatpush1.msra.mxu0 0.0
        %1284 = vmatprep.subr.mxu0 0.0
        %1285 = vmatpush1.msra.mxu0 0.0
        %1286 = vmatprep.subr.mxu0 0.0
        %1287 = vmatpush1.msra.mxu0 0.0
        %1288 = vmatprep.subr.mxu0 0.0
        %1289 = vmatpush1.msra.mxu0 0.0
        %1290 = vmatprep.subr.mxu0 0.0
        %1291 = vmatpush1.msra.mxu0 0.0
        %1292 = vmatprep.subr.mxu0 0.0
        %1293 = vmatpush1.msra.mxu0 0.0
        %1294 = vmatprep.subr.mxu0 0.0
        %1295 = vmatpush1.msra.mxu0 0.0
        %1296 = vmatprep.subr.mxu0 0.0
        %1297 = vmatpush1.msra.mxu0 0.0
        %1298 = vmatprep.subr.mxu0 0.0
        %1299 = vmatpush1.msra.mxu0 0.0
        %1300 = vmatprep.subr.mxu0 0.0
        %1301 = vmatpush1.msra.mxu0 0.0
        %1302 = vmatprep.subr.mxu0 0.0
        %1303 = vmatpush1.msra.mxu0 0.0
        %1304 = vmatprep.subr.mxu0 0.0
        %1305 = vmatpush1.msra.mxu0 0.0
        %1306 = vmatprep.subr.mxu0 0.0
        %1307 = vmatpush1.msra.mxu0 0.0
        %1308 = vmatprep.subr.mxu0 0.0
        %1309 = vmatpush1.msra.mxu0 0.0
        %1310 = vmatprep.subr.mxu0 0.0
        %1311 = vmatpush1.msra.mxu0 0.0
        %1312 = vmatprep.subr.mxu0 0.0
        %1313 = vmatpush1.msra.mxu0 0.0
        %1314 = vmatprep.mubr.f32.mxu0 0.0
        %1315 = vmatmul.mubr.f32.gmra.mrb[0].mxu0 %v1248
        %v1316 = vpop.f32.mrb[0].mxu0
        %v1317 = vadd.f32 0.0, %v1316
        %v1318 = vpop.f32.mrb[0].mxu0
        %1319 = vdwg.mxu0
        %v1320 = vld [vmem:[%s435] sm:$0xff]
        %v1321 = vadd.f32 %v1320, %v1317
        %v1322 = vld [vmem:[%s6] sm:$0x1]
        %v1324 = vlaneseq
        %v1325 = vshrl.u32 %v1324, 7
        %v1326 = vsub.s32 0, %v1325
        %v1327 = vrot.slane %v1322, %v1326
        %v1329 = vadd.f32 %v1321, %v1327
        %1330 = vst.msk [vmem:[#allocation5] sm:$0xff] %vm439, %v1329
        %v1331 = vld [vmem:[#allocation5] sm:$0xff]
        %v1332 = vld [vmem:[%s7] sm:$0x1]
        %v1333 = vld [vmem:[%s8] sm:$0x1]
        %v1334 = vsel %vm439, %v1331, 0.0
        %1335 = vadd.xlane.f32.xlu0 %v1334
        %v1336 = vpop.xlane.xlu0 %1335
        %v1337 = vmul.f32 %v1336, %v443
        %v1338 = vsub.f32 %v1331, %v1337
        %v1339 = vmul.f32 %v1338, %v1338
        %v1340 = vsel %vm439, %v1339, 0.0
        %1341 = vadd.xlane.f32.xlu0 %v1340
        %v1342 = vpop.xlane.xlu0 %1341
        %v1343 = vmul.f32 %v1342, %v443
        %v1344 = vadd.f32 %v1343, 1e-05
        %v1345 = vrsqrt.pop %v1344
        %v1346 = vmul.f32 %v1338, %v1345
        %v1348 = vlaneseq
        %v1349 = vshrl.u32 %v1348, 7
        %v1350 = vsub.s32 0, %v1349
        %v1351 = vrot.slane %v1332, %v1350
        %v1353 = vmul.f32 %v1346, %v1351
        %v1355 = vlaneseq
        %v1356 = vshrl.u32 %v1355, 7
        %v1357 = vsub.s32 0, %v1356
        %v1358 = vrot.slane %v1333, %v1357
        %v1360 = vadd.f32 %v1353, %v1358
        %1361 = vst.msk [vmem:[#allocation2] sm:$0xff] %vm439, %v1360
        %v1362 = vld [vmem:[#allocation2] sm:$0xff]
        %v1363 = vld [vmem:[%s9] sm:$0xff]
        %v1364 = vld [vmem:[%s9 + $0x8] sm:$0xff]
        %v1365 = vld [vmem:[%s9 + $0x10] sm:$0xff]
        %v1366 = vld [vmem:[%s9 + $0x18] sm:$0xff]
        %v1367 = vld [vmem:[%s10] sm:$0x1]
        %v1369 = vlaneseq
        %v1370 = vshrl.u32 %v1369, 7
        %v1371 = vsub.s32 0, %v1370
        %v1372 = vrot.slane %v1367, %v1371
        %v1375 = vsel %vm439, %v1362, 0
        %1377 = vmatprep.subr.mxu0 0.0
        %1378 = vmatpush1.msra.mxu0 %v1363
        %1379 = vmatprep.subr.mxu0 0.0
        %1380 = vmatpush1.msra.mxu0 %v1364
        %1381 = vmatprep.subr.mxu0 0.0
        %1382 = vmatpush1.msra.mxu0 %v1365
        %1383 = vmatprep.subr.mxu0 0.0
        %1384 = vmatpush1.msra.mxu0 %v1366
        %1385 = vmatprep.subr.mxu0 0.0
        %1386 = vmatpush1.msra.mxu0 0.0
        %1387 = vmatprep.subr.mxu0 0.0
        %1388 = vmatpush1.msra.mxu0 0.0
        %1389 = vmatprep.subr.mxu0 0.0
        %1390 = vmatpush1.msra.mxu0 0.0
        %1391 = vmatprep.subr.mxu0 0.0
        %1392 = vmatpush1.msra.mxu0 0.0
        %1393 = vmatprep.subr.mxu0 0.0
        %1394 = vmatpush1.msra.mxu0 0.0
        %1395 = vmatprep.subr.mxu0 0.0
        %1396 = vmatpush1.msra.mxu0 0.0
        %1397 = vmatprep.subr.mxu0 0.0
        %1398 = vmatpush1.msra.mxu0 0.0
        %1399 = vmatprep.subr.mxu0 0.0
        %1400 = vmatpush1.msra.mxu0 0.0
        %1401 = vmatprep.subr.mxu0 0.0
        %1402 = vmatpush1.msra.mxu0 0.0
        %1403 = vmatprep.subr.mxu0 0.0
        %1404 = vmatpush1.msra.mxu0 0.0
        %1405 = vmatprep.subr.mxu0 0.0
        %1406 = vmatpush1.msra.mxu0 0.0
        %1407 = vmatprep.subr.mxu0 0.0
        %1408 = vmatpush1.msra.mxu0 0.0
        %1409 = vmatprep.subr.mxu0 0.0
        %1410 = vmatpush1.msra.mxu0 0.0
        %1411 = vmatprep.subr.mxu0 0.0
        %1412 = vmatpush1.msra.mxu0 0.0
        %1413 = vmatprep.subr.mxu0 0.0
        %1414 = vmatpush1.msra.mxu0 0.0
        %1415 = vmatprep.subr.mxu0 0.0
        %1416 = vmatpush1.msra.mxu0 0.0
        %1417 = vmatprep.subr.mxu0 0.0
        %1418 = vmatpush1.msra.mxu0 0.0
        %1419 = vmatprep.subr.mxu0 0.0
        %1420 = vmatpush1.msra.mxu0 0.0
        %1421 = vmatprep.subr.mxu0 0.0
        %1422 = vmatpush1.msra.mxu0 0.0
        %1423 = vmatprep.subr.mxu0 0.0
        %1424 = vmatpush1.msra.mxu0 0.0
        %1425 = vmatprep.subr.mxu0 0.0
        %1426 = vmatpush1.msra.mxu0 0.0
        %1427 = vmatprep.subr.mxu0 0.0
        %1428 = vmatpush1.msra.mxu0 0.0
        %1429 = vmatprep.subr.mxu0 0.0
        %1430 = vmatpush1.msra.mxu0 0.0
        %1431 = vmatprep.subr.mxu0 0.0
        %1432 = vmatpush1.msra.mxu0 0.0
        %1433 = vmatprep.subr.mxu0 0.0
        %1434 = vmatpush1.msra.mxu0 0.0
        %1435 = vmatprep.subr.mxu0 0.0
        %1436 = vmatpush1.msra.mxu0 0.0
        %1437 = vmatprep.subr.mxu0 0.0
        %1438 = vmatpush1.msra.mxu0 0.0
        %1439 = vmatprep.subr.mxu0 0.0
        %1440 = vmatpush1.msra.mxu0 0.0
        %1441 = vmatprep.mubr.f32.mxu0 0.0
        %1442 = vmatmul.mubr.f32.gmra.mrb[0].mxu0 %v1375
        %v1443 = vpop.f32.mrb[0].mxu0
        %v1444 = vadd.f32 %v1372, %v1443
        %v1445 = vpop.f32.mrb[0].mxu0
        %1446 = vdwg.mxu0
        %v1447 = vmul.f32 %v1444, 0.5
        %v1448 = vmul.f32 %v1444, 0.70710677
        %v1449 = verf.f32.pop %v1448
        %v1450 = vadd.f32 %v1449, 1.0
        %v1451 = vmul.f32 %v1447, %v1450
        %v1452 = vld [vmem:[#allocation5] sm:$0xff]
        %v1453 = vld [vmem:[%s11] sm:$0xff]
        %v1454 = vld [vmem:[%s11 + $0x8] sm:$0xff]
        %v1455 = vld [vmem:[%s11 + $0x10] sm:$0xff]
        %v1456 = vld [vmem:[%s11 + $0x18] sm:$0xff]
        %v1457 = vld [vmem:[%s11 + $0x20] sm:$0xff]
        %v1458 = vld [vmem:[%s11 + $0x28] sm:$0xff]
        %v1459 = vld [vmem:[%s11 + $0x30] sm:$0xff]
        %v1460 = vld [vmem:[%s11 + $0x38] sm:$0xff]
        %v1461 = vld [vmem:[%s11 + $0x40] sm:$0xff]
        %v1462 = vld [vmem:[%s11 + $0x48] sm:$0xff]
        %v1463 = vld [vmem:[%s11 + $0x50] sm:$0xff]
        %v1464 = vld [vmem:[%s11 + $0x58] sm:$0xff]
        %v1465 = vld [vmem:[%s11 + $0x60] sm:$0xff]
        %v1466 = vld [vmem:[%s11 + $0x68] sm:$0xff]
        %v1467 = vld [vmem:[%s11 + $0x70] sm:$0xff]
        %v1468 = vld [vmem:[%s11 + $0x78] sm:$0xff]
        %1469 = vmatprep.subr.mxu0 0.0
        %1470 = vmatpush1.msra.mxu0 %v1453
        %1471 = vmatprep.subr.mxu0 0.0
        %1472 = vmatpush1.msra.mxu0 %v1454
        %1473 = vmatprep.subr.mxu0 0.0
        %1474 = vmatpush1.msra.mxu0 %v1455
        %1475 = vmatprep.subr.mxu0 0.0
        %1476 = vmatpush1.msra.mxu0 %v1456
        %1477 = vmatprep.subr.mxu0 0.0
        %1478 = vmatpush1.msra.mxu0 %v1457
        %1479 = vmatprep.subr.mxu0 0.0
        %1480 = vmatpush1.msra.mxu0 %v1458
        %1481 = vmatprep.subr.mxu0 0.0
        %1482 = vmatpush1.msra.mxu0 %v1459
        %1483 = vmatprep.subr.mxu0 0.0
        %1484 = vmatpush1.msra.mxu0 %v1460
        %1485 = vmatprep.subr.mxu0 0.0
        %1486 = vmatpush1.msra.mxu0 %v1461
        %1487 = vmatprep.subr.mxu0 0.0
        %1488 = vmatpush1.msra.mxu0 %v1462
        %1489 = vmatprep.subr.mxu0 0.0
        %1490 = vmatpush1.msra.mxu0 %v1463
        %1491 = vmatprep.subr.mxu0 0.0
        %1492 = vmatpush1.msra.mxu0 %v1464
        %1493 = vmatprep.subr.mxu0 0.0
        %1494 = vmatpush1.msra.mxu0 %v1465
        %1495 = vmatprep.subr.mxu0 0.0
        %1496 = vmatpush1.msra.mxu0 %v1466
        %1497 = vmatprep.subr.mxu0 0.0
        %1498 = vmatpush1.msra.mxu0 %v1467
        %1499 = vmatprep.subr.mxu0 0.0
        %1500 = vmatpush1.msra.mxu0 %v1468
        %1501 = vmatprep.subr.mxu0 0.0
        %1502 = vmatpush1.msra.mxu0 0.0
        %1503 = vmatprep.subr.mxu0 0.0
        %1504 = vmatpush1.msra.mxu0 0.0
        %1505 = vmatprep.subr.mxu0 0.0
        %1506 = vmatpush1.msra.mxu0 0.0
        %1507 = vmatprep.subr.mxu0 0.0
        %1508 = vmatpush1.msra.mxu0 0.0
        %1509 = vmatprep.subr.mxu0 0.0
        %1510 = vmatpush1.msra.mxu0 0.0
        %1511 = vmatprep.subr.mxu0 0.0
        %1512 = vmatpush1.msra.mxu0 0.0
        %1513 = vmatprep.subr.mxu0 0.0
        %1514 = vmatpush1.msra.mxu0 0.0
        %1515 = vmatprep.subr.mxu0 0.0
        %1516 = vmatpush1.msra.mxu0 0.0
        %1517 = vmatprep.subr.mxu0 0.0
        %1518 = vmatpush1.msra.mxu0 0.0
        %1519 = vmatprep.subr.mxu0 0.0
        %1520 = vmatpush1.msra.mxu0 0.0
        %1521 = vmatprep.subr.mxu0 0.0
        %1522 = vmatpush1.msra.mxu0 0.0
        %1523 = vmatprep.subr.mxu0 0.0
        %1524 = vmatpush1.msra.mxu0 0.0
        %1525 = vmatprep.subr.mxu0 0.0
        %1526 = vmatpush1.msra.mxu0 0.0
        %1527 = vmatprep.subr.mxu0 0.0
        %1528 = vmatpush1.msra.mxu0 0.0
        %1529 = vmatprep.subr.mxu0 0.0
        %1530 = vmatpush1.msra.mxu0 0.0
        %1531 = vmatprep.subr.mxu0 0.0
        %1532 = vmatpush1.msra.mxu0 0.0
        %1533 = vmatprep.mubr.f32.mxu0 0.0
        %1534 = vmatmul.mubr.f32.gmra.mrb[0].mxu0 %v1451
        %v1535 = vpop.f32.mrb[0].mxu0
        %v1536 = vadd.f32 0.0, %v1535
        %v1537 = vpop.f32.mrb[0].mxu0
        %1538 = vdwg.mxu0
        %v1539 = vadd.f32 %v1452, %v1536
        %1540 = vst.msk [vmem:[#allocation5] sm:$0xff] %vm439, %v1539
        %v1541 = vld [vmem:[#allocation5] sm:$0xff]
        %v1542 = vld [vmem:[%s12] sm:$0x1]
        %v1544 = vlaneseq
        %v1545 = vshrl.u32 %v1544, 7
        %v1546 = vsub.s32 0, %v1545
        %v1547 = vrot.slane %v1542, %v1546
        %v1549 = vadd.f32 %v1541, %v1547
        %1550 = vst.msk [vmem:[%s431] sm:$0xff] %vm439, %v1549
        %s1551 = sand.u32 %s313, 1
        %s1552 = scalar_lea.sflag [#allocation7], %s1551
        %s1553 = sand.u32 %s313, 1
        %s1554 = smul.addr %s1553, 8
        %s1555 = scalar_lea.vmem [#allocation6], %s1554
        // Predicated region
        $region73: #{tpu_custom_call.1} parent=71 // pred_check
          %p1556 = pneg %p323
        $region74: #{tpu_custom_call.1} parent=71 // pred_check_branch
          %1558 = sbr.rel (%p1556) target = $region76
        $region75: #{tpu_custom_call.1} parent=71 // pred_region
          %s1560 = ssub.s32 128, 128
          %1561 = vsyncadd %s1552, %s1560
          %s1562 = smul.addr %s27, 128
          %s1563 = scalar_lea.hbm %s13, %s1562
          %s1565 = sshll.u32 %s1555, 4
          %s1566 = int_to_ptr.vmem [resolvable:$true] %s1565
          %1568 = dma.vmem_to_hbm [thread:$0]  %s1566, 128, %s1563, %s1552
        $region76: #{tpu_custom_call.1} parent=71 // pred_fallthru
          _
      $region72: #{tpu_custom_call.1} parent=5 // pred_fallthru
        _
      %p1569 = scmp.le.s32.totalorder 2, %s22
      // Predicated region
      $region77: #{tpu_custom_call.1} parent=5 // pred_check
        %p1570 = pneg %p1569
      $region78: #{tpu_custom_call.1} parent=5 // pred_check_branch
        %1572 = sbr.rel (%p1570) target = $region80
      $region79: #{tpu_custom_call.1} parent=5 // pred_region
        %s1573 = ssub.s32 %s22, 2
        // Predicated region
        $region81: #{tpu_custom_call.1} parent=79 // pred_check
          %p1574 = pneg %p329
        $region82: #{tpu_custom_call.1} parent=79 // pred_check_branch
          %1576 = sbr.rel (%p1574) target = $region84
        $region83: #{tpu_custom_call.1} parent=79 // pred_region
          %s1577 = sand.u32 %s314, 1
          %s1578 = scalar_lea.sflag [#allocation7], %s1577
          %s1579 = sand.u32 %s314, 1
          %s1580 = smul.addr %s1579, 8
          %s1581 = scalar_lea.vmem [#allocation6], %s1580
          %1582 = dma.done %s1578, 128
        $region84: #{tpu_custom_call.1} parent=79 // pred_fallthru
          _
      $region80: #{tpu_custom_call.1} parent=5 // pred_fallthru
        _
    $region6: #{tpu_custom_call.1} parent=1 // loop_footer
      %s26 = sadd.s32 1, %s22
    $region7: #{tpu_custom_call.1} parent=1 // loop_footer_branch
      %21 = sbr.rel target = $region3
    $region8: #{tpu_custom_call.1} parent=1 // loop_exit
      _
    %1583 = vsyncpa [#allocation7], 1
    %s1584 = scalar_lea.sflag [#allocation7], 1
    %1585 = vsyncpa %s1584, 1

// kernel: tpu_custom_call.1
$region0: #{tpu_custom_call.1}
  #allocation0 [shape = 'u32[]', space=smem, size = 0x4, offset = 0x4, fixed_abs, tag = 'smem constant byte address 0x4 - core index']
  #allocation1 [shape = 'u32[144,128]{1,0:T(1,128)}', space=vmem, size = 0x12000, scoped, tag = 'internal scratch']
  #allocation2 [shape = 'f32[8,32]{1,0:T(8,128)}', space=vmem, size = 0x1000, scoped, tag = 'scratch operand']
  #allocation3 [shape = 'f32[8,96]{1,0:T(8,128)}', space=vmem, size = 0x1000, scoped, tag = 'scratch operand']
  #allocation4 [shape = 'f32[8,32]{1,0:T(8,128)}', space=vmem, size = 0x1000, scoped, tag = 'scratch operand']
  #allocation5 [shape = 'f32[8,32]{1,0:T(8,128)}', space=vmem, size = 0x1000, scoped, tag = 'scratch operand']
  %s0 = inlined_call_operand.vmem [shape: f32[2,8,32], index: 0, kind: input, shape index: {}]
  %s1 = inlined_call_operand.vmem [shape: f32[1,32], index: 1, kind: input, shape index: {}]
  %s2 = inlined_call_operand.vmem [shape: f32[1,32], index: 2, kind: input, shape index: {}]
  %s3 = inlined_call_operand.vmem [shape: f32[32,96], index: 3, kind: input, shape index: {}]
  %s4 = inlined_call_operand.vmem [shape: f32[1,96], index: 4, kind: input, shape index: {}]
  %s5 = inlined_call_operand.vmem [shape: f32[32,32], index: 5, kind: input, shape index: {}]
  %s6 = inlined_call_operand.vmem [shape: f32[1,32], index: 6, kind: input, shape index: {}]
  %s7 = inlined_call_operand.vmem [shape: f32[1,32], index: 7, kind: input, shape index: {}]
  %s8 = inlined_call_operand.vmem [shape: f32[1,32], index: 8, kind: input, shape index: {}]
  %s9 = inlined_call_operand.vmem [shape: f32[32,128], index: 9, kind: input, shape index: {}]
  %s10 = inlined_call_operand.vmem [shape: f32[1,128], index: 10, kind: input, shape index: {}]
  %s11 = inlined_call_operand.vmem [shape: f32[128,32], index: 11, kind: input, shape index: {}]
  %s12 = inlined_call_operand.vmem [shape: f32[1,32], index: 12, kind: input, shape index: {}]
  %s13 = inlined_call_operand.hbm [shape: f32[2,8,32], index: 13, kind: output, shape index: {}]
  %s14 = sld [smem:[#allocation0]]
  $region85: #{tpu_custom_call.1} parent=0
    _
  %s16 = ssub.s32 1, %s14
  %s17 = scalar_select 0, %s16, %s14
  $region1: #{tpu_custom_call.1} parent=0
    #allocation6 [shape = 'u8[8192]{0}', space=vmem, size = 0x2000, scoped, tag = 'output window, operand 0']
    #allocation7 [shape = 's32[2]{0}', space=sflag, size = 0x8, scoped, tag = 'scoped memory for tpu_custom_call.1']
    %18 = vsyncpa [#allocation7], 0
    %s19 = scalar_lea.sflag [#allocation7], 1
    %20 = vsyncpa %s19, 0
    loop: start=0, step=1, limit=4
    $region2: #{tpu_custom_call.1} parent=1 // loop_pre_header
      _
    $region3: #{tpu_custom_call.1} parent=1 // loop_header
      %s22 = sphi 0, %s26
      %p23 = scmp.ge.s32.totalorder %s22, 4
      %s32 = sphi 0, %s34
      %s35 = sphi 0, %s32
      %s36 = sphi 0, %s35
      %s52 = sphi 0, %s36
      %s56 = sphi 0, %s56
      %s58 = sphi 0, %s56
      %s59 = sphi 0, %s58
      %s73 = sphi 0, %s59
      %s77 = sphi 0, %s77
      %s79 = sphi 0, %s77
      %s80 = sphi 0, %s79
      %s94 = sphi 0, %s80
      %s98 = sphi 0, %s98
      %s100 = sphi 0, %s98
      %s101 = sphi 0, %s100
      %s115 = sphi 0, %s101
      %s119 = sphi 0, %s119
      %s121 = sphi 0, %s119
      %s122 = sphi 0, %s121
      %s136 = sphi 0, %s122
      %s140 = sphi 0, %s140
      %s142 = sphi 0, %s140
      %s143 = sphi 0, %s142
      %s157 = sphi 0, %s143
      %s161 = sphi 0, %s161
      %s163 = sphi 0, %s161
      %s164 = sphi 0, %s163
      %s178 = sphi 0, %s164
      %s182 = sphi 0, %s182
      %s184 = sphi 0, %s182
      %s185 = sphi 0, %s184
      %s199 = sphi 0, %s185
      %s203 = sphi 0, %s203
      %s205 = sphi 0, %s203
      %s206 = sphi 0, %s205
      %s220 = sphi 0, %s206
      %s224 = sphi 0, %s224
      %s226 = sphi 0, %s224
      %s227 = sphi 0, %s226
      %s241 = sphi 0, %s227
      %s245 = sphi 0, %s245
      %s247 = sphi 0, %s245
      %s248 = sphi 0, %s247
      %s262 = sphi 0, %s248
      %s266 = sphi 0, %s266
      %s268 = sphi 0, %s266
      %s269 = sphi 0, %s268
      %s283 = sphi 0, %s269
      %s287 = sphi 0, %s287
      %s289 = sphi 0, %s287
      %s290 = sphi 0, %s289
      %s304 = sphi 0, %s290
      %s310 = sphi 0, %s312
      %s313 = sphi 0, %s310
      %s314 = sphi 0, %s313
      %s330 = sphi 0, %s314
    $region4: #{tpu_custom_call.1} parent=1 // loop_header_branch
      %25 = sbr.rel (%p23) target = $region8
    $region5: #{tpu_custom_call.1} parent=1 // loop_body
      %s27 = ssub.s32 %s22, 1
      %s28 = ssub.s32 %s22, 2
      %s29 = sadd.s32 %s22, 1
      %s30 = ssub.s32 %s22, %s29
      %p31 = scmp.eq.s32.totalorder %s30, 0
      %s33 = sadd.s32 %s32, 1
      %s34 = scalar_select %p31, %s32, %s33
      %p37 = pneg %p31
      %p38 = scmp.eq.s32.totalorder %s22, 1
      %p39 = por %p37, %p38
      %p40 = scmp.ne.s32.totalorder %s32, %s35
      %p41 = scmp.eq.s32.totalorder %s22, 0
      %p42 = por %p40, %p41
      %p43 = scmp.ne.s32.totalorder %s32, %s35
      %p44 = scmp.eq.s32.totalorder %s27, 1
      %p45 = por %p43, %p44
      %p46 = scmp.ne.s32.totalorder %s35, %s36
      %p47 = scmp.eq.s32.totalorder %s27, 0
      %p48 = por %p46, %p47
      %p49 = scmp.ne.s32.totalorder %s35, %s36
      %p50 = scmp.eq.s32.totalorder %s28, 1
      %p51 = por %p49, %p50
      %p53 = scmp.ne.s32.totalorder %s36, %s52
      %p54 = scmp.eq.s32.totalorder %s28, 0
      %p55 = por %p53, %p54
      %s57 = sadd.s32 %s56, 1
      %p60 = scmp.eq.s32.totalorder %s22, 1
      %p61 = scmp.ne.s32.totalorder %s56, %s58
      %p62 = scmp.eq.s32.totalorder %s22, 0
      %p63 = por %p61, %p62
      %p64 = scmp.ne.s32.totalorder %s56, %s58
      %p65 = scmp.eq.s32.totalorder %s27, 1
      %p66 = por %p64, %p65
      %p67 = scmp.ne.s32.totalorder %s58, %s59
      %p68 = scmp.eq.s32.totalorder %s27, 0
      %p69 = por %p67, %p68
      %p70 = scmp.ne.s32.totalorder %s58, %s59
      %p71 = scmp.eq.s32.totalorder %s28, 1
      %p72 = por %p70, %p71
      %p74 = scmp.ne.s32.totalorder %s59, %s73
      %p75 = scmp.eq.s32.totalorder %s28, 0
      %p76 = por %p74, %p75
      %s78 = sadd.s32 %s77, 1
      %p81 = scmp.eq.s32.totalorder %s22, 1
      %p82 = scmp.ne.s32.totalorder %s77, %s79
      %p83 = scmp.eq.s32.totalorder %s22, 0
      %p84 = por %p82, %p83
      %p85 = scmp.ne.s32.totalorder %s77, %s79
      %p86 = scmp.eq.s32.totalorder %s27, 1
      %p87 = por %p85, %p86
      %p88 = scmp.ne.s32.totalorder %s79, %s80
      %p89 = scmp.eq.s32.totalorder %s27, 0
      %p90 = por %p88, %p89
      %p91 = scmp.ne.s32.totalorder %s79, %s80
      %p92 = scmp.eq.s32.totalorder %s28, 1
      %p93 = por %p91, %p92
      %p95 = scmp.ne.s32.totalorder %s80, %s94
      %p96 = scmp.eq.s32.totalorder %s28, 0
      %p97 = por %p95, %p96
      %s99 = sadd.s32 %s98, 1
      %p102 = scmp.eq.s32.totalorder %s22, 1
      %p103 = scmp.ne.s32.totalorder %s98, %s100
      %p104 = scmp.eq.s32.totalorder %s22, 0
      %p105 = por %p103, %p104
      %p106 = scmp.ne.s32.totalorder %s98, %s100
      %p107 = scmp.eq.s32.totalorder %s27, 1
      %p108 = por %p106, %p107
      %p109 = scmp.ne.s32.totalorder %s100, %s101
      %p110 = scmp.eq.s32.totalorder %s27, 0
      %p111 = por %p109, %p110
      %p112 = scmp.ne.s32.totalorder %s100, %s101
      %p113 = scmp.eq.s32.totalorder %s28, 1
      %p114 = por %p112, %p113
      %p116 = scmp.ne.s32.totalorder %s101, %s115
      %p117 = scmp.eq.s32.totalorder %s28, 0
      %p118 = por %p116, %p117
      %s120 = sadd.s32 %s119, 1
      %p123 = scmp.eq.s32.totalorder %s22, 1
      %p124 = scmp.ne.s32.totalorder %s119, %s121
      %p125 = scmp.eq.s32.totalorder %s22, 0
      %p126 = por %p124, %p125
      %p127 = scmp.ne.s32.totalorder %s119, %s121
      %p128 = scmp.eq.s32.totalorder %s27, 1
      %p129 = por %p127, %p128
      %p130 = scmp.ne.s32.totalorder %s121, %s122
      %p131 = scmp.eq.s32.totalorder %s27, 0
      %p132 = por %p130, %p131
      %p133 = scmp.ne.s32.totalorder %s121, %s122
      %p134 = scmp.eq.s32.totalorder %s28, 1
      %p135 = por %p133, %p134
      %p137 = scmp.ne.s32.totalorder %s122, %s136
      %p138 = scmp.eq.s32.totalorder %s28, 0
      %p139 = por %p137, %p138
      %s141 = sadd.s32 %s140, 1
      %p144 = scmp.eq.s32.totalorder %s22, 1
      %p145 = scmp.ne.s32.totalorder %s140, %s142
      %p146 = scmp.eq.s32.totalorder %s22, 0
      %p147 = por %p145, %p146
      %p148 = scmp.ne.s32.totalorder %s140, %s142
      %p149 = scmp.eq.s32.totalorder %s27, 1
      %p150 = por %p148, %p149
      %p151 = scmp.ne.s32.totalorder %s142, %s143
      %p152 = scmp.eq.s32.totalorder %s27, 0
      %p153 = por %p151, %p152
      %p154 = scmp.ne.s32.totalorder %s142, %s143
      %p155 = scmp.eq.s32.totalorder %s28, 1
      %p156 = por %p154, %p155
      %p158 = scmp.ne.s32.totalorder %s143, %s157
      %p159 = scmp.eq.s32.totalorder %s28, 0
      %p160 = por %p158, %p159
      %s162 = sadd.s32 %s161, 1
      %p165 = scmp.eq.s32.totalorder %s22, 1
      %p166 = scmp.ne.s32.totalorder %s161, %s163
      %p167 = scmp.eq.s32.totalorder %s22, 0
      %p168 = por %p166, %p167
      %p169 = scmp.ne.s32.totalorder %s161, %s163
      %p170 = scmp.eq.s32.totalorder %s27, 1
      %p171 = por %p169, %p170
      %p172 = scmp.ne.s32.totalorder %s163, %s164
      %p173 = scmp.eq.s32.totalorder %s27, 0
      %p174 = por %p172, %p173
      %p175 = scmp.ne.s32.totalorder %s163, %s164
      %p176 = scmp.eq.s32.totalorder %s28, 1
      %p177 = por %p175, %p176
      %p179 = scmp.ne.s32.totalorder %s164, %s178
      %p180 = scmp.eq.s32.totalorder %s28, 0
      %p181 = por %p179, %p180
      %s183 = sadd.s32 %s182, 1
      %p186 = scmp.eq.s32.totalorder %s22, 1
      %p187 = scmp.ne.s32.totalorder %s182, %s184
      %p188 = scmp.eq.s32.totalorder %s22, 0
      %p189 = por %p187, %p188
      %p190 = scmp.ne.s32.totalorder %s182, %s184
      %p191 = scmp.eq.s32.totalorder %s27, 1
      %p192 = por %p190, %p191
      %p193 = scmp.ne.s32.totalorder %s184, %s185
      %p194 = scmp.eq.s32.totalorder %s27, 0
      %p195 = por %p193, %p194
      %p196 = scmp.ne.s32.totalorder %s184, %s185
      %p197 = scmp.eq.s32.totalorder %s28, 1
      %p198 = por %p196, %p197
      %p200 = scmp.ne.s32.totalorder %s185, %s199
      %p201 = scmp.eq.s32.totalorder %s28, 0
      %p202 = por %p200, %p201
      %s204 = sadd.s32 %s203, 1
      %p207 = scmp.eq.s32.totalorder %s22, 1
      %p208 = scmp.ne.s32.totalorder %s203, %s205
      %p209 = scmp.eq.s32.totalorder %s22, 0
      %p210 = por %p208, %p209
      %p211 = scmp.ne.s32.totalorder %s203, %s205
      %p212 = scmp.eq.s32.totalorder %s27, 1
      %p213 = por %p211, %p212
      %p214 = scmp.ne.s32.totalorder %s205, %s206
      %p215 = scmp.eq.s32.totalorder %s27, 0
      %p216 = por %p214, %p215
      %p217 = scmp.ne.s32.totalorder %s205, %s206
      %p218 = scmp.eq.s32.totalorder %s28, 1
      %p219 = por %p217, %p218
      %p221 = scmp.ne.s32.totalorder %s206, %s220
      %p222 = scmp.eq.s32.totalorder %s28, 0
      %p223 = por %p221, %p222
      %s225 = sadd.s32 %s224, 1
      %p228 = scmp.eq.s32.totalorder %s22, 1
      %p229 = scmp.ne.s32.totalorder %s224, %s226
      %p230 = scmp.eq.s32.totalorder %s22, 0
      %p231 = por %p229, %p230
      %p232 = scmp.ne.s32.totalorder %s224, %s226
      %p233 = scmp.eq.s32.totalorder %s27, 1
      %p234 = por %p232, %p233
      %p235 = scmp.ne.s32.totalorder %s226, %s227
      %p236 = scmp.eq.s32.totalorder %s27, 0
      %p237 = por %p235, %p236
      %p238 = scmp.ne.s32.totalorder %s226, %s227
      %p239 = scmp.eq.s32.totalorder %s28, 1
      %p240 = por %p238, %p239
      %p242 = scmp.ne.s32.totalorder %s227, %s241
      %p243 = scmp.eq.s32.totalorder %s28, 0
      %p244 = por %p242, %p243
      %s246 = sadd.s32 %s245, 1
      %p249 = scmp.eq.s32.totalorder %s22, 1
      %p250 = scmp.ne.s32.totalorder %s245, %s247
      %p251 = scmp.eq.s32.totalorder %s22, 0
      %p252 = por %p250, %p251
      %p253 = scmp.ne.s32.totalorder %s245, %s247
      %p254 = scmp.eq.s32.totalorder %s27, 1
      %p255 = por %p253, %p254
      %p256 = scmp.ne.s32.totalorder %s247, %s248
      %p257 = scmp.eq.s32.totalorder %s27, 0
      %p258 = por %p256, %p257
      %p259 = scmp.ne.s32.totalorder %s247, %s248
      %p260 = scmp.eq.s32.totalorder %s28, 1
      %p261 = por %p259, %p260
      %p263 = scmp.ne.s32.totalorder %s248, %s262
      %p264 = scmp.eq.s32.totalorder %s28, 0
      %p265 = por %p263, %p264
      %s267 = sadd.s32 %s266, 1
      %p270 = scmp.eq.s32.totalorder %s22, 1
      %p271 = scmp.ne.s32.totalorder %s266, %s268
      %p272 = scmp.eq.s32.totalorder %s22, 0
      %p273 = por %p271, %p272
      %p274 = scmp.ne.s32.totalorder %s266, %s268
      %p275 = scmp.eq.s32.totalorder %s27, 1
      %p276 = por %p274, %p275
      %p277 = scmp.ne.s32.totalorder %s268, %s269
      %p278 = scmp.eq.s32.totalorder %s27, 0
      %p279 = por %p277, %p278
      %p280 = scmp.ne.s32.totalorder %s268, %s269
      %p281 = scmp.eq.s32.totalorder %s28, 1
      %p282 = por %p280, %p281
      %p284 = scmp.ne.s32.totalorder %s269, %s283
      %p285 = scmp.eq.s32.totalorder %s28, 0
      %p286 = por %p284, %p285
      %s288 = sadd.s32 %s287, 1
      %p291 = scmp.eq.s32.totalorder %s22, 1
      %p292 = scmp.ne.s32.totalorder %s287, %s289
      %p293 = scmp.eq.s32.totalorder %s22, 0
      %p294 = por %p292, %p293
      %p295 = scmp.ne.s32.totalorder %s287, %s289
      %p296 = scmp.eq.s32.totalorder %s27, 1
      %p297 = por %p295, %p296
      %p298 = scmp.ne.s32.totalorder %s289, %s290
      %p299 = scmp.eq.s32.totalorder %s27, 0
      %p300 = por %p298, %p299
      %p301 = scmp.ne.s32.totalorder %s289, %s290
      %p302 = scmp.eq.s32.totalorder %s28, 1
      %p303 = por %p301, %p302
      %p305 = scmp.ne.s32.totalorder %s290, %s304
      %p306 = scmp.eq.s32.totalorder %s28, 0
      %p307 = por %p305, %p306
      %s308 = ssub.s32 %s22, %s29
      %p309 = scmp.eq.s32.totalorder %s308, 0
      %s311 = sadd.s32 %s310, 1
      %s312 = scalar_select %p309, %s310, %s311
      %p315 = pneg %p309
      %p316 = scmp.eq.s32.totalorder %s22, 1
      %p317 = por %p315, %p316
      %p318 = scmp.ne.s32.totalorder %s310, %s313
      %p319 = scmp.eq.s32.totalorder %s22, 0
      %p320 = por %p318, %p319
      %p321 = scmp.ne.s32.totalorder %s310, %s313
      %p322 = scmp.eq.s32.totalorder %s27, 1
      %p323 = por %p321, %p322
      %p324 = scmp.ne.s32.totalorder %s313, %s314
      %p325 = scmp.eq.s32.totalorder %s27, 0
      %p326 = por %p324, %p325
      %p327 = scmp.ne.s32.totalorder %s313, %s314
      %p328 = scmp.eq.s32.totalorder %s28, 1
      %p329 = por %p327, %p328
      %p331 = scmp.ne.s32.totalorder %s314, %s330
      %p332 = scmp.eq.s32.totalorder %s28, 0
      %p333 = por %p331, %p332
      %p334 = scmp.le.s32.totalorder 1, %s22
      %p335 = scmp.lt.s32.totalorder %s22, 3
      %p336 = pnand %p334, %p335
      %p337 = pneg %p336
      // Predicated region
      $region9: #{tpu_custom_call.1} parent=5 // pred_check
        _
      $region10: #{tpu_custom_call.1} parent=5 // pred_check_branch
        %339 = sbr.rel (%p336) target = $region12
      $region11: #{tpu_custom_call.1} parent=5 // pred_region
        %s340 = ssub.s32 %s22, 1
        // Predicated region
        $region13: #{tpu_custom_call.1} parent=11 // pred_check
          %p341 = pneg %p69
        $region14: #{tpu_custom_call.1} parent=11 // pred_check_branch
          %343 = sbr.rel (%p341) target = $region16
        $region15: #{tpu_custom_call.1} parent=11 // pred_region
          _
        $region16: #{tpu_custom_call.1} parent=11 // pred_fallthru
          _
        // Predicated region
        $region17: #{tpu_custom_call.1} parent=11 // pred_check
          %p344 = pneg %p90
        $region18: #{tpu_custom_call.1} parent=11 // pred_check_branch
          %346 = sbr.rel (%p344) target = $region20
        $region19: #{tpu_custom_call.1} parent=11 // pred_region
          _
        $region20: #{tpu_custom_call.1} parent=11 // pred_fallthru
          _
        // Predicated region
        $region21: #{tpu_custom_call.1} parent=11 // pred_check
          %p347 = pneg %p111
        $region22: #{tpu_custom_call.1} parent=11 // pred_check_branch
          %349 = sbr.rel (%p347) target = $region24
        $region23: #{tpu_custom_call.1} parent=11 // pred_region
          _
        $region24: #{tpu_custom_call.1} parent=11 // pred_fallthru
          _
        // Predicated region
        $region25: #{tpu_custom_call.1} parent=11 // pred_check
          %p350 = pneg %p132
        $region26: #{tpu_custom_call.1} parent=11 // pred_check_branch
          %352 = sbr.rel (%p350) target = $region28
        $region27: #{tpu_custom_call.1} parent=11 // pred_region
          _
        $region28: #{tpu_custom_call.1} parent=11 // pred_fallthru
          _
        // Predicated region
        $region29: #{tpu_custom_call.1} parent=11 // pred_check
          %p353 = pneg %p153
        $region30: #{tpu_custom_call.1} parent=11 // pred_check_branch
          %355 = sbr.rel (%p353) target = $region32
        $region31: #{tpu_custom_call.1} parent=11 // pred_region
          _
        $region32: #{tpu_custom_call.1} parent=11 // pred_fallthru
          _
        // Predicated region
        $region33: #{tpu_custom_call.1} parent=11 // pred_check
          %p356 = pneg %p174
        $region34: #{tpu_custom_call.1} parent=11 // pred_check_branch
          %358 = sbr.rel (%p356) target = $region36
        $region35: #{tpu_custom_call.1} parent=11 // pred_region
          _
        $region36: #{tpu_custom_call.1} parent=11 // pred_fallthru
          _
        // Predicated region
        $region37: #{tpu_custom_call.1} parent=11 // pred_check
          %p359 = pneg %p195
        $region38: #{tpu_custom_call.1} parent=11 // pred_check_branch
          %361 = sbr.rel (%p359) target = $region40
        $region39: #{tpu_custom_call.1} parent=11 // pred_region
          _
        $region40: #{tpu_custom_call.1} parent=11 // pred_fallthru
          _
        // Predicated region
        $region41: #{tpu_custom_call.1} parent=11 // pred_check
          %p362 = pneg %p216
        $region42: #{tpu_custom_call.1} parent=11 // pred_check_branch
          %364 = sbr.rel (%p362) target = $region44
        $region43: #{tpu_custom_call.1} parent=11 // pred_region
          _
        $region44: #{tpu_custom_call.1} parent=11 // pred_fallthru
          _
        // Predicated region
        $region45: #{tpu_custom_call.1} parent=11 // pred_check
          %p365 = pneg %p237
        $region46: #{tpu_custom_call.1} parent=11 // pred_check_branch
          %367 = sbr.rel (%p365) target = $region48
        $region47: #{tpu_custom_call.1} parent=11 // pred_region
          _
        $region48: #{tpu_custom_call.1} parent=11 // pred_fallthru
          _
        // Predicated region
        $region49: #{tpu_custom_call.1} parent=11 // pred_check
          %p368 = pneg %p258
        $region50: #{tpu_custom_call.1} parent=11 // pred_check_branch
          %370 = sbr.rel (%p368) target = $region52
        $region51: #{tpu_custom_call.1} parent=11 // pred_region
          _
        $region52: #{tpu_custom_call.1} parent=11 // pred_fallthru
          _
        // Predicated region
        $region53: #{tpu_custom_call.1} parent=11 // pred_check
          %p371 = pneg %p279
        $region54: #{tpu_custom_call.1} parent=11 // pred_check_branch
          %373 = sbr.rel (%p371) target = $region56
        $region55: #{tpu_custom_call.1} parent=11 // pred_region
          _
        $region56: #{tpu_custom_call.1} parent=11 // pred_fallthru
          _
        // Predicated region
        $region57: #{tpu_custom_call.1} parent=11 // pred_check
          %p374 = pneg %p300
        $region58: #{tpu_custom_call.1} parent=11 // pred_check_branch
          %376 = sbr.rel (%p374) target = $region60
        $region59: #{tpu_custom_call.1} parent=11 // pred_region
          _
        $region60: #{tpu_custom_call.1} parent=11 // pred_fallthru
          _
      $region12: #{tpu_custom_call.1} parent=5 // pred_fallthru
        _
      %p377 = scmp.lt.s32.totalorder %s22, 2
      // Predicated region
      $region61: #{tpu_custom_call.1} parent=5 // pred_check
        %p378 = pneg %p377
      $region62: #{tpu_custom_call.1} parent=5 // pred_check_branch
        %380 = sbr.rel (%p378) target = $region64
      $region63: #{tpu_custom_call.1} parent=5 // pred_region
        // Predicated region
        $region65: #{tpu_custom_call.1} parent=63 // pred_check
          %p381 = pneg %p42
        $region66: #{tpu_custom_call.1} parent=63 // pred_check_branch
          %383 = sbr.rel (%p381) target = $region68
        $region67: #{tpu_custom_call.1} parent=63 // pred_region
          %p384 = scmp.lt.s32.totalorder %s22, 1
          %s385 = scalar_select %p384, %s22, 1
          %s386 = smul.addr %s385, 8
          %s387 = scalar_lea.vmem %s0, %s386
        $region68: #{tpu_custom_call.1} parent=63 // pred_fallthru
          _
      $region64: #{tpu_custom_call.1} parent=5 // pred_fallthru
        _
      %p388 = scmp.le.s32.totalorder 1, %s22
      %p389 = scmp.lt.s32.totalorder %s22, 3
      %p390 = pnand %p388, %p389
      %p391 = pneg %p390
      // Predicated region
      $region69: #{tpu_custom_call.1} parent=5 // pred_check
        _
      $region70: #{tpu_custom_call.1} parent=5 // pred_check_branch
        %393 = sbr.rel (%p390) target = $region72
      $region71: #{tpu_custom_call.1} parent=5 // pred_region
        %s394 = ssub.s32 %s22, 1
        %p395 = scmp.lt.s32.totalorder %s27, 1
        %s396 = scalar_select %p395, %s27, 1
        %s397 = smul.addr %s396, 8
        %s398 = scalar_lea.vmem %s0, %s397
        %p399 = pneg %p48
        %p400 = pneg %p45
        %p401 = pneg %p69
        %p402 = pneg %p66
        %p403 = pneg %p90
        %p404 = pneg %p87
        %p405 = pneg %p111
        %p406 = pneg %p108
        %p407 = pneg %p132
        %p408 = pneg %p129
        %p409 = pneg %p153
        %p410 = pneg %p150
        %p411 = pneg %p174
        %p412 = pneg %p171
        %p413 = pneg %p195
        %p414 = pneg %p192
        %p415 = pneg %p216
        %p416 = pneg %p213
        %p417 = pneg %p237
        %p418 = pneg %p234
        %p419 = pneg %p258
        %p420 = pneg %p255
        %p421 = pneg %p279
        %p422 = pneg %p276
        %p423 = pneg %p300
        %p424 = pneg %p297
        %p425 = pneg %p326
        %p426 = pneg %p323
        %s427 = sand.u32 %s313, 1
        %s428 = scalar_lea.sflag [#allocation7], %s427
        %s429 = sand.u32 %s313, 1
        %s430 = smul.addr %s429, 8
        %s431 = scalar_lea.vmem [#allocation6], %s430
        %p432 = scmp.lt.s32.totalorder %s27, 1
        %s433 = scalar_select %p432, %s27, 1
        %s434 = smul.addr %s433, 8
        %s435 = scalar_lea.vmem %s0, %s434
        %v436 = vld [vmem:[%s435] sm:$0xff]
        %v437 = vld [vmem:[%s1] sm:$0x1]
        %v438 = vld [vmem:[%s2] sm:$0x1]
        %vm439 = vcmask 261120
        %v440 = vsel %vm439, %v436, 0.0
        %441 = vadd.xlane.f32.xlu0 %v440
        %v442 = vpop.xlane.xlu0 %441
        %v443 = vrcp.pop 32.0
        %v444 = vmul.f32 %v442, %v443
        %v445 = vsub.f32 %v436, %v444
        %v446 = vmul.f32 %v445, %v445
        %v447 = vsel %vm439, %v446, 0.0
        %448 = vadd.xlane.f32.xlu0 %v447
        %v449 = vpop.xlane.xlu0 %448
        %v450 = vmul.f32 %v449, %v443
        %v451 = vadd.f32 %v450, 1e-05
        %v452 = vrsqrt.pop %v451
        %v453 = vmul.f32 %v445, %v452
        %v455 = vlaneseq
        %v456 = vshrl.u32 %v455, 7
        %v457 = vsub.s32 0, %v456
        %v458 = vrot.slane %v437, %v457
        %v460 = vmul.f32 %v453, %v458
        %v462 = vlaneseq
        %v463 = vshrl.u32 %v462, 7
        %v464 = vsub.s32 0, %v463
        %v465 = vrot.slane %v438, %v464
        %v467 = vadd.f32 %v460, %v465
        %468 = vst.msk [vmem:[#allocation2] sm:$0xff] %vm439, %v467
        %v469 = vld [vmem:[#allocation2] sm:$0xff]
        %v470 = vld [vmem:[%s3] sm:$0xff]
        %v471 = vld [vmem:[%s3 + $0x8] sm:$0xff]
        %v472 = vld [vmem:[%s3 + $0x10] sm:$0xff]
        %v473 = vld [vmem:[%s3 + $0x18] sm:$0xff]
        %v474 = vld [vmem:[%s4] sm:$0x1]
        %v476 = vlaneseq
        %v477 = vshrl.u32 %v476, 7
        %v478 = vsub.s32 0, %v477
        %v479 = vrot.slane %v474, %v478
        %v482 = vsel %vm439, %v469, 0
        %484 = vmatprep.subr.mxu0 0.0
        %485 = vmatpush1.msra.mxu0 %v470
        %486 = vmatprep.subr.mxu0 0.0
        %487 = vmatpush1.msra.mxu0 %v471
        %488 = vmatprep.subr.mxu0 0.0
        %489 = vmatpush1.msra.mxu0 %v472
        %490 = vmatprep.subr.mxu0 0.0
        %491 = vmatpush1.msra.mxu0 %v473
        %492 = vmatprep.subr.mxu0 0.0
        %493 = vmatpush1.msra.mxu0 0.0
        %494 = vmatprep.subr.mxu0 0.0
        %495 = vmatpush1.msra.mxu0 0.0
        %496 = vmatprep.subr.mxu0 0.0
        %497 = vmatpush1.msra.mxu0 0.0
        %498 = vmatprep.subr.mxu0 0.0
        %499 = vmatpush1.msra.mxu0 0.0
        %500 = vmatprep.subr.mxu0 0.0
        %501 = vmatpush1.msra.mxu0 0.0
        %502 = vmatprep.subr.mxu0 0.0
        %503 = vmatpush1.msra.mxu0 0.0
        %504 = vmatprep.subr.mxu0 0.0
        %505 = vmatpush1.msra.mxu0 0.0
        %506 = vmatprep.subr.mxu0 0.0
        %507 = vmatpush1.msra.mxu0 0.0
        %508 = vmatprep.subr.mxu0 0.0
        %509 = vmatpush1.msra.mxu0 0.0
        %510 = vmatprep.subr.mxu0 0.0
        %511 = vmatpush1.msra.mxu0 0.0
        %512 = vmatprep.subr.mxu0 0.0
        %513 = vmatpush1.msra.mxu0 0.0
        %514 = vmatprep.subr.mxu0 0.0
        %515 = vmatpush1.msra.mxu0 0.0
        %516 = vmatprep.subr.mxu0 0.0
        %517 = vmatpush1.msra.mxu0 0.0
        %518 = vmatprep.subr.mxu0 0.0
        %519 = vmatpush1.msra.mxu0 0.0
        %520 = vmatprep.subr.mxu0 0.0
        %521 = vmatpush1.msra.mxu0 0.0
        %522 = vmatprep.subr.mxu0 0.0
        %523 = vmatpush1.msra.mxu0 0.0
        %524 = vmatprep.subr.mxu0 0.0
        %525 = vmatpush1.msra.mxu0 0.0
        %526 = vmatprep.subr.mxu0 0.0
        %527 = vmatpush1.msra.mxu0 0.0
        %528 = vmatprep.subr.mxu0 0.0
        %529 = vmatpush1.msra.mxu0 0.0
        %530 = vmatprep.subr.mxu0 0.0
        %531 = vmatpush1.msra.mxu0 0.0
        %532 = vmatprep.subr.mxu0 0.0
        %533 = vmatpush1.msra.mxu0 0.0
        %534 = vmatprep.subr.mxu0 0.0
        %535 = vmatpush1.msra.mxu0 0.0
        %536 = vmatprep.subr.mxu0 0.0
        %537 = vmatpush1.msra.mxu0 0.0
        %538 = vmatprep.subr.mxu0 0.0
        %539 = vmatpush1.msra.mxu0 0.0
        %540 = vmatprep.subr.mxu0 0.0
        %541 = vmatpush1.msra.mxu0 0.0
        %542 = vmatprep.subr.mxu0 0.0
        %543 = vmatpush1.msra.mxu0 0.0
        %544 = vmatprep.subr.mxu0 0.0
        %545 = vmatpush1.msra.mxu0 0.0
        %546 = vmatprep.subr.mxu0 0.0
        %547 = vmatpush1.msra.mxu0 0.0
        %548 = vmatprep.mubr.f32.mxu0 0.0
        %549 = vmatmul.mubr.f32.gmra.mrb[0].mxu0 %v482
        %v550 = vpop.f32.mrb[0].mxu0
        %v551 = vadd.f32 %v479, %v550
        %v552 = vpop.f32.mrb[0].mxu0
        %553 = vdwg.mxu0
        %vm554 = vcmask 785408
        %555 = vst.msk [vmem:[#allocation3] sm:$0xff] %vm554, %v551
        %v556 = vld [vmem:[#allocation3] sm:$0xff]
        %558 = vrot.lane.b32.xlu0 %v556, 96
        %v559 = vpop.permute.xlu0 %558
        %vm560 = vcmask 64512
        %v561 = vsel %vm560, %v556, 0
        %v563 = vsel %vm560, %v559, 0
        %565 = vmatprep.subr.mxu0 0.0
        %566 = vmatpush1.xpose.msra.mxu0 %v563
        %567 = vmatprep.subr.mxu0 0.0
        %568 = vmatpush1.xpose.msra.mxu0 0.0
        %569 = vmatprep.subr.mxu0 0.0
        %570 = vmatpush1.xpose.msra.mxu0 0.0
        %571 = vmatprep.subr.mxu0 0.0
        %572 = vmatpush1.xpose.msra.mxu0 0.0
        %573 = vmatprep.subr.mxu0 0.0
        %574 = vmatpush1.xpose.msra.mxu0 0.0
        %575 = vmatprep.subr.mxu0 0.0
        %576 = vmatpush1.xpose.msra.mxu0 0.0
        %577 = vmatprep.subr.mxu0 0.0
        %578 = vmatpush1.xpose.msra.mxu0 0.0
        %579 = vmatprep.subr.mxu0 0.0
        %580 = vmatpush1.xpose.msra.mxu0 0.0
        %581 = vmatprep.subr.mxu0 0.0
        %582 = vmatpush1.xpose.msra.mxu0 0.0
        %583 = vmatprep.subr.mxu0 0.0
        %584 = vmatpush1.xpose.msra.mxu0 0.0
        %585 = vmatprep.subr.mxu0 0.0
        %586 = vmatpush1.xpose.msra.mxu0 0.0
        %587 = vmatprep.subr.mxu0 0.0
        %588 = vmatpush1.xpose.msra.mxu0 0.0
        %589 = vmatprep.subr.mxu0 0.0
        %590 = vmatpush1.xpose.msra.mxu0 0.0
        %591 = vmatprep.subr.mxu0 0.0
        %592 = vmatpush1.xpose.msra.mxu0 0.0
        %593 = vmatprep.subr.mxu0 0.0
        %594 = vmatpush1.xpose.msra.mxu0 0.0
        %595 = vmatprep.subr.mxu0 0.0
        %596 = vmatpush1.xpose.msra.mxu0 0.0
        %597 = vmatprep.subr.mxu0 0.0
        %598 = vmatpush1.xpose.msra.mxu0 0.0
        %599 = vmatprep.subr.mxu0 0.0
        %600 = vmatpush1.xpose.msra.mxu0 0.0
        %601 = vmatprep.subr.mxu0 0.0
        %602 = vmatpush1.xpose.msra.mxu0 0.0
        %603 = vmatprep.subr.mxu0 0.0
        %604 = vmatpush1.xpose.msra.mxu0 0.0
        %605 = vmatprep.subr.mxu0 0.0
        %606 = vmatpush1.xpose.msra.mxu0 0.0
        %607 = vmatprep.subr.mxu0 0.0
        %608 = vmatpush1.xpose.msra.mxu0 0.0
        %609 = vmatprep.subr.mxu0 0.0
        %610 = vmatpush1.xpose.msra.mxu0 0.0
        %611 = vmatprep.subr.mxu0 0.0
        %612 = vmatpush1.xpose.msra.mxu0 0.0
        %613 = vmatprep.subr.mxu0 0.0
        %614 = vmatpush1.xpose.msra.mxu0 0.0
        %615 = vmatprep.subr.mxu0 0.0
        %616 = vmatpush1.xpose.msra.mxu0 0.0
        %617 = vmatprep.subr.mxu0 0.0
        %618 = vmatpush1.xpose.msra.mxu0 0.0
        %619 = vmatprep.subr.mxu0 0.0
        %620 = vmatpush1.xpose.msra.mxu0 0.0
        %621 = vmatprep.subr.mxu0 0.0
        %622 = vmatpush1.xpose.msra.mxu0 0.0
        %623 = vmatprep.subr.mxu0 0.0
        %624 = vmatpush1.xpose.msra.mxu0 0.0
        %625 = vmatprep.subr.mxu0 0.0
        %626 = vmatpush1.xpose.msra.mxu0 0.0
        %627 = vmatprep.subr.mxu0 0.0
        %628 = vmatpush1.xpose.msra.mxu0 0.0
        %629 = vmatprep.mubr.f32.mxu0 0.0
        %630 = vmatmul.mubr.f32.gmra.mrb[0].mxu0 %v561
        %v631 = vpop.f32.mrb[0].mxu0
        %v632 = vadd.f32 0.0, %v631
        %v633 = vpop.f32.mrb[0].mxu0
        %634 = vdwg.mxu0
        %v635 = vsel %vm560, %v632, -inf
        %636 = vmax.xlane.f32.xlu0 %v635
        %v637 = vpop.xlane.xlu0 %636
        %v638 = vsub.f32 %v632, %v637
        %v639 = vmul.f32 %v638, 1.442695
        %v640 = vpow.pop %v639
        %v641 = vsel %vm560, %v640, 0.0
        %642 = vadd.xlane.f32.xlu0 %v641
        %v643 = vpop.xlane.xlu0 %642
        %v644 = vrcp.pop %v643
        %v645 = vmul.f32 %v640, %v644
        %646 = vrot.lane.b32.xlu0 %v556, 64
        %v647 = vpop.permute.xlu0 %646
        %v650 = vsel %vm560, %v645, 0
        %652 = vmatprep.subr.mxu0 0.0
        %653 = vmatpush1.msra.mxu0 %v647
        %654 = vmatprep.subr.mxu0 0.0
        %655 = vmatpush1.msra.mxu0 0.0
        %656 = vmatprep.subr.mxu0 0.0
        %657 = vmatpush1.msra.mxu0 0.0
        %658 = vmatprep.subr.mxu0 0.0
        %659 = vmatpush1.msra.mxu0 0.0
        %660 = vmatprep.subr.mxu0 0.0
        %661 = vmatpush1.msra.mxu0 0.0
        %662 = vmatprep.subr.mxu0 0.0
        %663 = vmatpush1.msra.mxu0 0.0
        %664 = vmatprep.subr.mxu0 0.0
        %665 = vmatpush1.msra.mxu0 0.0
        %666 = vmatprep.subr.mxu0 0.0
        %667 = vmatpush1.msra.mxu0 0.0
        %668 = vmatprep.subr.mxu0 0.0
        %669 = vmatpush1.msra.mxu0 0.0
        %670 = vmatprep.subr.mxu0 0.0
        %671 = vmatpush1.msra.mxu0 0.0
        %672 = vmatprep.subr.mxu0 0.0
        %673 = vmatpush1.msra.mxu0 0.0
        %674 = vmatprep.subr.mxu0 0.0
        %675 = vmatpush1.msra.mxu0 0.0
        %676 = vmatprep.subr.mxu0 0.0
        %677 = vmatpush1.msra.mxu0 0.0
        %678 = vmatprep.subr.mxu0 0.0
        %679 = vmatpush1.msra.mxu0 0.0
        %680 = vmatprep.subr.mxu0 0.0
        %681 = vmatpush1.msra.mxu0 0.0
        %682 = vmatprep.subr.mxu0 0.0
        %683 = vmatpush1.msra.mxu0 0.0
        %684 = vmatprep.subr.mxu0 0.0
        %685 = vmatpush1.msra.mxu0 0.0
        %686 = vmatprep.subr.mxu0 0.0
        %687 = vmatpush1.msra.mxu0 0.0
        %688 = vmatprep.subr.mxu0 0.0
        %689 = vmatpush1.msra.mxu0 0.0
        %690 = vmatprep.subr.mxu0 0.0
        %691 = vmatpush1.msra.mxu0 0.0
        %692 = vmatprep.subr.mxu0 0.0
        %693 = vmatpush1.msra.mxu0 0.0
        %694 = vmatprep.subr.mxu0 0.0
        %695 = vmatpush1.msra.mxu0 0.0
        %696 = vmatprep.subr.mxu0 0.0
        %697 = vmatpush1.msra.mxu0 0.0
        %698 = vmatprep.subr.mxu0 0.0
        %699 = vmatpush1.msra.mxu0 0.0
        %700 = vmatprep.subr.mxu0 0.0
        %701 = vmatpush1.msra.mxu0 0.0
        %702 = vmatprep.subr.mxu0 0.0
        %703 = vmatpush1.msra.mxu0 0.0
        %704 = vmatprep.subr.mxu0 0.0
        %705 = vmatpush1.msra.mxu0 0.0
        %706 = vmatprep.subr.mxu0 0.0
        %707 = vmatpush1.msra.mxu0 0.0
        %708 = vmatprep.subr.mxu0 0.0
        %709 = vmatpush1.msra.mxu0 0.0
        %710 = vmatprep.subr.mxu0 0.0
        %711 = vmatpush1.msra.mxu0 0.0
        %712 = vmatprep.subr.mxu0 0.0
        %713 = vmatpush1.msra.mxu0 0.0
        %714 = vmatprep.subr.mxu0 0.0
        %715 = vmatpush1.msra.mxu0 0.0
        %716 = vmatprep.mubr.f32.mxu0 0.0
        %717 = vmatmul.mubr.f32.gmra.mrb[0].mxu0 %v650
        %v718 = vpop.f32.mrb[0].mxu0
        %v719 = vadd.f32 0.0, %v718
        %v720 = vpop.f32.mrb[0].mxu0
        %721 = vdwg.mxu0
        %722 = vst.msk [vmem:[#allocation4] sm:$0xff] %vm560, %v719
        %v723 = vld [vmem:[#allocation3] sm:$0xff]
        %725 = vrot.lane.b32.xlu0 %v723, 120
        %v726 = vpop.permute.xlu0 %725
        %727 = vrot.lane.b32.xlu0 %v723, 88
        %v728 = vpop.permute.xlu0 %727
        %v729 = vsel %vm560, %v726, 0
        %v731 = vsel %vm560, %v728, 0
        %733 = vmatprep.subr.mxu0 0.0
        %734 = vmatpush1.xpose.msra.mxu0 %v731
        %735 = vmatprep.subr.mxu0 0.0
        %736 = vmatpush1.xpose.msra.mxu0 0.0
        %737 = vmatprep.subr.mxu0 0.0
        %738 = vmatpush1.xpose.msra.mxu0 0.0
        %739 = vmatprep.subr.mxu0 0.0
        %740 = vmatpush1.xpose.msra.mxu0 0.0
        %741 = vmatprep.subr.mxu0 0.0
        %742 = vmatpush1.xpose.msra.mxu0 0.0
        %743 = vmatprep.subr.mxu0 0.0
        %744 = vmatpush1.xpose.msra.mxu0 0.0
        %745 = vmatprep.subr.mxu0 0.0
        %746 = vmatpush1.xpose.msra.mxu0 0.0
        %747 = vmatprep.subr.mxu0 0.0
        %748 = vmatpush1.xpose.msra.mxu0 0.0
        %749 = vmatprep.subr.mxu0 0.0
        %750 = vmatpush1.xpose.msra.mxu0 0.0
        %751 = vmatprep.subr.mxu0 0.0
        %752 = vmatpush1.xpose.msra.mxu0 0.0
        %753 = vmatprep.subr.mxu0 0.0
        %754 = vmatpush1.xpose.msra.mxu0 0.0
        %755 = vmatprep.subr.mxu0 0.0
        %756 = vmatpush1.xpose.msra.mxu0 0.0
        %757 = vmatprep.subr.mxu0 0.0
        %758 = vmatpush1.xpose.msra.mxu0 0.0
        %759 = vmatprep.subr.mxu0 0.0
        %760 = vmatpush1.xpose.msra.mxu0 0.0
        %761 = vmatprep.subr.mxu0 0.0
        %762 = vmatpush1.xpose.msra.mxu0 0.0
        %763 = vmatprep.subr.mxu0 0.0
        %764 = vmatpush1.xpose.msra.mxu0 0.0
        %765 = vmatprep.subr.mxu0 0.0
        %766 = vmatpush1.xpose.msra.mxu0 0.0
        %767 = vmatprep.subr.mxu0 0.0
        %768 = vmatpush1.xpose.msra.mxu0 0.0
        %769 = vmatprep.subr.mxu0 0.0
        %770 = vmatpush1.xpose.msra.mxu0 0.0
        %771 = vmatprep.subr.mxu0 0.0
        %772 = vmatpush1.xpose.msra.mxu0 0.0
        %773 = vmatprep.subr.mxu0 0.0
        %774 = vmatpush1.xpose.msra.mxu0 0.0
        %775 = vmatprep.subr.mxu0 0.0
        %776 = vmatpush1.xpose.msra.mxu0 0.0
        %777 = vmatprep.subr.mxu0 0.0
        %778 = vmatpush1.xpose.msra.mxu0 0.0
        %779 = vmatprep.subr.mxu0 0.0
        %780 = vmatpush1.xpose.msra.mxu0 0.0
        %781 = vmatprep.subr.mxu0 0.0
        %782 = vmatpush1.xpose.msra.mxu0 0.0
        %783 = vmatprep.subr.mxu0 0.0
        %784 = vmatpush1.xpose.msra.mxu0 0.0
        %785 = vmatprep.subr.mxu0 0.0
        %786 = vmatpush1.xpose.msra.mxu0 0.0
        %787 = vmatprep.subr.mxu0 0.0
        %788 = vmatpush1.xpose.msra.mxu0 0.0
        %789 = vmatprep.subr.mxu0 0.0
        %790 = vmatpush1.xpose.msra.mxu0 0.0
        %791 = vmatprep.subr.mxu0 0.0
        %792 = vmatpush1.xpose.msra.mxu0 0.0
        %793 = vmatprep.subr.mxu0 0.0
        %794 = vmatpush1.xpose.msra.mxu0 0.0
        %795 = vmatprep.subr.mxu0 0.0
        %796 = vmatpush1.xpose.msra.mxu0 0.0
        %797 = vmatprep.mubr.f32.mxu0 0.0
        %798 = vmatmul.mubr.f32.gmra.mrb[0].mxu0 %v729
        %v799 = vpop.f32.mrb[0].mxu0
        %v800 = vadd.f32 0.0, %v799
        %v801 = vpop.f32.mrb[0].mxu0
        %802 = vdwg.mxu0
        %v803 = vsel %vm560, %v800, -inf
        %804 = vmax.xlane.f32.xlu0 %v803
        %v805 = vpop.xlane.xlu0 %804
        %v806 = vsub.f32 %v800, %v805
        %v807 = vmul.f32 %v806, 1.442695
        %v808 = vpow.pop %v807
        %v809 = vsel %vm560, %v808, 0.0
        %810 = vadd.xlane.f32.xlu0 %v809
        %v811 = vpop.xlane.xlu0 %810
        %v812 = vrcp.pop %v811
        %v813 = vmul.f32 %v808, %v812
        %814 = vrot.lane.b32.xlu0 %v723, 56
        %v815 = vpop.permute.xlu0 %814
        %v818 = vsel %vm560, %v813, 0
        %820 = vmatprep.subr.mxu0 0.0
        %821 = vmatpush1.msra.mxu0 %v815
        %822 = vmatprep.subr.mxu0 0.0
        %823 = vmatpush1.msra.mxu0 0.0
        %824 = vmatprep.subr.mxu0 0.0
        %825 = vmatpush1.msra.mxu0 0.0
        %826 = vmatprep.subr.mxu0 0.0
        %827 = vmatpush1.msra.mxu0 0.0
        %828 = vmatprep.subr.mxu0 0.0
        %829 = vmatpush1.msra.mxu0 0.0
        %830 = vmatprep.subr.mxu0 0.0
        %831 = vmatpush1.msra.mxu0 0.0
        %832 = vmatprep.subr.mxu0 0.0
        %833 = vmatpush1.msra.mxu0 0.0
        %834 = vmatprep.subr.mxu0 0.0
        %835 = vmatpush1.msra.mxu0 0.0
        %836 = vmatprep.subr.mxu0 0.0
        %837 = vmatpush1.msra.mxu0 0.0
        %838 = vmatprep.subr.mxu0 0.0
        %839 = vmatpush1.msra.mxu0 0.0
        %840 = vmatprep.subr.mxu0 0.0
        %841 = vmatpush1.msra.mxu0 0.0
        %842 = vmatprep.subr.mxu0 0.0
        %843 = vmatpush1.msra.mxu0 0.0
        %844 = vmatprep.subr.mxu0 0.0
        %845 = vmatpush1.msra.mxu0 0.0
        %846 = vmatprep.subr.mxu0 0.0
        %847 = vmatpush1.msra.mxu0 0.0
        %848 = vmatprep.subr.mxu0 0.0
        %849 = vmatpush1.msra.mxu0 0.0
        %850 = vmatprep.subr.mxu0 0.0
        %851 = vmatpush1.msra.mxu0 0.0
        %852 = vmatprep.subr.mxu0 0.0
        %853 = vmatpush1.msra.mxu0 0.0
        %854 = vmatprep.subr.mxu0 0.0
        %855 = vmatpush1.msra.mxu0 0.0
        %856 = vmatprep.subr.mxu0 0.0
        %857 = vmatpush1.msra.mxu0 0.0
        %858 = vmatprep.subr.mxu0 0.0
        %859 = vmatpush1.msra.mxu0 0.0
        %860 = vmatprep.subr.mxu0 0.0
        %861 = vmatpush1.msra.mxu0 0.0
        %862 = vmatprep.subr.mxu0 0.0
        %863 = vmatpush1.msra.mxu0 0.0
        %864 = vmatprep.subr.mxu0 0.0
        %865 = vmatpush1.msra.mxu0 0.0
        %866 = vmatprep.subr.mxu0 0.0
        %867 = vmatpush1.msra.mxu0 0.0
        %868 = vmatprep.subr.mxu0 0.0
        %869 = vmatpush1.msra.mxu0 0.0
        %870 = vmatprep.subr.mxu0 0.0
        %871 = vmatpush1.msra.mxu0 0.0
        %872 = vmatprep.subr.mxu0 0.0
        %873 = vmatpush1.msra.mxu0 0.0
        %874 = vmatprep.subr.mxu0 0.0
        %875 = vmatpush1.msra.mxu0 0.0
        %876 = vmatprep.subr.mxu0 0.0
        %877 = vmatpush1.msra.mxu0 0.0
        %878 = vmatprep.subr.mxu0 0.0
        %879 = vmatpush1.msra.mxu0 0.0
        %880 = vmatprep.subr.mxu0 0.0
        %881 = vmatpush1.msra.mxu0 0.0
        %882 = vmatprep.subr.mxu0 0.0
        %883 = vmatpush1.msra.mxu0 0.0
        %884 = vmatprep.mubr.f32.mxu0 0.0
        %885 = vmatmul.mubr.f32.gmra.mrb[0].mxu0 %v818
        %v886 = vpop.f32.mrb[0].mxu0
        %v887 = vadd.f32 0.0, %v886
        %v888 = vpop.f32.mrb[0].mxu0
        %889 = vdwg.mxu0
        %891 = vrot.lane.b32.xlu0 %v887, 8
        %v892 = vpop.permute.xlu0 %891
        %vm894 = vcmask 130112
        %895 = vst.msk [vmem:[#allocation4] sm:$0xff] %vm894, %v892
        %v896 = vld [vmem:[#allocation3] sm:$0xff]
        %898 = vrot.lane.b32.xlu0 %v896, 112
        %v899 = vpop.permute.xlu0 %898
        %900 = vrot.lane.b32.xlu0 %v896, 80
        %v901 = vpop.permute.xlu0 %900
        %v902 = vsel %vm560, %v899, 0
        %v904 = vsel %vm560, %v901, 0
        %906 = vmatprep.subr.mxu0 0.0
        %907 = vmatpush1.xpose.msra.mxu0 %v904
        %908 = vmatprep.subr.mxu0 0.0
        %909 = vmatpush1.xpose.msra.mxu0 0.0
        %910 = vmatprep.subr.mxu0 0.0
        %911 = vmatpush1.xpose.msra.mxu0 0.0
        %912 = vmatprep.subr.mxu0 0.0
        %913 = vmatpush1.xpose.msra.mxu0 0.0
        %914 = vmatprep.subr.mxu0 0.0
        %915 = vmatpush1.xpose.msra.mxu0 0.0
        %916 = vmatprep.subr.mxu0 0.0
        %917 = vmatpush1.xpose.msra.mxu0 0.0
        %918 = vmatprep.subr.mxu0 0.0
        %919 = vmatpush1.xpose.msra.mxu0 0.0
        %920 = vmatprep.subr.mxu0 0.0
        %921 = vmatpush1.xpose.msra.mxu0 0.0
        %922 = vmatprep.subr.mxu0 0.0
        %923 = vmatpush1.xpose.msra.mxu0 0.0
        %924 = vmatprep.subr.mxu0 0.0
        %925 = vmatpush1.xpose.msra.mxu0 0.0
        %926 = vmatprep.subr.mxu0 0.0
        %927 = vmatpush1.xpose.msra.mxu0 0.0
        %928 = vmatprep.subr.mxu0 0.0
        %929 = vmatpush1.xpose.msra.mxu0 0.0
        %930 = vmatprep.subr.mxu0 0.0
        %931 = vmatpush1.xpose.msra.mxu0 0.0
        %932 = vmatprep.subr.mxu0 0.0
        %933 = vmatpush1.xpose.msra.mxu0 0.0
        %934 = vmatprep.subr.mxu0 0.0
        %935 = vmatpush1.xpose.msra.mxu0 0.0
        %936 = vmatprep.subr.mxu0 0.0
        %937 = vmatpush1.xpose.msra.mxu0 0.0
        %938 = vmatprep.subr.mxu0 0.0
        %939 = vmatpush1.xpose.msra.mxu0 0.0
        %940 = vmatprep.subr.mxu0 0.0
        %941 = vmatpush1.xpose.msra.mxu0 0.0
        %942 = vmatprep.subr.mxu0 0.0
        %943 = vmatpush1.xpose.msra.mxu0 0.0
        %944 = vmatprep.subr.mxu0 0.0
        %945 = vmatpush1.xpose.msra.mxu0 0.0
        %946 = vmatprep.subr.mxu0 0.0
        %947 = vmatpush1.xpose.msra.mxu0 0.0
        %948 = vmatprep.subr.mxu0 0.0
        %949 = vmatpush1.xpose.msra.mxu0 0.0
        %950 = vmatprep.subr.mxu0 0.0
        %951 = vmatpush1.xpose.msra.mxu0 0.0
        %952 = vmatprep.subr.mxu0 0.0
        %953 = vmatpush1.xpose.msra.mxu0 0.0
        %954 = vmatprep.subr.mxu0 0.0
        %955 = vmatpush1.xpose.msra.mxu0 0.0
        %956 = vmatprep.subr.mxu0 0.0
        %957 = vmatpush1.xpose.msra.mxu0 0.0
        %958 = vmatprep.subr.mxu0 0.0
        %959 = vmatpush1.xpose.msra.mxu0 0.0
        %960 = vmatprep.subr.mxu0 0.0
        %961 = vmatpush1.xpose.msra.mxu0 0.0
        %962 = vmatprep.subr.mxu0 0.0
        %963 = vmatpush1.xpose.msra.mxu0 0.0
        %964 = vmatprep.subr.mxu0 0.0
        %965 = vmatpush1.xpose.msra.mxu0 0.0
        %966 = vmatprep.subr.mxu0 0.0
        %967 = vmatpush1.xpose.msra.mxu0 0.0
        %968 = vmatprep.subr.mxu0 0.0
        %969 = vmatpush1.xpose.msra.mxu0 0.0
        %970 = vmatprep.mubr.f32.mxu0 0.0
        %971 = vmatmul.mubr.f32.gmra.mrb[0].mxu0 %v902
        %v972 = vpop.f32.mrb[0].mxu0
        %v973 = vadd.f32 0.0, %v972
        %v974 = vpop.f32.mrb[0].mxu0
        %975 = vdwg.mxu0
        %v976 = vsel %vm560, %v973, -inf
        %977 = vmax.xlane.f32.xlu0 %v976
        %v978 = vpop.xlane.xlu0 %977
        %v979 = vsub.f32 %v973, %v978
        %v980 = vmul.f32 %v979, 1.442695
        %v981 = vpow.pop %v980
        %v982 = vsel %vm560, %v981, 0.0
        %983 = vadd.xlane.f32.xlu0 %v982
        %v984 = vpop.xlane.xlu0 %983
        %v985 = vrcp.pop %v984
        %v986 = vmul.f32 %v981, %v985
        %987 = vrot.lane.b32.xlu0 %v896, 48
        %v988 = vpop.permute.xlu0 %987
        %v991 = vsel %vm560, %v986, 0
        %993 = vmatprep.subr.mxu0 0.0
        %994 = vmatpush1.msra.mxu0 %v988
        %995 = vmatprep.subr.mxu0 0.0
        %996 = vmatpush1.msra.mxu0 0.0
        %997 = vmatprep.subr.mxu0 0.0
        %998 = vmatpush1.msra.mxu0 0.0
        %999 = vmatprep.subr.mxu0 0.0
        %1000 = vmatpush1.msra.mxu0 0.0
        %1001 = vmatprep.subr.mxu0 0.0
        %1002 = vmatpush1.msra.mxu0 0.0
        %1003 = vmatprep.subr.mxu0 0.0
        %1004 = vmatpush1.msra.mxu0 0.0
        %1005 = vmatprep.subr.mxu0 0.0
        %1006 = vmatpush1.msra.mxu0 0.0
        %1007 = vmatprep.subr.mxu0 0.0
        %1008 = vmatpush1.msra.mxu0 0.0
        %1009 = vmatprep.subr.mxu0 0.0
        %1010 = vmatpush1.msra.mxu0 0.0
        %1011 = vmatprep.subr.mxu0 0.0
        %1012 = vmatpush1.msra.mxu0 0.0
        %1013 = vmatprep.subr.mxu0 0.0
        %1014 = vmatpush1.msra.mxu0 0.0
        %1015 = vmatprep.subr.mxu0 0.0
        %1016 = vmatpush1.msra.mxu0 0.0
        %1017 = vmatprep.subr.mxu0 0.0
        %1018 = vmatpush1.msra.mxu0 0.0
        %1019 = vmatprep.subr.mxu0 0.0
        %1020 = vmatpush1.msra.mxu0 0.0
        %1021 = vmatprep.subr.mxu0 0.0
        %1022 = vmatpush1.msra.mxu0 0.0
        %1023 = vmatprep.subr.mxu0 0.0
        %1024 = vmatpush1.msra.mxu0 0.0
        %1025 = vmatprep.subr.mxu0 0.0
        %1026 = vmatpush1.msra.mxu0 0.0
        %1027 = vmatprep.subr.mxu0 0.0
        %1028 = vmatpush1.msra.mxu0 0.0
        %1029 = vmatprep.subr.mxu0 0.0
        %1030 = vmatpush1.msra.mxu0 0.0
        %1031 = vmatprep.subr.mxu0 0.0
        %1032 = vmatpush1.msra.mxu0 0.0
        %1033 = vmatprep.subr.mxu0 0.0
        %1034 = vmatpush1.msra.mxu0 0.0
        %1035 = vmatprep.subr.mxu0 0.0
        %1036 = vmatpush1.msra.mxu0 0.0
        %1037 = vmatprep.subr.mxu0 0.0
        %1038 = vmatpush1.msra.mxu0 0.0
        %1039 = vmatprep.subr.mxu0 0.0
        %1040 = vmatpush1.msra.mxu0 0.0
        %1041 = vmatprep.subr.mxu0 0.0
        %1042 = vmatpush1.msra.mxu0 0.0
        %1043 = vmatprep.subr.mxu0 0.0
        %1044 = vmatpush1.msra.mxu0 0.0
        %1045 = vmatprep.subr.mxu0 0.0
        %1046 = vmatpush1.msra.mxu0 0.0
        %1047 = vmatprep.subr.mxu0 0.0
        %1048 = vmatpush1.msra.mxu0 0.0
        %1049 = vmatprep.subr.mxu0 0.0
        %1050 = vmatpush1.msra.mxu0 0.0
        %1051 = vmatprep.subr.mxu0 0.0
        %1052 = vmatpush1.msra.mxu0 0.0
        %1053 = vmatprep.subr.mxu0 0.0
        %1054 = vmatpush1.msra.mxu0 0.0
        %1055 = vmatprep.subr.mxu0 0.0
        %1056 = vmatpush1.msra.mxu0 0.0
        %1057 = vmatprep.mubr.f32.mxu0 0.0
        %1058 = vmatmul.mubr.f32.gmra.mrb[0].mxu0 %v991
        %v1059 = vpop.f32.mrb[0].mxu0
        %v1060 = vadd.f32 0.0, %v1059
        %v1061 = vpop.f32.mrb[0].mxu0
        %1062 = vdwg.mxu0
        %1064 = vrot.lane.b32.xlu0 %v1060, 16
        %v1065 = vpop.permute.xlu0 %1064
        %vm1067 = vcmask 195712
        %1068 = vst.msk [vmem:[#allocation4] sm:$0xff] %vm1067, %v1065
        %v1069 = vld [vmem:[#allocation3] sm:$0xff]
        %1071 = vrot.lane.b32.xlu0 %v1069, 104
        %v1072 = vpop.permute.xlu0 %1071
        %1073 = vrot.lane.b32.xlu0 %v1069, 72
        %v1074 = vpop.permute.xlu0 %1073
        %v1075 = vsel %vm560, %v1072, 0
        %v1077 = vsel %vm560, %v1074, 0
        %1079 = vmatprep.subr.mxu0 0.0
        %1080 = vmatpush1.xpose.msra.mxu0 %v1077
        %1081 = vmatprep.subr.mxu0 0.0
        %1082 = vmatpush1.xpose.msra.mxu0 0.0
        %1083 = vmatprep.subr.mxu0 0.0
        %1084 = vmatpush1.xpose.msra.mxu0 0.0
        %1085 = vmatprep.subr.mxu0 0.0
        %1086 = vmatpush1.xpose.msra.mxu0 0.0
        %1087 = vmatprep.subr.mxu0 0.0
        %1088 = vmatpush1.xpose.msra.mxu0 0.0
        %1089 = vmatprep.subr.mxu0 0.0
        %1090 = vmatpush1.xpose.msra.mxu0 0.0
        %1091 = vmatprep.subr.mxu0 0.0
        %1092 = vmatpush1.xpose.msra.mxu0 0.0
        %1093 = vmatprep.subr.mxu0 0.0
        %1094 = vmatpush1.xpose.msra.mxu0 0.0
        %1095 = vmatprep.subr.mxu0 0.0
        %1096 = vmatpush1.xpose.msra.mxu0 0.0
        %1097 = vmatprep.subr.mxu0 0.0
        %1098 = vmatpush1.xpose.msra.mxu0 0.0
        %1099 = vmatprep.subr.mxu0 0.0
        %1100 = vmatpush1.xpose.msra.mxu0 0.0
        %1101 = vmatprep.subr.mxu0 0.0
        %1102 = vmatpush1.xpose.msra.mxu0 0.0
        %1103 = vmatprep.subr.mxu0 0.0
        %1104 = vmatpush1.xpose.msra.mxu0 0.0
        %1105 = vmatprep.subr.mxu0 0.0
        %1106 = vmatpush1.xpose.msra.mxu0 0.0
        %1107 = vmatprep.subr.mxu0 0.0
        %1108 = vmatpush1.xpose.msra.mxu0 0.0
        %1109 = vmatprep.subr.mxu0 0.0
        %1110 = vmatpush1.xpose.msra.mxu0 0.0
        %1111 = vmatprep.subr.mxu0 0.0
        %1112 = vmatpush1.xpose.msra.mxu0 0.0
        %1113 = vmatprep.subr.mxu0 0.0
        %1114 = vmatpush1.xpose.msra.mxu0 0.0
        %1115 = vmatprep.subr.mxu0 0.0
        %1116 = vmatpush1.xpose.msra.mxu0 0.0
        %1117 = vmatprep.subr.mxu0 0.0
        %1118 = vmatpush1.xpose.msra.mxu0 0.0
        %1119 = vmatprep.subr.mxu0 0.0
        %1120 = vmatpush1.xpose.msra.mxu0 0.0
        %1121 = vmatprep.subr.mxu0 0.0
        %1122 = vmatpush1.xpose.msra.mxu0 0.0
        %1123 = vmatprep.subr.mxu0 0.0
        %1124 = vmatpush1.xpose.msra.mxu0 0.0
        %1125 = vmatprep.subr.mxu0 0.0
        %1126 = vmatpush1.xpose.msra.mxu0 0.0
        %1127 = vmatprep.subr.mxu0 0.0
        %1128 = vmatpush1.xpose.msra.mxu0 0.0
        %1129 = vmatprep.subr.mxu0 0.0
        %1130 = vmatpush1.xpose.msra.mxu0 0.0
        %1131 = vmatprep.subr.mxu0 0.0
        %1132 = vmatpush1.xpose.msra.mxu0 0.0
        %1133 = vmatprep.subr.mxu0 0.0
        %1134 = vmatpush1.xpose.msra.mxu0 0.0
        %1135 = vmatprep.subr.mxu0 0.0
        %1136 = vmatpush1.xpose.msra.mxu0 0.0
        %1137 = vmatprep.subr.mxu0 0.0
        %1138 = vmatpush1.xpose.msra.mxu0 0.0
        %1139 = vmatprep.subr.mxu0 0.0
        %1140 = vmatpush1.xpose.msra.mxu0 0.0
        %1141 = vmatprep.subr.mxu0 0.0
        %1142 = vmatpush1.xpose.msra.mxu0 0.0
        %1143 = vmatprep.mubr.f32.mxu0 0.0
        %1144 = vmatmul.mubr.f32.gmra.mrb[0].mxu0 %v1075
        %v1145 = vpop.f32.mrb[0].mxu0
        %v1146 = vadd.f32 0.0, %v1145
        %v1147 = vpop.f32.mrb[0].mxu0
        %1148 = vdwg.mxu0
        %v1149 = vsel %vm560, %v1146, -inf
        %1150 = vmax.xlane.f32.xlu0 %v1149
        %v1151 = vpop.xlane.xlu0 %1150
        %v1152 = vsub.f32 %v1146, %v1151
        %v1153 = vmul.f32 %v1152, 1.442695
        %v1154 = vpow.pop %v1153
        %v1155 = vsel %vm560, %v1154, 0.0
        %1156 = vadd.xlane.f32.xlu0 %v1155
        %v1157 = vpop.xlane.xlu0 %1156
        %v1158 = vrcp.pop %v1157
        %v1159 = vmul.f32 %v1154, %v1158
        %1160 = vrot.lane.b32.xlu0 %v1069, 40
        %v1161 = vpop.permute.xlu0 %1160
        %v1164 = vsel %vm560, %v1159, 0
        %1166 = vmatprep.subr.mxu0 0.0
        %1167 = vmatpush1.msra.mxu0 %v1161
        %1168 = vmatprep.subr.mxu0 0.0
        %1169 = vmatpush1.msra.mxu0 0.0
        %1170 = vmatprep.subr.mxu0 0.0
        %1171 = vmatpush1.msra.mxu0 0.0
        %1172 = vmatprep.subr.mxu0 0.0
        %1173 = vmatpush1.msra.mxu0 0.0
        %1174 = vmatprep.subr.mxu0 0.0
        %1175 = vmatpush1.msra.mxu0 0.0
        %1176 = vmatprep.subr.mxu0 0.0
        %1177 = vmatpush1.msra.mxu0 0.0
        %1178 = vmatprep.subr.mxu0 0.0
        %1179 = vmatpush1.msra.mxu0 0.0
        %1180 = vmatprep.subr.mxu0 0.0
        %1181 = vmatpush1.msra.mxu0 0.0
        %1182 = vmatprep.subr.mxu0 0.0
        %1183 = vmatpush1.msra.mxu0 0.0
        %1184 = vmatprep.subr.mxu0 0.0
        %1185 = vmatpush1.msra.mxu0 0.0
        %1186 = vmatprep.subr.mxu0 0.0
        %1187 = vmatpush1.msra.mxu0 0.0
        %1188 = vmatprep.subr.mxu0 0.0
        %1189 = vmatpush1.msra.mxu0 0.0
        %1190 = vmatprep.subr.mxu0 0.0
        %1191 = vmatpush1.msra.mxu0 0.0
        %1192 = vmatprep.subr.mxu0 0.0
        %1193 = vmatpush1.msra.mxu0 0.0
        %1194 = vmatprep.subr.mxu0 0.0
        %1195 = vmatpush1.msra.mxu0 0.0
        %1196 = vmatprep.subr.mxu0 0.0
        %1197 = vmatpush1.msra.mxu0 0.0
        %1198 = vmatprep.subr.mxu0 0.0
        %1199 = vmatpush1.msra.mxu0 0.0
        %1200 = vmatprep.subr.mxu0 0.0
        %1201 = vmatpush1.msra.mxu0 0.0
        %1202 = vmatprep.subr.mxu0 0.0
        %1203 = vmatpush1.msra.mxu0 0.0
        %1204 = vmatprep.subr.mxu0 0.0
        %1205 = vmatpush1.msra.mxu0 0.0
        %1206 = vmatprep.subr.mxu0 0.0
        %1207 = vmatpush1.msra.mxu0 0.0
        %1208 = vmatprep.subr.mxu0 0.0
        %1209 = vmatpush1.msra.mxu0 0.0
        %1210 = vmatprep.subr.mxu0 0.0
        %1211 = vmatpush1.msra.mxu0 0.0
        %1212 = vmatprep.subr.mxu0 0.0
        %1213 = vmatpush1.msra.mxu0 0.0
        %1214 = vmatprep.subr.mxu0 0.0
        %1215 = vmatpush1.msra.mxu0 0.0
        %1216 = vmatprep.subr.mxu0 0.0
        %1217 = vmatpush1.msra.mxu0 0.0
        %1218 = vmatprep.subr.mxu0 0.0
        %1219 = vmatpush1.msra.mxu0 0.0
        %1220 = vmatprep.subr.mxu0 0.0
        %1221 = vmatpush1.msra.mxu0 0.0
        %1222 = vmatprep.subr.mxu0 0.0
        %1223 = vmatpush1.msra.mxu0 0.0
        %1224 = vmatprep.subr.mxu0 0.0
        %1225 = vmatpush1.msra.mxu0 0.0
        %1226 = vmatprep.subr.mxu0 0.0
        %1227 = vmatpush1.msra.mxu0 0.0
        %1228 = vmatprep.subr.mxu0 0.0
        %1229 = vmatpush1.msra.mxu0 0.0
        %1230 = vmatprep.mubr.f32.mxu0 0.0
        %1231 = vmatmul.mubr.f32.gmra.mrb[0].mxu0 %v1164
        %v1232 = vpop.f32.mrb[0].mxu0
        %v1233 = vadd.f32 0.0, %v1232
        %v1234 = vpop.f32.mrb[0].mxu0
        %1235 = vdwg.mxu0
        %1237 = vrot.lane.b32.xlu0 %v1233, 24
        %v1238 = vpop.permute.xlu0 %1237
        %vm1240 = vcmask 261312
        %1241 = vst.msk [vmem:[#allocation4] sm:$0xff] %vm1240, %v1238
        %v1242 = vld [vmem:[#allocation4] sm:$0xff]
        %v1243 = vld [vmem:[%s5] sm:$0xff]
        %v1244 = vld [vmem:[%s5 + $0x8] sm:$0xff]
        %v1245 = vld [vmem:[%s5 + $0x10] sm:$0xff]
        %v1246 = vld [vmem:[%s5 + $0x18] sm:$0xff]
        %v1248 = vsel %vm439, %v1242, 0
        %1250 = vmatprep.subr.mxu0 0.0
        %1251 = vmatpush1.msra.mxu0 %v1243
        %1252 = vmatprep.subr.mxu0 0.0
        %1253 = vmatpush1.msra.mxu0 %v1244
        %1254 = vmatprep.subr.mxu0 0.0
        %1255 = vmatpush1.msra.mxu0 %v1245
        %1256 = vmatprep.subr.mxu0 0.0
        %1257 = vmatpush1.msra.mxu0 %v1246
        %1258 = vmatprep.subr.mxu0 0.0
        %1259 = vmatpush1.msra.mxu0 0.0
        %1260 = vmatprep.subr.mxu0 0.0
        %1261 = vmatpush1.msra.mxu0 0.0
        %1262 = vmatprep.subr.mxu0 0.0
        %1263 = vmatpush1.msra.mxu0 0.0
        %1264 = vmatprep.subr.mxu0 0.0
        %1265 = vmatpush1.msra.mxu0 0.0
        %1266 = vmatprep.subr.mxu0 0.0
        %1267 = vmatpush1.msra.mxu0 0.0
        %1268 = vmatprep.subr.mxu0 0.0
        %1269 = vmatpush1.msra.mxu0 0.0
        %1270 = vmatprep.subr.mxu0 0.0
        %1271 = vmatpush1.msra.mxu0 0.0
        %1272 = vmatprep.subr.mxu0 0.0
        %1273 = vmatpush1.msra.mxu0 0.0
        %1274 = vmatprep.subr.mxu0 0.0
        %1275 = vmatpush1.msra.mxu0 0.0
        %1276 = vmatprep.subr.mxu0 0.0
        %1277 = vmatpush1.msra.mxu0 0.0
        %1278 = vmatprep.subr.mxu0 0.0
        %1279 = vmatpush1.msra.mxu0 0.0
        %1280 = vmatprep.subr.mxu0 0.0
        %1281 = vmatpush1.msra.mxu0 0.0
        %1282 = vmatprep.subr.mxu0 0.0
        %1283 = vmatpush1.msra.mxu0 0.0
        %1284 = vmatprep.subr.mxu0 0.0
        %1285 = vmatpush1.msra.mxu0 0.0
        %1286 = vmatprep.subr.mxu0 0.0
        %1287 = vmatpush1.msra.mxu0 0.0
        %1288 = vmatprep.subr.mxu0 0.0
        %1289 = vmatpush1.msra.mxu0 0.0
        %1290 = vmatprep.subr.mxu0 0.0
        %1291 = vmatpush1.msra.mxu0 0.0
        %1292 = vmatprep.subr.mxu0 0.0
        %1293 = vmatpush1.msra.mxu0 0.0
        %1294 = vmatprep.subr.mxu0 0.0
        %1295 = vmatpush1.msra.mxu0 0.0
        %1296 = vmatprep.subr.mxu0 0.0
        %1297 = vmatpush1.msra.mxu0 0.0
        %1298 = vmatprep.subr.mxu0 0.0
        %1299 = vmatpush1.msra.mxu0 0.0
        %1300 = vmatprep.subr.mxu0 0.0
        %1301 = vmatpush1.msra.mxu0 0.0
        %1302 = vmatprep.subr.mxu0 0.0
        %1303 = vmatpush1.msra.mxu0 0.0
        %1304 = vmatprep.subr.mxu0 0.0
        %1305 = vmatpush1.msra.mxu0 0.0
        %1306 = vmatprep.subr.mxu0 0.0
        %1307 = vmatpush1.msra.mxu0 0.0
        %1308 = vmatprep.subr.mxu0 0.0
        %1309 = vmatpush1.msra.mxu0 0.0
        %1310 = vmatprep.subr.mxu0 0.0
        %1311 = vmatpush1.msra.mxu0 0.0
        %1312 = vmatprep.subr.mxu0 0.0
        %1313 = vmatpush1.msra.mxu0 0.0
        %1314 = vmatprep.mubr.f32.mxu0 0.0
        %1315 = vmatmul.mubr.f32.gmra.mrb[0].mxu0 %v1248
        %v1316 = vpop.f32.mrb[0].mxu0
        %v1317 = vadd.f32 0.0, %v1316
        %v1318 = vpop.f32.mrb[0].mxu0
        %1319 = vdwg.mxu0
        %v1320 = vld [vmem:[%s435] sm:$0xff]
        %v1321 = vadd.f32 %v1320, %v1317
        %v1322 = vld [vmem:[%s6] sm:$0x1]
        %v1324 = vlaneseq
        %v1325 = vshrl.u32 %v1324, 7
        %v1326 = vsub.s32 0, %v1325
        %v1327 = vrot.slane %v1322, %v1326
        %v1329 = vadd.f32 %v1321, %v1327
        %1330 = vst.msk [vmem:[#allocation5] sm:$0xff] %vm439, %v1329
        %v1331 = vld [vmem:[#allocation5] sm:$0xff]
        %v1332 = vld [vmem:[%s7] sm:$0x1]
        %v1333 = vld [vmem:[%s8] sm:$0x1]
        %v1334 = vsel %vm439, %v1331, 0.0
        %1335 = vadd.xlane.f32.xlu0 %v1334
        %v1336 = vpop.xlane.xlu0 %1335
        %v1337 = vmul.f32 %v1336, %v443
        %v1338 = vsub.f32 %v1331, %v1337
        %v1339 = vmul.f32 %v1338, %v1338
        %v1340 = vsel %vm439, %v1339, 0.0
        %1341 = vadd.xlane.f32.xlu0 %v1340
        %v1342 = vpop.xlane.xlu0 %1341
        %v1343 = vmul.f32 %v1342, %v443
        %v1344 = vadd.f32 %v1343, 1e-05
        %v1345 = vrsqrt.pop %v1344
        %v1346 = vmul.f32 %v1338, %v1345
        %v1348 = vlaneseq
        %v1349 = vshrl.u32 %v1348, 7
        %v1350 = vsub.s32 0, %v1349
        %v1351 = vrot.slane %v1332, %v1350
        %v1353 = vmul.f32 %v1346, %v1351
        %v1355 = vlaneseq
        %v1356 = vshrl.u32 %v1355, 7
        %v1357 = vsub.s32 0, %v1356
        %v1358 = vrot.slane %v1333, %v1357
        %v1360 = vadd.f32 %v1353, %v1358
        %1361 = vst.msk [vmem:[#allocation2] sm:$0xff] %vm439, %v1360
        %v1362 = vld [vmem:[#allocation2] sm:$0xff]
        %v1363 = vld [vmem:[%s9] sm:$0xff]
        %v1364 = vld [vmem:[%s9 + $0x8] sm:$0xff]
        %v1365 = vld [vmem:[%s9 + $0x10] sm:$0xff]
        %v1366 = vld [vmem:[%s9 + $0x18] sm:$0xff]
        %v1367 = vld [vmem:[%s10] sm:$0x1]
        %v1369 = vlaneseq
        %v1370 = vshrl.u32 %v1369, 7
        %v1371 = vsub.s32 0, %v1370
        %v1372 = vrot.slane %v1367, %v1371
        %v1375 = vsel %vm439, %v1362, 0
        %1377 = vmatprep.subr.mxu0 0.0
        %1378 = vmatpush1.msra.mxu0 %v1363
        %1379 = vmatprep.subr.mxu0 0.0
        %1380 = vmatpush1.msra.mxu0 %v1364
        %1381 = vmatprep.subr.mxu0 0.0
        %1382 = vmatpush1.msra.mxu0 %v1365
        %1383 = vmatprep.subr.mxu0 0.0
        %1384 = vmatpush1.msra.mxu0 %v1366
        %1385 = vmatprep.subr.mxu0 0.0
        %1386 = vmatpush1.msra.mxu0 0.0
        %1387 = vmatprep.subr.mxu0 0.0
        %1388 = vmatpush1.msra.mxu0 0.0
        %1389 = vmatprep.subr.mxu0 0.0
        %1390 = vmatpush1.msra.mxu0 0.0
        %1391 = vmatprep.subr.mxu0 0.0
        %1392 = vmatpush1.msra.mxu0 0.0
        %1393 = vmatprep.subr.mxu0 0.0
        %1394 = vmatpush1.msra.mxu0 0.0
        %1395 = vmatprep.subr.mxu0 0.0
        %1396 = vmatpush1.msra.mxu0 0.0
        %1397 = vmatprep.subr.mxu0 0.0
        %1398 = vmatpush1.msra.mxu0 0.0
        %1399 = vmatprep.subr.mxu0 0.0
        %1400 = vmatpush1.msra.mxu0 0.0
        %1401 = vmatprep.subr.mxu0 0.0
        %1402 = vmatpush1.msra.mxu0 0.0
        %1403 = vmatprep.subr.mxu0 0.0
        %1404 = vmatpush1.msra.mxu0 0.0
        %1405 = vmatprep.subr.mxu0 0.0
        %1406 = vmatpush1.msra.mxu0 0.0
        %1407 = vmatprep.subr.mxu0 0.0
        %1408 = vmatpush1.msra.mxu0 0.0
        %1409 = vmatprep.subr.mxu0 0.0
        %1410 = vmatpush1.msra.mxu0 0.0
        %1411 = vmatprep.subr.mxu0 0.0
        %1412 = vmatpush1.msra.mxu0 0.0
        %1413 = vmatprep.subr.mxu0 0.0
        %1414 = vmatpush1.msra.mxu0 0.0
        %1415 = vmatprep.subr.mxu0 0.0
        %1416 = vmatpush1.msra.mxu0 0.0
        %1417 = vmatprep.subr.mxu0 0.0
        %1418 = vmatpush1.msra.mxu0 0.0
        %1419 = vmatprep.subr.mxu0 0.0
        %1420 = vmatpush1.msra.mxu0 0.0
        %1421 = vmatprep.subr.mxu0 0.0
        %1422 = vmatpush1.msra.mxu0 0.0
        %1423 = vmatprep.subr.mxu0 0.0
        %1424 = vmatpush1.msra.mxu0 0.0
        %1425 = vmatprep.subr.mxu0 0.0
        %1426 = vmatpush1.msra.mxu0 0.0
        %1427 = vmatprep.subr.mxu0 0.0
        %1428 = vmatpush1.msra.mxu0 0.0
        %1429 = vmatprep.subr.mxu0 0.0
        %1430 = vmatpush1.msra.mxu0 0.0
        %1431 = vmatprep.subr.mxu0 0.0
        %1432 = vmatpush1.msra.mxu0 0.0
        %1433 = vmatprep.subr.mxu0 0.0
        %1434 = vmatpush1.msra.mxu0 0.0
        %1435 = vmatprep.subr.mxu0 0.0
        %1436 = vmatpush1.msra.mxu0 0.0
        %1437 = vmatprep.subr.mxu0 0.0
        %1438 = vmatpush1.msra.mxu0 0.0
        %1439 = vmatprep.subr.mxu0 0.0
        %1440 = vmatpush1.msra.mxu0 0.0
        %1441 = vmatprep.mubr.f32.mxu0 0.0
        %1442 = vmatmul.mubr.f32.gmra.mrb[0].mxu0 %v1375
        %v1443 = vpop.f32.mrb[0].mxu0
        %v1444 = vadd.f32 %v1372, %v1443
        %v1445 = vpop.f32.mrb[0].mxu0
        %1446 = vdwg.mxu0
        %v1447 = vmul.f32 %v1444, 0.5
        %v1448 = vmul.f32 %v1444, 0.70710677
        %v1449 = verf.f32.pop %v1448
        %v1450 = vadd.f32 %v1449, 1.0
        %v1451 = vmul.f32 %v1447, %v1450
        %v1452 = vld [vmem:[#allocation5] sm:$0xff]
        %v1453 = vld [vmem:[%s11] sm:$0xff]
        %v1454 = vld [vmem:[%s11 + $0x8] sm:$0xff]
        %v1455 = vld [vmem:[%s11 + $0x10] sm:$0xff]
        %v1456 = vld [vmem:[%s11 + $0x18] sm:$0xff]
        %v1457 = vld [vmem:[%s11 + $0x20] sm:$0xff]
        %v1458 = vld [vmem:[%s11 + $0x28] sm:$0xff]
        %v1459 = vld [vmem:[%s11 + $0x30] sm:$0xff]
        %v1460 = vld [vmem:[%s11 + $0x38] sm:$0xff]
        %v1461 = vld [vmem:[%s11 + $0x40] sm:$0xff]
        %v1462 = vld [vmem:[%s11 + $0x48] sm:$0xff]
        %v1463 = vld [vmem:[%s11 + $0x50] sm:$0xff]
        %v1464 = vld [vmem:[%s11 + $0x58] sm:$0xff]
        %v1465 = vld [vmem:[%s11 + $0x60] sm:$0xff]
        %v1466 = vld [vmem:[%s11 + $0x68] sm:$0xff]
        %v1467 = vld [vmem:[%s11 + $0x70] sm:$0xff]
        %v1468 = vld [vmem:[%s11 + $0x78] sm:$0xff]
        %1469 = vmatprep.subr.mxu0 0.0
        %1470 = vmatpush1.msra.mxu0 %v1453
        %1471 = vmatprep.subr.mxu0 0.0
        %1472 = vmatpush1.msra.mxu0 %v1454
        %1473 = vmatprep.subr.mxu0 0.0
        %1474 = vmatpush1.msra.mxu0 %v1455
        %1475 = vmatprep.subr.mxu0 0.0
        %1476 = vmatpush1.msra.mxu0 %v1456
        %1477 = vmatprep.subr.mxu0 0.0
        %1478 = vmatpush1.msra.mxu0 %v1457
        %1479 = vmatprep.subr.mxu0 0.0
        %1480 = vmatpush1.msra.mxu0 %v1458
        %1481 = vmatprep.subr.mxu0 0.0
        %1482 = vmatpush1.msra.mxu0 %v1459
        %1483 = vmatprep.subr.mxu0 0.0
        %1484 = vmatpush1.msra.mxu0 %v1460
        %1485 = vmatprep.subr.mxu0 0.0
        %1486 = vmatpush1.msra.mxu0 %v1461
        %1487 = vmatprep.subr.mxu0 0.0
        %1488 = vmatpush1.msra.mxu0 %v1462
        %1489 = vmatprep.subr.mxu0 0.0
        %1490 = vmatpush1.msra.mxu0 %v1463
        %1491 = vmatprep.subr.mxu0 0.0
        %1492 = vmatpush1.msra.mxu0 %v1464
        %1493 = vmatprep.subr.mxu0 0.0
        %1494 = vmatpush1.msra.mxu0 %v1465
        %1495 = vmatprep.subr.mxu0 0.0
        %1496 = vmatpush1.msra.mxu0 %v1466
        %1497 = vmatprep.subr.mxu0 0.0
        %1498 = vmatpush1.msra.mxu0 %v1467
        %1499 = vmatprep.subr.mxu0 0.0
        %1500 = vmatpush1.msra.mxu0 %v1468
        %1501 = vmatprep.subr.mxu0 0.0
        %1502 = vmatpush1.msra.mxu0 0.0
        %1503 = vmatprep.subr.mxu0 0.0
        %1504 = vmatpush1.msra.mxu0 0.0
        %1505 = vmatprep.subr.mxu0 0.0
        %1506 = vmatpush1.msra.mxu0 0.0
        %1507 = vmatprep.subr.mxu0 0.0
        %1508 = vmatpush1.msra.mxu0 0.0
        %1509 = vmatprep.subr.mxu0 0.0
        %1510 = vmatpush1.msra.mxu0 0.0
        %1511 = vmatprep.subr.mxu0 0.0
        %1512 = vmatpush1.msra.mxu0 0.0
        %1513 = vmatprep.subr.mxu0 0.0
        %1514 = vmatpush1.msra.mxu0 0.0
        %1515 = vmatprep.subr.mxu0 0.0
        %1516 = vmatpush1.msra.mxu0 0.0
        %1517 = vmatprep.subr.mxu0 0.0
        %1518 = vmatpush1.msra.mxu0 0.0
        %1519 = vmatprep.subr.mxu0 0.0
        %1520 = vmatpush1.msra.mxu0 0.0
        %1521 = vmatprep.subr.mxu0 0.0
        %1522 = vmatpush1.msra.mxu0 0.0
        %1523 = vmatprep.subr.mxu0 0.0
        %1524 = vmatpush1.msra.mxu0 0.0
        %1525 = vmatprep.subr.mxu0 0.0
        %1526 = vmatpush1.msra.mxu0 0.0
        %1527 = vmatprep.subr.mxu0 0.0
        %1528 = vmatpush1.msra.mxu0 0.0
        %1529 = vmatprep.subr.mxu0 0.0
        %1530 = vmatpush1.msra.mxu0 0.0
        %1531 = vmatprep.subr.mxu0 0.0
        %1532 = vmatpush1.msra.mxu0 0.0
        %1533 = vmatprep.mubr.f32.mxu0 0.0
        %1534 = vmatmul.mubr.f32.gmra.mrb[0].mxu0 %v1451
        %v1535 = vpop.f32.mrb[0].mxu0
        %v1536 = vadd.f32 0.0, %v1535
        %v1537 = vpop.f32.mrb[0].mxu0
        %1538 = vdwg.mxu0
        %v1539 = vadd.f32 %v1452, %v1536
        %1540 = vst.msk [vmem:[#allocation5] sm:$0xff] %vm439, %v1539
        %v1541 = vld [vmem:[#allocation5] sm:$0xff]
        %v1542 = vld [vmem:[%s12] sm:$0x1]
        %v1544 = vlaneseq
        %v1545 = vshrl.u32 %v1544, 7
        %v1546 = vsub.s32 0, %v1545
        %v1547 = vrot.slane %v1542, %v1546
        %v1549 = vadd.f32 %v1541, %v1547
        %1550 = vst.msk [vmem:[%s431] sm:$0xff] %vm439, %v1549
        %s1551 = sand.u32 %s313, 1
        %s1552 = scalar_lea.sflag [#allocation7], %s1551
        %s1553 = sand.u32 %s313, 1
        %s1554 = smul.addr %s1553, 8
        %s1555 = scalar_lea.vmem [#allocation6], %s1554
        // Predicated region
        $region73: #{tpu_custom_call.1} parent=71 // pred_check
          %p1556 = pneg %p323
        $region74: #{tpu_custom_call.1} parent=71 // pred_check_branch
          %1558 = sbr.rel (%p1556) target = $region76
        $region75: #{tpu_custom_call.1} parent=71 // pred_region
          %s1560 = ssub.s32 128, 128
          %1561 = vsyncadd %s1552, %s1560
          %s1562 = smul.addr %s27, 128
          %s1563 = scalar_lea.hbm %s13, %s1562
          %s1565 = sshll.u32 %s1555, 4
          %s1566 = int_to_ptr.vmem [resolvable:$true] %s1565
          %1568 = dma.vmem_to_hbm [thread:$0]  %s1566, 128, %s1563, %s1552
        $region76: #{tpu_custom_call.1} parent=71 // pred_fallthru
          _
      $region72: #{tpu_custom_call.1} parent=5 // pred_fallthru
        _
      %p1569 = scmp.le.s32.totalorder 2, %s22
      // Predicated region
      $region77: #{tpu_custom_call.1} parent=5 // pred_check
        %p1570 = pneg %p1569
      $region78: #{tpu_custom_call.1} parent=5 // pred_check_branch
        %1572 = sbr.rel (%p1570) target = $region80
      $region79: #{tpu_custom_call.1} parent=5 // pred_region
        %s1573 = ssub.s32 %s22, 2
        // Predicated region
        $region81: #{tpu_custom_call.1} parent=79 // pred_check
          %p1574 = pneg %p329
        $region82: #{tpu_custom_call.1} parent=79 // pred_check_branch
          %1576 = sbr.rel (%p1574) target = $region84
        $region83: #{tpu_custom_call.1} parent=79 // pred_region
          %s1577 = sand.u32 %s314, 1
          %s1578 = scalar_lea.sflag [#allocation7], %s1577
          %s1579 = sand.u32 %s314, 1
          %s1580 = smul.addr %s1579, 8
          %s1581 = scalar_lea.vmem [#allocation6], %s1580
          %1582 = dma.done %s1578, 128
        $region84: #{tpu_custom_call.1} parent=79 // pred_fallthru
          _
      $region80: #{tpu_custom_call.1} parent=5 // pred_fallthru
        _
    $region6: #{tpu_custom_call.1} parent=1 // loop_footer
      %s26 = sadd.s32 1, %s22
    $region7: #{tpu_custom_call.1} parent=1 // loop_footer_branch
      %21 = sbr.rel target = $region3
    $region8: #{tpu_custom_call.1} parent=1 // loop_exit
      _
    %1583 = vsyncpa [#allocation7], 1
    %s1584 = scalar_lea.sflag [#allocation7], 1
    %1585 = vsyncpa %s1584, 1

</llo_original>
